<compile_context>
chip_gen: v5e
topology: v5e:2x2
jax: 0.10.0
libtpu: 0.0.40
codegen_flags: <defaults>
</compile_context>

<pallas_src>
import functools
import math

import jax
import jax.numpy as jnp
from jax import lax
from jax.experimental import pallas as pl
from jax.experimental.pallas import tpu as pltpu

# ----------------------------- small DistilBERT config -----------------------------
VOCAB = 100        # (real: 30522)
MAX_POS = 64       # (real: 512)
HIDDEN = 64        # (real: 768)  -- real model hidden size
N_HEADS = 4        # (real: 12)
N_LAYERS = 2       # (real: 6)
FFN = 128          # (real: 3072)
SEQ = 8
BATCH = 2
LN_EPS = 1e-12     # DistilBERT layer-norm epsilon

# ------------------------- lane-dense padded layout sizes --------------------------
HP = 128                    # padded hidden width (full 128-lane vregs)
DH = HIDDEN // N_HEADS      # 16  real per-head dim
DHP = HP // N_HEADS         # 32  padded per-head dim (heads at 32-lane boundaries)


# --------------------------------- fused kernel -------------------------------------
def _encoder_kernel(seq_len_ref,                      # SMEM (B,) int32 (scalar prefetch)
                    emb_ref,                          # (TB*S, HP) f32  word+pos embeddings
                    emb_g_ref, emb_b_ref,             # (1, HP) f32
                    wqkv_ref, bqkv_ref,               # (L, HP, 3HP) bf16 / (L, 1, 3HP) f32
                    wo_ref, bo_ref,                   # (L, HP, HP) bf16 / (L, 1, HP) f32
                    sa_g_ref, sa_b_ref,               # (L, 1, HP) f32
                    w1_ref, b1_ref,                   # (L, HP, FFN) bf16 / (L, 1, FFN) f32
                    w2_ref, b2_ref,                   # (L, FFN, HP) bf16 / (L, 1, HP) f32
                    out_g_ref, out_b_ref,             # (L, 1, HP) f32
                    o_ref,                            # (TB, HP) f32 -> CLS vectors
                    *, n_layers, n_heads, tb, seq, h_real):
    R = tb * seq
    inv_h = 1.0 / h_real

    def ln(z, g, b):
        # Padding-aware LayerNorm: padded columns of z are exactly zero, so
        # full-width sums equal real-width sums; normalize by the REAL width.
        mu = jnp.sum(z, axis=-1, keepdims=True) * inv_h
        var = jnp.sum(z * z, axis=-1, keepdims=True) * inv_h - mu * mu
        return (z - mu) * lax.rsqrt(var + LN_EPS) * g + b

    def matmul(x, w_bf16):
        # bf16 MXU matmul, f32 accumulation.
        return jnp.dot(x.astype(w_bf16.dtype), w_bf16,
                       preferred_element_type=jnp.float32)

    # ---- embedding layer norm (whole batch block at once) ----
    x = ln(emb_ref[...], emb_g_ref[...], emb_b_ref[...])          # (R, HP) f32

    # ---- block-diagonal key-padding bias, built once and reused by every layer ----
    rows = lax.broadcasted_iota(jnp.int32, (R, R), 0)
    cols = lax.broadcasted_iota(jnp.int32, (R, R), 1)
    bias = jnp.full((R, R), -1e9, dtype=jnp.float32)
    blk = pl.program_id(0)
    for b in range(tb):
        sl = seq_len_ref[blk * tb + b]
        q_in = (rows >= b * seq) & (rows < (b + 1) * seq)
        k_in = (cols >= b * seq) & (cols < b * seq + sl)
        bias = jnp.where(q_in & k_in, 0.0, bias)

    # ---- transformer blocks (statically unrolled; toy L=2) ----
    for l in range(n_layers):
        wqkv_l = wqkv_ref[l]
        wo_l = wo_ref[l]

        # fused Q|K|V projection (1/sqrt(dh) folded into Q weights)
        qkv = matmul(x, wqkv_l) + bqkv_ref[l]                     # (R, 3*HP)

        # per-head attention; head merge is folded into the output projection
        # (no concatenate, no sub-vreg context stores).
        sa = jnp.zeros((R, HP), jnp.float32)
        for hd in range(n_heads):
            c0 = hd * DHP
            qh = qkv[:, c0:c0 + DHP]                              # (R, DHP)
            kh = qkv[:, HP + c0:HP + c0 + DHP]
            vh = qkv[:, 2 * HP + c0:2 * HP + c0 + DHP]
            s = jnp.dot(qh, kh.T, preferred_element_type=jnp.float32) + bias
            m = jnp.max(s, axis=-1, keepdims=True)
            p = jnp.exp(s - m)
            inv = pl.reciprocal(jnp.sum(p, axis=-1, keepdims=True), approx=True)
            ctx_h = jnp.dot(p * inv, vh, preferred_element_type=jnp.float32)
            sa = sa + matmul(ctx_h, wo_l[c0:c0 + DHP, :])         # accumulate heads
        sa = sa + bo_ref[l]

        # residual + LN (fused)
        x = ln(sa + x, sa_g_ref[l], sa_b_ref[l])

        # FFN: W1 + GELU + W2 + residual + LN (fused)
        # TODO(synk): HF DistilBERT uses exact erf GELU; tanh approximation used here.
        h1 = jax.nn.gelu(matmul(x, w1_ref[l]) + b1_ref[l], approximate=True)
        ff = matmul(h1, w2_ref[l]) + b2_ref[l]
        x = ln(ff + x, out_g_ref[l], out_b_ref[l])

    # CLS token of each batch row-group (lane-dense 128-wide stores)
    for b in range(tb):
        o_ref[pl.ds(b, 1), :] = x[b * seq:b * seq + 1, :].astype(o_ref.dtype)


# ------------------------------- pallas wrapper --------------------------------------
def _full3(i, *_):
    return (0, 0, 0)


def _full2(i, *_):
    return (0, 0)


def distilbert_encoder(input_ids, attention_mask, fused):
    """input_ids, attention_mask: (B, S) int32; fused: output of fuse_params()."""
    B, S = input_ids.shape
    L = N_LAYERS
    TB = B                      # fold the whole batch into one grid step

    # Embedding gather is glue (plain JAX); everything else is one Pallas kernel.
    word = jnp.take(fused["word_emb"], input_ids, axis=0)                  # (B,S,HP)
    emb = word + fused["pos_emb"][:S][None, :, :]                          # (B,S,HP)
    emb = emb.reshape(B * S, HP)                                           # (B*S,HP)

    # Right-padded HF-style mask -> per-batch sequence length (scalar prefetch).
    seq_lens = attention_mask.astype(jnp.int32).sum(axis=-1)               # (B,)

    kernel = functools.partial(_encoder_kernel, n_layers=L, n_heads=N_HEADS,
                               tb=TB, seq=S, h_real=HIDDEN)

    out = pl.pallas_call(
        kernel,
        out_shape=jax.ShapeDtypeStruct((B, HP), jnp.float32),
        grid_spec=pltpu.PrefetchScalarGridSpec(
            num_scalar_prefetch=1,
            grid=(B // TB,),
            in_specs=[
                pl.BlockSpec((TB * S, HP), lambda i, *_: (i, 0)),    # emb (lane-dense)
                pl.BlockSpec((1, HP), _full2),                       # emb_ln_g
                pl.BlockSpec((1, HP), _full2),                       # emb_ln_b
                pl.BlockSpec((L, HP, 3 * HP), _full3),               # wqkv (bf16)
                pl.BlockSpec((L, 1, 3 * HP), _full3),                # bqkv
                pl.BlockSpec((L, HP, HP), _full3),                   # wo (bf16)
                pl.BlockSpec((L, 1, HP), _full3),                    # bo
                pl.BlockSpec((L, 1, HP), _full3),                    # sa_ln_g
                pl.BlockSpec((L, 1, HP), _full3),                    # sa_ln_b
                pl.BlockSpec((L, HP, FFN), _full3),                  # w1 (bf16)
                pl.BlockSpec((L, 1, FFN), _full3),                   # b1
                pl.BlockSpec((L, FFN, HP), _full3),                  # w2 (bf16)
                pl.BlockSpec((L, 1, HP), _full3),                    # b2
                pl.BlockSpec((L, 1, HP), _full3),                    # out_ln_g
                pl.BlockSpec((L, 1, HP), _full3),                    # out_ln_b
            ],
            out_specs=pl.BlockSpec((TB, HP), lambda i, *_: (i, 0)),
        ),
        compiler_params=pltpu.CompilerParams(
            dimension_semantics=("parallel",),
            vmem_limit_bytes=32 * 1024 * 1024),
    )(
        seq_lens, emb,
        fused["emb_ln_g"], fused["emb_ln_b"],
        fused["wqkv"], fused["bqkv"],
        fused["wo"], fused["bo"],
        fused["sa_ln_g"], fused["sa_ln_b"],
        fused["w1"], fused["b1"],
        fused["w2"], fused["b2"],
        fused["out_ln_g"], fused["out_ln_b"],
    )
    return out[:, :HIDDEN]                                           # (B, H) CLS vector


# ------------------------------- parameter init / fusion -----------------------------
def init_params(key):
    std = 0.02

    def normal(k, shape):
        return std * jax.random.normal(k, shape, dtype=jnp.float32)

    ks = jax.random.split(key, 2 + N_LAYERS)
    params = {
        "word_emb": normal(ks[0], (VOCAB, HIDDEN)),
        "pos_emb": normal(ks[1], (MAX_POS, HIDDEN)),
        "emb_ln_g": jnp.ones((1, HIDDEN), jnp.float32),
        "emb_ln_b": jnp.zeros((1, HIDDEN), jnp.float32),
        "layers": [],
    }
    for l in range(N_LAYERS):
        lk = jax.random.split(ks[2 + l], 6)
        params["layers"].append({
            "wq": normal(lk[0], (HIDDEN, HIDDEN)), "bq": jnp.zeros((1, HIDDEN), jnp.float32),
            "wk": normal(lk[1], (HIDDEN, HIDDEN)), "bk": jnp.zeros((1, HIDDEN), jnp.float32),
            "wv": normal(lk[2], (HIDDEN, HIDDEN)), "bv": jnp.zeros((1, HIDDEN), jnp.float32),
            "wo": normal(lk[3], (HIDDEN, HIDDEN)), "bo": jnp.zeros((1, HIDDEN), jnp.float32),
            "sa_ln_g": jnp.ones((1, HIDDEN), jnp.float32),
            "sa_ln_b": jnp.zeros((1, HIDDEN), jnp.float32),
            "w1": normal(lk[4], (HIDDEN, FFN)), "b1": jnp.zeros((1, FFN), jnp.float32),
            "w2": normal(lk[5], (FFN, HIDDEN)), "b2": jnp.zeros((1, HIDDEN), jnp.float32),
            "out_ln_g": jnp.ones((1, HIDDEN), jnp.float32),
            "out_ln_b": jnp.zeros((1, HIDDEN), jnp.float32),
        })
    return params


def _pad_last(a, width):
    """Zero-pad the trailing (lane) dim to `width`."""
    return jnp.pad(a, [(0, 0)] * (a.ndim - 1) + [(0, width - a.shape[-1])])


def _pad_rows(a, height):
    """Zero-pad the leading (row) dim to `height`."""
    return jnp.pad(a, [(0, height - a.shape[0])] + [(0, 0)] * (a.ndim - 1))


def _head_pad_cols(w):
    """(rows, H) -> (rows, HP): head h's DH real cols land at [h*DHP, h*DHP+DH)."""
    parts = [jnp.pad(w[:, h * DH:(h + 1) * DH], ((0, 0), (0, DHP - DH)))
             for h in range(N_HEADS)]
    return jnp.concatenate(parts, axis=1)


def _head_pad_rows(w):
    """(H, cols) -> (HP, cols): head h's DH real rows land at [h*DHP, h*DHP+DH)."""
    parts = [jnp.pad(w[h * DH:(h + 1) * DH, :], ((0, DHP - DH), (0, 0)))
             for h in range(N_HEADS)]
    return jnp.concatenate(parts, axis=0)


def fuse_params(params):
    """Stack per-layer weights, fuse Q|K|V, fold 1/sqrt(dh) into Q, pad everything
    to the lane-dense HP=128 layout (all padding exactly zero so LN stats and
    attention are unaffected), cast matmul weights to bf16."""
    scale = 1.0 / math.sqrt(DH)
    names = ("wqkv", "bqkv", "wo", "bo", "sa_ln_g", "sa_ln_b",
             "w1", "b1", "w2", "b2", "out_ln_g", "out_ln_b")
    cols = {k: [] for k in names}
    for lyr in params["layers"]:
        wq = _pad_rows(_head_pad_cols(lyr["wq"] * scale), HP)          # (HP, HP)
        wk = _pad_rows(_head_pad_cols(lyr["wk"]), HP)
        wv = _pad_rows(_head_pad_cols(lyr["wv"]), HP)
        cols["wqkv"].append(jnp.concatenate([wq, wk, wv], axis=1))     # (HP, 3HP)
        bq = _head_pad_cols(lyr["bq"] * scale)                         # (1, HP)
        bk = _head_pad_cols(lyr["bk"])
        bv = _head_pad_cols(lyr["bv"])
        cols["bqkv"].append(jnp.concatenate([bq, bk, bv], axis=1))     # (1, 3HP)
        cols["wo"].append(_pad_last(_head_pad_rows(lyr["wo"]), HP))    # (HP, HP)
        cols["bo"].append(_pad_last(lyr["bo"], HP))
        cols["sa_ln_g"].append(_pad_last(lyr["sa_ln_g"], HP))
        cols["sa_ln_b"].append(_pad_last(lyr["sa_ln_b"], HP))
        cols["w1"].append(_pad_rows(lyr["w1"], HP))                    # (HP, FFN)
        cols["b1"].append(lyr["b1"])
        cols["w2"].append(_pad_last(lyr["w2"], HP))                    # (FFN, HP)
        cols["b2"].append(_pad_last(lyr["b2"], HP))
        cols["out_ln_g"].append(_pad_last(lyr["out_ln_g"], HP))
        cols["out_ln_b"].append(_pad_last(lyr["out_ln_b"], HP))

    stacked = {k: jnp.stack(v, axis=0) for k, v in cols.items()}
    for w in ("wqkv", "wo", "w1", "w2"):
        stacked[w] = stacked[w].astype(jnp.bfloat16)

    stacked.update({
        "word_emb": _pad_last(params["word_emb"], HP),
        "pos_emb": _pad_last(params["pos_emb"], HP),
        "emb_ln_g": _pad_last(params["emb_ln_g"], HP),
        "emb_ln_b": _pad_last(params["emb_ln_b"], HP),
    })
    return stacked


# ------------------------------------- main -------------------------------------------
if __name__ == "__main__":
    root = jax.random.PRNGKey(0)
    k_params, k_ids = jax.random.split(root)

    params = init_params(k_params)
    fused = fuse_params(params)

    input_ids = jax.random.randint(k_ids, (BATCH, SEQ), 0, VOCAB, dtype=jnp.int32)
    attention_mask = jnp.ones((BATCH, SEQ), dtype=jnp.int32)

    encoder = jax.jit(distilbert_encoder)
    out = encoder(input_ids, attention_mask, fused)
    out = jax.block_until_ready(out)

    assert out.shape == (BATCH, HIDDEN), out.shape
    assert jnp.all(jnp.isfinite(out))
    print("KERNEL_OK")
</pallas_src>

<mosaic_0001>
module attributes {stable_mosaic.version = 11 : i64} {
  func.func @_encoder_kernel(%arg0: i32, %arg1: memref<2xi32, #tpu.memory_space<smem>>, %arg2: memref<16x128xf32, #tpu.memory_space<vmem>>, %arg3: memref<1x128xf32, #tpu.memory_space<vmem>>, %arg4: memref<1x128xf32, #tpu.memory_space<vmem>>, %arg5: memref<2x128x384xbf16, #tpu.memory_space<vmem>>, %arg6: memref<2x1x384xf32, #tpu.memory_space<vmem>>, %arg7: memref<2x128x128xbf16, #tpu.memory_space<vmem>>, %arg8: memref<2x1x128xf32, #tpu.memory_space<vmem>>, %arg9: memref<2x1x128xf32, #tpu.memory_space<vmem>>, %arg10: memref<2x1x128xf32, #tpu.memory_space<vmem>>, %arg11: memref<2x128x128xbf16, #tpu.memory_space<vmem>>, %arg12: memref<2x1x128xf32, #tpu.memory_space<vmem>>, %arg13: memref<2x128x128xbf16, #tpu.memory_space<vmem>>, %arg14: memref<2x1x128xf32, #tpu.memory_space<vmem>>, %arg15: memref<2x1x128xf32, #tpu.memory_space<vmem>>, %arg16: memref<2x1x128xf32, #tpu.memory_space<vmem>>, %arg17: memref<2x128xf32, #tpu.memory_space<vmem>>) attributes {dimension_semantics = [#tpu.dimension_semantics<parallel>], iteration_bounds = array<i64: 1>, scalar_prefetch = 1 : i64, scratch_operands = 0 : i64, tpu.core_type = #tpu.core_type<tc>, window_params = [{transform_indices = @transform_0, window_bounds = array<i64: 16, 128>}, {pipeline_mode = #tpu.pipeline_mode<synchronous>, transform_indices = @transform_1, window_bounds = array<i64: 1, 128>}, {pipeline_mode = #tpu.pipeline_mode<synchronous>, transform_indices = @transform_2, window_bounds = array<i64: 1, 128>}, {pipeline_mode = #tpu.pipeline_mode<synchronous>, transform_indices = @transform_3, window_bounds = array<i64: 2, 128, 384>}, {pipeline_mode = #tpu.pipeline_mode<synchronous>, transform_indices = @transform_4, window_bounds = array<i64: 2, 1, 384>}, {pipeline_mode = #tpu.pipeline_mode<synchronous>, transform_indices = @transform_5, window_bounds = array<i64: 2, 128, 128>}, {pipeline_mode = #tpu.pipeline_mode<synchronous>, transform_indices = @transform_6, window_bounds = array<i64: 2, 1, 128>}, {pipeline_mode = #tpu.pipeline_mode<synchronous>, transform_indices = @transform_7, window_bounds = array<i64: 2, 1, 128>}, {pipeline_mode = #tpu.pipeline_mode<synchronous>, transform_indices = @transform_8, window_bounds = array<i64: 2, 1, 128>}, {pipeline_mode = #tpu.pipeline_mode<synchronous>, transform_indices = @transform_9, window_bounds = array<i64: 2, 128, 128>}, {pipeline_mode = #tpu.pipeline_mode<synchronous>, transform_indices = @transform_10, window_bounds = array<i64: 2, 1, 128>}, {pipeline_mode = #tpu.pipeline_mode<synchronous>, transform_indices = @transform_11, window_bounds = array<i64: 2, 128, 128>}, {pipeline_mode = #tpu.pipeline_mode<synchronous>, transform_indices = @transform_12, window_bounds = array<i64: 2, 1, 128>}, {pipeline_mode = #tpu.pipeline_mode<synchronous>, transform_indices = @transform_13, window_bounds = array<i64: 2, 1, 128>}, {pipeline_mode = #tpu.pipeline_mode<synchronous>, transform_indices = @transform_14, window_bounds = array<i64: 2, 1, 128>}, {transform_indices = @transform_15, window_bounds = array<i64: 2, 128>}]} {
    %c0 = arith.constant 0 : index
    %c0_0 = arith.constant 0 : index
    %0 = vector.load %arg2[%c0, %c0_0] : memref<16x128xf32, #tpu.memory_space<vmem>>, vector<16x128xf32>
    %c0_1 = arith.constant 0 : index
    %c0_2 = arith.constant 0 : index
    %1 = vector.load %arg3[%c0_1, %c0_2] : memref<1x128xf32, #tpu.memory_space<vmem>>, vector<1x128xf32>
    %c0_3 = arith.constant 0 : index
    %c0_4 = arith.constant 0 : index
    %2 = vector.load %arg4[%c0_3, %c0_4] : memref<1x128xf32, #tpu.memory_space<vmem>>, vector<1x128xf32>
    %cst = arith.constant dense<0.000000e+00> : vector<16xf32>
    %3 = vector.multi_reduction <add>, %0, %cst [1] : vector<16x128xf32> to vector<16xf32>
    %4 = vector.shape_cast %3 : vector<16xf32> to vector<16x1xf32>
    %cst_5 = arith.constant 1.562500e-02 : f32
    %5 = vector.broadcast %cst_5 : f32 to vector<16x1xf32>
    %6 = arith.mulf %4, %5 : vector<16x1xf32>
    %7 = arith.mulf %0, %0 : vector<16x128xf32>
    %cst_6 = arith.constant dense<0.000000e+00> : vector<16xf32>
    %8 = vector.multi_reduction <add>, %7, %cst_6 [1] : vector<16x128xf32> to vector<16xf32>
    %9 = vector.shape_cast %8 : vector<16xf32> to vector<16x1xf32>
    %cst_7 = arith.constant 1.562500e-02 : f32
    %10 = vector.broadcast %cst_7 : f32 to vector<16x1xf32>
    %11 = arith.mulf %9, %10 : vector<16x1xf32>
    %12 = arith.mulf %6, %6 : vector<16x1xf32>
    %13 = arith.subf %11, %12 : vector<16x1xf32>
    %14 = vector.broadcast %6 : vector<16x1xf32> to vector<16x128xf32>
    %15 = arith.subf %0, %14 : vector<16x128xf32>
    %cst_8 = arith.constant 9.99999996E-13 : f32
    %16 = vector.broadcast %cst_8 : f32 to vector<16x1xf32>
    %17 = arith.addf %13, %16 : vector<16x1xf32>
    %18 = math.rsqrt %17 : vector<16x1xf32>
    %19 = vector.broadcast %18 : vector<16x1xf32> to vector<16x128xf32>
    %20 = arith.mulf %15, %19 : vector<16x128xf32>
    %21 = vector.broadcast %1 : vector<1x128xf32> to vector<16x128xf32>
    %22 = arith.mulf %20, %21 : vector<16x128xf32>
    %23 = vector.broadcast %2 : vector<1x128xf32> to vector<16x128xf32>
    %24 = arith.addf %22, %23 : vector<16x128xf32>
    %25 = tpu.iota {dimensions = array<i32: 0>} : vector<16x16xi32>
    %26 = tpu.iota {dimensions = array<i32: 1>} : vector<16x16xi32>
    %cst_9 = arith.constant -1.000000e+09 : f32
    %27 = vector.broadcast %cst_9 : f32 to vector<16x16xf32>
    %c2_i32 = arith.constant 2 : i32
    %28 = arith.muli %arg0, %c2_i32 : i32
    %c0_i32 = arith.constant 0 : i32
    %29 = arith.addi %28, %c0_i32 : i32
    %30 = arith.index_cast %29 : i32 to index
    %31 = memref.load %arg1[%30] : memref<2xi32, #tpu.memory_space<smem>>
    %c0_i32_10 = arith.constant 0 : i32
    %32 = vector.broadcast %c0_i32_10 : i32 to vector<16x16xi32>
    %33 = arith.cmpi sge, %25, %32 : vector<16x16xi32>
    %c8_i32 = arith.constant 8 : i32
    %34 = vector.broadcast %c8_i32 : i32 to vector<16x16xi32>
    %35 = arith.cmpi slt, %25, %34 : vector<16x16xi32>
    %36 = arith.andi %33, %35 : vector<16x16xi1>
    %c0_i32_11 = arith.constant 0 : i32
    %37 = vector.broadcast %c0_i32_11 : i32 to vector<16x16xi32>
    %38 = arith.cmpi sge, %26, %37 : vector<16x16xi32>
    %c0_i32_12 = arith.constant 0 : i32
    %39 = arith.addi %c0_i32_12, %31 : i32
    %40 = vector.broadcast %39 : i32 to vector<16x16xi32>
    %41 = arith.cmpi slt, %26, %40 : vector<16x16xi32>
    %42 = arith.andi %38, %41 : vector<16x16xi1>
    %43 = arith.andi %36, %42 : vector<16x16xi1>
    %cst_13 = arith.constant 0.000000e+00 : f32
    %44 = vector.broadcast %cst_13 : f32 to vector<16x16xf32>
    %45 = arith.select %43, %44, %27 : vector<16x16xi1>, vector<16x16xf32>
    %c2_i32_14 = arith.constant 2 : i32
    %46 = arith.muli %arg0, %c2_i32_14 : i32
    %c1_i32 = arith.constant 1 : i32
    %47 = arith.addi %46, %c1_i32 : i32
    %48 = arith.index_cast %47 : i32 to index
    %49 = memref.load %arg1[%48] : memref<2xi32, #tpu.memory_space<smem>>
    %c8_i32_15 = arith.constant 8 : i32
    %50 = vector.broadcast %c8_i32_15 : i32 to vector<16x16xi32>
    %51 = arith.cmpi sge, %25, %50 : vector<16x16xi32>
    %c16_i32 = arith.constant 16 : i32
    %52 = vector.broadcast %c16_i32 : i32 to vector<16x16xi32>
    %53 = arith.cmpi slt, %25, %52 : vector<16x16xi32>
    %54 = arith.andi %51, %53 : vector<16x16xi1>
    %c8_i32_16 = arith.constant 8 : i32
    %55 = vector.broadcast %c8_i32_16 : i32 to vector<16x16xi32>
    %56 = arith.cmpi sge, %26, %55 : vector<16x16xi32>
    %c8_i32_17 = arith.constant 8 : i32
    %57 = arith.addi %c8_i32_17, %49 : i32
    %58 = vector.broadcast %57 : i32 to vector<16x16xi32>
    %59 = arith.cmpi slt, %26, %58 : vector<16x16xi32>
    %60 = arith.andi %56, %59 : vector<16x16xi1>
    %61 = arith.andi %54, %60 : vector<16x16xi1>
    %cst_18 = arith.constant 0.000000e+00 : f32
    %62 = vector.broadcast %cst_18 : f32 to vector<16x16xf32>
    %63 = arith.select %61, %62, %45 : vector<16x16xi1>, vector<16x16xf32>
    %c0_19 = arith.constant 0 : index
    %c0_20 = arith.constant 0 : index
    %c0_21 = arith.constant 0 : index
    %64 = vector.load %arg5[%c0_19, %c0_20, %c0_21] : memref<2x128x384xbf16, #tpu.memory_space<vmem>>, vector<1x128x384xbf16>
    %65 = vector.shape_cast %64 : vector<1x128x384xbf16> to vector<128x384xbf16>
    %c0_22 = arith.constant 0 : index
    %c0_23 = arith.constant 0 : index
    %c0_24 = arith.constant 0 : index
    %66 = vector.load %arg7[%c0_22, %c0_23, %c0_24] : memref<2x128x128xbf16, #tpu.memory_space<vmem>>, vector<1x128x128xbf16>
    %67 = vector.shape_cast %66 : vector<1x128x128xbf16> to vector<128x128xbf16>
    %68 = arith.truncf %24 : vector<16x128xf32> to vector<16x128xbf16>
    %cst_25 = arith.constant dense<0.000000e+00> : vector<16x384xf32>
    %69 = tpu.matmul %68, %65, %cst_25 {dimension_numbers = #tpu.dot_dimension_numbers<[1], [0], [0], [1], [0, 0, 1, 1], [], []>} : vector<16x128xbf16>, vector<128x384xbf16>, vector<16x384xf32> -> vector<16x384xf32>
    %c0_26 = arith.constant 0 : index
    %c0_27 = arith.constant 0 : index
    %c0_28 = arith.constant 0 : index
    %70 = vector.load %arg6[%c0_26, %c0_27, %c0_28] : memref<2x1x384xf32, #tpu.memory_space<vmem>>, vector<1x1x384xf32>
    %71 = vector.shape_cast %70 : vector<1x1x384xf32> to vector<1x384xf32>
    %72 = vector.broadcast %71 : vector<1x384xf32> to vector<16x384xf32>
    %73 = arith.addf %69, %72 : vector<16x384xf32>
    %cst_29 = arith.constant 0.000000e+00 : f32
    %74 = vector.broadcast %cst_29 : f32 to vector<16x128xf32>
    %75 = vector.extract_strided_slice %73 {offsets = [0, 0], sizes = [16, 32], strides = [1, 1]} : vector<16x384xf32> to vector<16x32xf32>
    %76 = vector.extract_strided_slice %73 {offsets = [0, 128], sizes = [16, 32], strides = [1, 1]} : vector<16x384xf32> to vector<16x32xf32>
    %77 = vector.extract_strided_slice %73 {offsets = [0, 256], sizes = [16, 32], strides = [1, 1]} : vector<16x384xf32> to vector<16x32xf32>
    %78 = tpu.transpose %76, [1, 0] : vector<16x32xf32> -> vector<32x16xf32>
    %cst_30 = arith.constant dense<0.000000e+00> : vector<16x16xf32>
    %79 = tpu.matmul %75, %78, %cst_30 {dimension_numbers = #tpu.dot_dimension_numbers<[1], [0], [0], [1], [0, 0, 1, 1], [], []>} : vector<16x32xf32>, vector<32x16xf32>, vector<16x16xf32> -> vector<16x16xf32>
    %80 = arith.addf %79, %63 : vector<16x16xf32>
    %cst_31 = arith.constant dense<0xFF800000> : vector<16xf32>
    %81 = vector.multi_reduction <maximumf>, %80, %cst_31 [1] : vector<16x16xf32> to vector<16xf32>
    %82 = vector.shape_cast %81 : vector<16xf32> to vector<16x1xf32>
    %83 = vector.broadcast %82 : vector<16x1xf32> to vector<16x16xf32>
    %84 = arith.subf %80, %83 : vector<16x16xf32>
    %85 = math.exp %84 : vector<16x16xf32>
    %cst_32 = arith.constant dense<0.000000e+00> : vector<16xf32>
    %86 = vector.multi_reduction <add>, %85, %cst_32 [1] : vector<16x16xf32> to vector<16xf32>
    %87 = vector.shape_cast %86 : vector<16xf32> to vector<16x1xf32>
    %88 = tpu.reciprocal %87 {approx = true} : vector<16x1xf32> -> vector<16x1xf32>
    %89 = vector.broadcast %88 : vector<16x1xf32> to vector<16x16xf32>
    %90 = arith.mulf %85, %89 : vector<16x16xf32>
    %cst_33 = arith.constant dense<0.000000e+00> : vector<16x32xf32>
    %91 = tpu.matmul %90, %77, %cst_33 {dimension_numbers = #tpu.dot_dimension_numbers<[1], [0], [0], [1], [0, 0, 1, 1], [], []>} : vector<16x16xf32>, vector<16x32xf32>, vector<16x32xf32> -> vector<16x32xf32>
    %92 = vector.extract_strided_slice %67 {offsets = [0, 0], sizes = [32, 128], strides = [1, 1]} : vector<128x128xbf16> to vector<32x128xbf16>
    %93 = arith.truncf %91 : vector<16x32xf32> to vector<16x32xbf16>
    %cst_34 = arith.constant dense<0.000000e+00> : vector<16x128xf32>
    %94 = tpu.matmul %93, %92, %cst_34 {dimension_numbers = #tpu.dot_dimension_numbers<[1], [0], [0], [1], [0, 0, 1, 1], [], []>} : vector<16x32xbf16>, vector<32x128xbf16>, vector<16x128xf32> -> vector<16x128xf32>
    %95 = arith.addf %74, %94 : vector<16x128xf32>
    %96 = vector.extract_strided_slice %73 {offsets = [0, 32], sizes = [16, 32], strides = [1, 1]} : vector<16x384xf32> to vector<16x32xf32>
    %97 = vector.extract_strided_slice %73 {offsets = [0, 160], sizes = [16, 32], strides = [1, 1]} : vector<16x384xf32> to vector<16x32xf32>
    %98 = vector.extract_strided_slice %73 {offsets = [0, 288], sizes = [16, 32], strides = [1, 1]} : vector<16x384xf32> to vector<16x32xf32>
    %99 = tpu.transpose %97, [1, 0] : vector<16x32xf32> -> vector<32x16xf32>
    %cst_35 = arith.constant dense<0.000000e+00> : vector<16x16xf32>
    %100 = tpu.matmul %96, %99, %cst_35 {dimension_numbers = #tpu.dot_dimension_numbers<[1], [0], [0], [1], [0, 0, 1, 1], [], []>} : vector<16x32xf32>, vector<32x16xf32>, vector<16x16xf32> -> vector<16x16xf32>
    %101 = arith.addf %100, %63 : vector<16x16xf32>
    %cst_36 = arith.constant dense<0xFF800000> : vector<16xf32>
    %102 = vector.multi_reduction <maximumf>, %101, %cst_36 [1] : vector<16x16xf32> to vector<16xf32>
    %103 = vector.shape_cast %102 : vector<16xf32> to vector<16x1xf32>
    %104 = vector.broadcast %103 : vector<16x1xf32> to vector<16x16xf32>
    %105 = arith.subf %101, %104 : vector<16x16xf32>
    %106 = math.exp %105 : vector<16x16xf32>
    %cst_37 = arith.constant dense<0.000000e+00> : vector<16xf32>
    %107 = vector.multi_reduction <add>, %106, %cst_37 [1] : vector<16x16xf32> to vector<16xf32>
    %108 = vector.shape_cast %107 : vector<16xf32> to vector<16x1xf32>
    %109 = tpu.reciprocal %108 {approx = true} : vector<16x1xf32> -> vector<16x1xf32>
    %110 = vector.broadcast %109 : vector<16x1xf32> to vector<16x16xf32>
    %111 = arith.mulf %106, %110 : vector<16x16xf32>
    %cst_38 = arith.constant dense<0.000000e+00> : vector<16x32xf32>
    %112 = tpu.matmul %111, %98, %cst_38 {dimension_numbers = #tpu.dot_dimension_numbers<[1], [0], [0], [1], [0, 0, 1, 1], [], []>} : vector<16x16xf32>, vector<16x32xf32>, vector<16x32xf32> -> vector<16x32xf32>
    %113 = vector.extract_strided_slice %67 {offsets = [32, 0], sizes = [32, 128], strides = [1, 1]} : vector<128x128xbf16> to vector<32x128xbf16>
    %114 = arith.truncf %112 : vector<16x32xf32> to vector<16x32xbf16>
    %cst_39 = arith.constant dense<0.000000e+00> : vector<16x128xf32>
    %115 = tpu.matmul %114, %113, %cst_39 {dimension_numbers = #tpu.dot_dimension_numbers<[1], [0], [0], [1], [0, 0, 1, 1], [], []>} : vector<16x32xbf16>, vector<32x128xbf16>, vector<16x128xf32> -> vector<16x128xf32>
    %116 = arith.addf %95, %115 : vector<16x128xf32>
    %117 = vector.extract_strided_slice %73 {offsets = [0, 64], sizes = [16, 32], strides = [1, 1]} : vector<16x384xf32> to vector<16x32xf32>
    %118 = vector.extract_strided_slice %73 {offsets = [0, 192], sizes = [16, 32], strides = [1, 1]} : vector<16x384xf32> to vector<16x32xf32>
    %119 = vector.extract_strided_slice %73 {offsets = [0, 320], sizes = [16, 32], strides = [1, 1]} : vector<16x384xf32> to vector<16x32xf32>
    %120 = tpu.transpose %118, [1, 0] : vector<16x32xf32> -> vector<32x16xf32>
    %cst_40 = arith.constant dense<0.000000e+00> : vector<16x16xf32>
    %121 = tpu.matmul %117, %120, %cst_40 {dimension_numbers = #tpu.dot_dimension_numbers<[1], [0], [0], [1], [0, 0, 1, 1], [], []>} : vector<16x32xf32>, vector<32x16xf32>, vector<16x16xf32> -> vector<16x16xf32>
    %122 = arith.addf %121, %63 : vector<16x16xf32>
    %cst_41 = arith.constant dense<0xFF800000> : vector<16xf32>
    %123 = vector.multi_reduction <maximumf>, %122, %cst_41 [1] : vector<16x16xf32> to vector<16xf32>
    %124 = vector.shape_cast %123 : vector<16xf32> to vector<16x1xf32>
    %125 = vector.broadcast %124 : vector<16x1xf32> to vector<16x16xf32>
    %126 = arith.subf %122, %125 : vector<16x16xf32>
    %127 = math.exp %126 : vector<16x16xf32>
    %cst_42 = arith.constant dense<0.000000e+00> : vector<16xf32>
    %128 = vector.multi_reduction <add>, %127, %cst_42 [1] : vector<16x16xf32> to vector<16xf32>
    %129 = vector.shape_cast %128 : vector<16xf32> to vector<16x1xf32>
    %130 = tpu.reciprocal %129 {approx = true} : vector<16x1xf32> -> vector<16x1xf32>
    %131 = vector.broadcast %130 : vector<16x1xf32> to vector<16x16xf32>
    %132 = arith.mulf %127, %131 : vector<16x16xf32>
    %cst_43 = arith.constant dense<0.000000e+00> : vector<16x32xf32>
    %133 = tpu.matmul %132, %119, %cst_43 {dimension_numbers = #tpu.dot_dimension_numbers<[1], [0], [0], [1], [0, 0, 1, 1], [], []>} : vector<16x16xf32>, vector<16x32xf32>, vector<16x32xf32> -> vector<16x32xf32>
    %134 = vector.extract_strided_slice %67 {offsets = [64, 0], sizes = [32, 128], strides = [1, 1]} : vector<128x128xbf16> to vector<32x128xbf16>
    %135 = arith.truncf %133 : vector<16x32xf32> to vector<16x32xbf16>
    %cst_44 = arith.constant dense<0.000000e+00> : vector<16x128xf32>
    %136 = tpu.matmul %135, %134, %cst_44 {dimension_numbers = #tpu.dot_dimension_numbers<[1], [0], [0], [1], [0, 0, 1, 1], [], []>} : vector<16x32xbf16>, vector<32x128xbf16>, vector<16x128xf32> -> vector<16x128xf32>
    %137 = arith.addf %116, %136 : vector<16x128xf32>
    %138 = vector.extract_strided_slice %73 {offsets = [0, 96], sizes = [16, 32], strides = [1, 1]} : vector<16x384xf32> to vector<16x32xf32>
    %139 = vector.extract_strided_slice %73 {offsets = [0, 224], sizes = [16, 32], strides = [1, 1]} : vector<16x384xf32> to vector<16x32xf32>
    %140 = vector.extract_strided_slice %73 {offsets = [0, 352], sizes = [16, 32], strides = [1, 1]} : vector<16x384xf32> to vector<16x32xf32>
    %141 = tpu.transpose %139, [1, 0] : vector<16x32xf32> -> vector<32x16xf32>
    %cst_45 = arith.constant dense<0.000000e+00> : vector<16x16xf32>
    %142 = tpu.matmul %138, %141, %cst_45 {dimension_numbers = #tpu.dot_dimension_numbers<[1], [0], [0], [1], [0, 0, 1, 1], [], []>} : vector<16x32xf32>, vector<32x16xf32>, vector<16x16xf32> -> vector<16x16xf32>
    %143 = arith.addf %142, %63 : vector<16x16xf32>
    %cst_46 = arith.constant dense<0xFF800000> : vector<16xf32>
    %144 = vector.multi_reduction <maximumf>, %143, %cst_46 [1] : vector<16x16xf32> to vector<16xf32>
    %145 = vector.shape_cast %144 : vector<16xf32> to vector<16x1xf32>
    %146 = vector.broadcast %145 : vector<16x1xf32> to vector<16x16xf32>
    %147 = arith.subf %143, %146 : vector<16x16xf32>
    %148 = math.exp %147 : vector<16x16xf32>
    %cst_47 = arith.constant dense<0.000000e+00> : vector<16xf32>
    %149 = vector.multi_reduction <add>, %148, %cst_47 [1] : vector<16x16xf32> to vector<16xf32>
    %150 = vector.shape_cast %149 : vector<16xf32> to vector<16x1xf32>
    %151 = tpu.reciprocal %150 {approx = true} : vector<16x1xf32> -> vector<16x1xf32>
    %152 = vector.broadcast %151 : vector<16x1xf32> to vector<16x16xf32>
    %153 = arith.mulf %148, %152 : vector<16x16xf32>
    %cst_48 = arith.constant dense<0.000000e+00> : vector<16x32xf32>
    %154 = tpu.matmul %153, %140, %cst_48 {dimension_numbers = #tpu.dot_dimension_numbers<[1], [0], [0], [1], [0, 0, 1, 1], [], []>} : vector<16x16xf32>, vector<16x32xf32>, vector<16x32xf32> -> vector<16x32xf32>
    %155 = vector.extract_strided_slice %67 {offsets = [96, 0], sizes = [32, 128], strides = [1, 1]} : vector<128x128xbf16> to vector<32x128xbf16>
    %156 = arith.truncf %154 : vector<16x32xf32> to vector<16x32xbf16>
    %cst_49 = arith.constant dense<0.000000e+00> : vector<16x128xf32>
    %157 = tpu.matmul %156, %155, %cst_49 {dimension_numbers = #tpu.dot_dimension_numbers<[1], [0], [0], [1], [0, 0, 1, 1], [], []>} : vector<16x32xbf16>, vector<32x128xbf16>, vector<16x128xf32> -> vector<16x128xf32>
    %158 = arith.addf %137, %157 : vector<16x128xf32>
    %c0_50 = arith.constant 0 : index
    %c0_51 = arith.constant 0 : index
    %c0_52 = arith.constant 0 : index
    %159 = vector.load %arg8[%c0_50, %c0_51, %c0_52] : memref<2x1x128xf32, #tpu.memory_space<vmem>>, vector<1x1x128xf32>
    %160 = vector.shape_cast %159 : vector<1x1x128xf32> to vector<1x128xf32>
    %161 = vector.broadcast %160 : vector<1x128xf32> to vector<16x128xf32>
    %162 = arith.addf %158, %161 : vector<16x128xf32>
    %163 = arith.addf %162, %24 : vector<16x128xf32>
    %c0_53 = arith.constant 0 : index
    %c0_54 = arith.constant 0 : index
    %c0_55 = arith.constant 0 : index
    %164 = vector.load %arg9[%c0_53, %c0_54, %c0_55] : memref<2x1x128xf32, #tpu.memory_space<vmem>>, vector<1x1x128xf32>
    %165 = vector.shape_cast %164 : vector<1x1x128xf32> to vector<1x128xf32>
    %c0_56 = arith.constant 0 : index
    %c0_57 = arith.constant 0 : index
    %c0_58 = arith.constant 0 : index
    %166 = vector.load %arg10[%c0_56, %c0_57, %c0_58] : memref<2x1x128xf32, #tpu.memory_space<vmem>>, vector<1x1x128xf32>
    %167 = vector.shape_cast %166 : vector<1x1x128xf32> to vector<1x128xf32>
    %cst_59 = arith.constant dense<0.000000e+00> : vector<16xf32>
    %168 = vector.multi_reduction <add>, %163, %cst_59 [1] : vector<16x128xf32> to vector<16xf32>
    %169 = vector.shape_cast %168 : vector<16xf32> to vector<16x1xf32>
    %cst_60 = arith.constant 1.562500e-02 : f32
    %170 = vector.broadcast %cst_60 : f32 to vector<16x1xf32>
    %171 = arith.mulf %169, %170 : vector<16x1xf32>
    %172 = arith.mulf %163, %163 : vector<16x128xf32>
    %cst_61 = arith.constant dense<0.000000e+00> : vector<16xf32>
    %173 = vector.multi_reduction <add>, %172, %cst_61 [1] : vector<16x128xf32> to vector<16xf32>
    %174 = vector.shape_cast %173 : vector<16xf32> to vector<16x1xf32>
    %cst_62 = arith.constant 1.562500e-02 : f32
    %175 = vector.broadcast %cst_62 : f32 to vector<16x1xf32>
    %176 = arith.mulf %174, %175 : vector<16x1xf32>
    %177 = arith.mulf %171, %171 : vector<16x1xf32>
    %178 = arith.subf %176, %177 : vector<16x1xf32>
    %179 = vector.broadcast %171 : vector<16x1xf32> to vector<16x128xf32>
    %180 = arith.subf %163, %179 : vector<16x128xf32>
    %cst_63 = arith.constant 9.99999996E-13 : f32
    %181 = vector.broadcast %cst_63 : f32 to vector<16x1xf32>
    %182 = arith.addf %178, %181 : vector<16x1xf32>
    %183 = math.rsqrt %182 : vector<16x1xf32>
    %184 = vector.broadcast %183 : vector<16x1xf32> to vector<16x128xf32>
    %185 = arith.mulf %180, %184 : vector<16x128xf32>
    %186 = vector.broadcast %165 : vector<1x128xf32> to vector<16x128xf32>
    %187 = arith.mulf %185, %186 : vector<16x128xf32>
    %188 = vector.broadcast %167 : vector<1x128xf32> to vector<16x128xf32>
    %189 = arith.addf %187, %188 : vector<16x128xf32>
    %c0_64 = arith.constant 0 : index
    %c0_65 = arith.constant 0 : index
    %c0_66 = arith.constant 0 : index
    %190 = vector.load %arg11[%c0_64, %c0_65, %c0_66] : memref<2x128x128xbf16, #tpu.memory_space<vmem>>, vector<1x128x128xbf16>
    %191 = vector.shape_cast %190 : vector<1x128x128xbf16> to vector<128x128xbf16>
    %192 = arith.truncf %189 : vector<16x128xf32> to vector<16x128xbf16>
    %cst_67 = arith.constant dense<0.000000e+00> : vector<16x128xf32>
    %193 = tpu.matmul %192, %191, %cst_67 {dimension_numbers = #tpu.dot_dimension_numbers<[1], [0], [0], [1], [0, 0, 1, 1], [], []>} : vector<16x128xbf16>, vector<128x128xbf16>, vector<16x128xf32> -> vector<16x128xf32>
    %c0_68 = arith.constant 0 : index
    %c0_69 = arith.constant 0 : index
    %c0_70 = arith.constant 0 : index
    %194 = vector.load %arg12[%c0_68, %c0_69, %c0_70] : memref<2x1x128xf32, #tpu.memory_space<vmem>>, vector<1x1x128xf32>
    %195 = vector.shape_cast %194 : vector<1x1x128xf32> to vector<1x128xf32>
    %196 = vector.broadcast %195 : vector<1x128xf32> to vector<16x128xf32>
    %197 = arith.addf %193, %196 : vector<16x128xf32>
    %198 = arith.mulf %197, %197 : vector<16x128xf32>
    %199 = arith.mulf %197, %198 : vector<16x128xf32>
    %cst_71 = arith.constant 4.471500e-02 : f32
    %200 = vector.broadcast %cst_71 : f32 to vector<16x128xf32>
    %201 = arith.mulf %200, %199 : vector<16x128xf32>
    %202 = arith.addf %197, %201 : vector<16x128xf32>
    %cst_72 = arith.constant 0.797884583 : f32
    %203 = vector.broadcast %cst_72 : f32 to vector<16x128xf32>
    %204 = arith.mulf %203, %202 : vector<16x128xf32>
    %205 = math.tanh %204 : vector<16x128xf32>
    %cst_73 = arith.constant 1.000000e+00 : f32
    %206 = vector.broadcast %cst_73 : f32 to vector<16x128xf32>
    %207 = arith.addf %206, %205 : vector<16x128xf32>
    %cst_74 = arith.constant 5.000000e-01 : f32
    %208 = vector.broadcast %cst_74 : f32 to vector<16x128xf32>
    %209 = arith.mulf %208, %207 : vector<16x128xf32>
    %210 = arith.mulf %197, %209 : vector<16x128xf32>
    %c0_75 = arith.constant 0 : index
    %c0_76 = arith.constant 0 : index
    %c0_77 = arith.constant 0 : index
    %211 = vector.load %arg13[%c0_75, %c0_76, %c0_77] : memref<2x128x128xbf16, #tpu.memory_space<vmem>>, vector<1x128x128xbf16>
    %212 = vector.shape_cast %211 : vector<1x128x128xbf16> to vector<128x128xbf16>
    %213 = arith.truncf %210 : vector<16x128xf32> to vector<16x128xbf16>
    %cst_78 = arith.constant dense<0.000000e+00> : vector<16x128xf32>
    %214 = tpu.matmul %213, %212, %cst_78 {dimension_numbers = #tpu.dot_dimension_numbers<[1], [0], [0], [1], [0, 0, 1, 1], [], []>} : vector<16x128xbf16>, vector<128x128xbf16>, vector<16x128xf32> -> vector<16x128xf32>
    %c0_79 = arith.constant 0 : index
    %c0_80 = arith.constant 0 : index
    %c0_81 = arith.constant 0 : index
    %215 = vector.load %arg14[%c0_79, %c0_80, %c0_81] : memref<2x1x128xf32, #tpu.memory_space<vmem>>, vector<1x1x128xf32>
    %216 = vector.shape_cast %215 : vector<1x1x128xf32> to vector<1x128xf32>
    %217 = vector.broadcast %216 : vector<1x128xf32> to vector<16x128xf32>
    %218 = arith.addf %214, %217 : vector<16x128xf32>
    %219 = arith.addf %218, %189 : vector<16x128xf32>
    %c0_82 = arith.constant 0 : index
    %c0_83 = arith.constant 0 : index
    %c0_84 = arith.constant 0 : index
    %220 = vector.load %arg15[%c0_82, %c0_83, %c0_84] : memref<2x1x128xf32, #tpu.memory_space<vmem>>, vector<1x1x128xf32>
    %221 = vector.shape_cast %220 : vector<1x1x128xf32> to vector<1x128xf32>
    %c0_85 = arith.constant 0 : index
    %c0_86 = arith.constant 0 : index
    %c0_87 = arith.constant 0 : index
    %222 = vector.load %arg16[%c0_85, %c0_86, %c0_87] : memref<2x1x128xf32, #tpu.memory_space<vmem>>, vector<1x1x128xf32>
    %223 = vector.shape_cast %222 : vector<1x1x128xf32> to vector<1x128xf32>
    %cst_88 = arith.constant dense<0.000000e+00> : vector<16xf32>
    %224 = vector.multi_reduction <add>, %219, %cst_88 [1] : vector<16x128xf32> to vector<16xf32>
    %225 = vector.shape_cast %224 : vector<16xf32> to vector<16x1xf32>
    %cst_89 = arith.constant 1.562500e-02 : f32
    %226 = vector.broadcast %cst_89 : f32 to vector<16x1xf32>
    %227 = arith.mulf %225, %226 : vector<16x1xf32>
    %228 = arith.mulf %219, %219 : vector<16x128xf32>
    %cst_90 = arith.constant dense<0.000000e+00> : vector<16xf32>
    %229 = vector.multi_reduction <add>, %228, %cst_90 [1] : vector<16x128xf32> to vector<16xf32>
    %230 = vector.shape_cast %229 : vector<16xf32> to vector<16x1xf32>
    %cst_91 = arith.constant 1.562500e-02 : f32
    %231 = vector.broadcast %cst_91 : f32 to vector<16x1xf32>
    %232 = arith.mulf %230, %231 : vector<16x1xf32>
    %233 = arith.mulf %227, %227 : vector<16x1xf32>
    %234 = arith.subf %232, %233 : vector<16x1xf32>
    %235 = vector.broadcast %227 : vector<16x1xf32> to vector<16x128xf32>
    %236 = arith.subf %219, %235 : vector<16x128xf32>
    %cst_92 = arith.constant 9.99999996E-13 : f32
    %237 = vector.broadcast %cst_92 : f32 to vector<16x1xf32>
    %238 = arith.addf %234, %237 : vector<16x1xf32>
    %239 = math.rsqrt %238 : vector<16x1xf32>
    %240 = vector.broadcast %239 : vector<16x1xf32> to vector<16x128xf32>
    %241 = arith.mulf %236, %240 : vector<16x128xf32>
    %242 = vector.broadcast %221 : vector<1x128xf32> to vector<16x128xf32>
    %243 = arith.mulf %241, %242 : vector<16x128xf32>
    %244 = vector.broadcast %223 : vector<1x128xf32> to vector<16x128xf32>
    %245 = arith.addf %243, %244 : vector<16x128xf32>
    %c1 = arith.constant 1 : index
    %c0_93 = arith.constant 0 : index
    %c0_94 = arith.constant 0 : index
    %246 = vector.load %arg5[%c1, %c0_93, %c0_94] : memref<2x128x384xbf16, #tpu.memory_space<vmem>>, vector<1x128x384xbf16>
    %247 = vector.shape_cast %246 : vector<1x128x384xbf16> to vector<128x384xbf16>
    %c1_95 = arith.constant 1 : index
    %c0_96 = arith.constant 0 : index
    %c0_97 = arith.constant 0 : index
    %248 = vector.load %arg7[%c1_95, %c0_96, %c0_97] : memref<2x128x128xbf16, #tpu.memory_space<vmem>>, vector<1x128x128xbf16>
    %249 = vector.shape_cast %248 : vector<1x128x128xbf16> to vector<128x128xbf16>
    %250 = arith.truncf %245 : vector<16x128xf32> to vector<16x128xbf16>
    %cst_98 = arith.constant dense<0.000000e+00> : vector<16x384xf32>
    %251 = tpu.matmul %250, %247, %cst_98 {dimension_numbers = #tpu.dot_dimension_numbers<[1], [0], [0], [1], [0, 0, 1, 1], [], []>} : vector<16x128xbf16>, vector<128x384xbf16>, vector<16x384xf32> -> vector<16x384xf32>
    %c1_99 = arith.constant 1 : index
    %c0_100 = arith.constant 0 : index
    %c0_101 = arith.constant 0 : index
    %252 = vector.load %arg6[%c1_99, %c0_100, %c0_101] : memref<2x1x384xf32, #tpu.memory_space<vmem>>, vector<1x1x384xf32>
    %253 = vector.shape_cast %252 : vector<1x1x384xf32> to vector<1x384xf32>
    %254 = vector.broadcast %253 : vector<1x384xf32> to vector<16x384xf32>
    %255 = arith.addf %251, %254 : vector<16x384xf32>
    %cst_102 = arith.constant 0.000000e+00 : f32
    %256 = vector.broadcast %cst_102 : f32 to vector<16x128xf32>
    %257 = vector.extract_strided_slice %255 {offsets = [0, 0], sizes = [16, 32], strides = [1, 1]} : vector<16x384xf32> to vector<16x32xf32>
    %258 = vector.extract_strided_slice %255 {offsets = [0, 128], sizes = [16, 32], strides = [1, 1]} : vector<16x384xf32> to vector<16x32xf32>
    %259 = vector.extract_strided_slice %255 {offsets = [0, 256], sizes = [16, 32], strides = [1, 1]} : vector<16x384xf32> to vector<16x32xf32>
    %260 = tpu.transpose %258, [1, 0] : vector<16x32xf32> -> vector<32x16xf32>
    %cst_103 = arith.constant dense<0.000000e+00> : vector<16x16xf32>
    %261 = tpu.matmul %257, %260, %cst_103 {dimension_numbers = #tpu.dot_dimension_numbers<[1], [0], [0], [1], [0, 0, 1, 1], [], []>} : vector<16x32xf32>, vector<32x16xf32>, vector<16x16xf32> -> vector<16x16xf32>
    %262 = arith.addf %261, %63 : vector<16x16xf32>
    %cst_104 = arith.constant dense<0xFF800000> : vector<16xf32>
    %263 = vector.multi_reduction <maximumf>, %262, %cst_104 [1] : vector<16x16xf32> to vector<16xf32>
    %264 = vector.shape_cast %263 : vector<16xf32> to vector<16x1xf32>
    %265 = vector.broadcast %264 : vector<16x1xf32> to vector<16x16xf32>
    %266 = arith.subf %262, %265 : vector<16x16xf32>
    %267 = math.exp %266 : vector<16x16xf32>
    %cst_105 = arith.constant dense<0.000000e+00> : vector<16xf32>
    %268 = vector.multi_reduction <add>, %267, %cst_105 [1] : vector<16x16xf32> to vector<16xf32>
    %269 = vector.shape_cast %268 : vector<16xf32> to vector<16x1xf32>
    %270 = tpu.reciprocal %269 {approx = true} : vector<16x1xf32> -> vector<16x1xf32>
    %271 = vector.broadcast %270 : vector<16x1xf32> to vector<16x16xf32>
    %272 = arith.mulf %267, %271 : vector<16x16xf32>
    %cst_106 = arith.constant dense<0.000000e+00> : vector<16x32xf32>
    %273 = tpu.matmul %272, %259, %cst_106 {dimension_numbers = #tpu.dot_dimension_numbers<[1], [0], [0], [1], [0, 0, 1, 1], [], []>} : vector<16x16xf32>, vector<16x32xf32>, vector<16x32xf32> -> vector<16x32xf32>
    %274 = vector.extract_strided_slice %249 {offsets = [0, 0], sizes = [32, 128], strides = [1, 1]} : vector<128x128xbf16> to vector<32x128xbf16>
    %275 = arith.truncf %273 : vector<16x32xf32> to vector<16x32xbf16>
    %cst_107 = arith.constant dense<0.000000e+00> : vector<16x128xf32>
    %276 = tpu.matmul %275, %274, %cst_107 {dimension_numbers = #tpu.dot_dimension_numbers<[1], [0], [0], [1], [0, 0, 1, 1], [], []>} : vector<16x32xbf16>, vector<32x128xbf16>, vector<16x128xf32> -> vector<16x128xf32>
    %277 = arith.addf %256, %276 : vector<16x128xf32>
    %278 = vector.extract_strided_slice %255 {offsets = [0, 32], sizes = [16, 32], strides = [1, 1]} : vector<16x384xf32> to vector<16x32xf32>
    %279 = vector.extract_strided_slice %255 {offsets = [0, 160], sizes = [16, 32], strides = [1, 1]} : vector<16x384xf32> to vector<16x32xf32>
    %280 = vector.extract_strided_slice %255 {offsets = [0, 288], sizes = [16, 32], strides = [1, 1]} : vector<16x384xf32> to vector<16x32xf32>
    %281 = tpu.transpose %279, [1, 0] : vector<16x32xf32> -> vector<32x16xf32>
    %cst_108 = arith.constant dense<0.000000e+00> : vector<16x16xf32>
    %282 = tpu.matmul %278, %281, %cst_108 {dimension_numbers = #tpu.dot_dimension_numbers<[1], [0], [0], [1], [0, 0, 1, 1], [], []>} : vector<16x32xf32>, vector<32x16xf32>, vector<16x16xf32> -> vector<16x16xf32>
    %283 = arith.addf %282, %63 : vector<16x16xf32>
    %cst_109 = arith.constant dense<0xFF800000> : vector<16xf32>
    %284 = vector.multi_reduction <maximumf>, %283, %cst_109 [1] : vector<16x16xf32> to vector<16xf32>
    %285 = vector.shape_cast %284 : vector<16xf32> to vector<16x1xf32>
    %286 = vector.broadcast %285 : vector<16x1xf32> to vector<16x16xf32>
    %287 = arith.subf %283, %286 : vector<16x16xf32>
    %288 = math.exp %287 : vector<16x16xf32>
    %cst_110 = arith.constant dense<0.000000e+00> : vector<16xf32>
    %289 = vector.multi_reduction <add>, %288, %cst_110 [1] : vector<16x16xf32> to vector<16xf32>
    %290 = vector.shape_cast %289 : vector<16xf32> to vector<16x1xf32>
    %291 = tpu.reciprocal %290 {approx = true} : vector<16x1xf32> -> vector<16x1xf32>
    %292 = vector.broadcast %291 : vector<16x1xf32> to vector<16x16xf32>
    %293 = arith.mulf %288, %292 : vector<16x16xf32>
    %cst_111 = arith.constant dense<0.000000e+00> : vector<16x32xf32>
    %294 = tpu.matmul %293, %280, %cst_111 {dimension_numbers = #tpu.dot_dimension_numbers<[1], [0], [0], [1], [0, 0, 1, 1], [], []>} : vector<16x16xf32>, vector<16x32xf32>, vector<16x32xf32> -> vector<16x32xf32>
    %295 = vector.extract_strided_slice %249 {offsets = [32, 0], sizes = [32, 128], strides = [1, 1]} : vector<128x128xbf16> to vector<32x128xbf16>
    %296 = arith.truncf %294 : vector<16x32xf32> to vector<16x32xbf16>
    %cst_112 = arith.constant dense<0.000000e+00> : vector<16x128xf32>
    %297 = tpu.matmul %296, %295, %cst_112 {dimension_numbers = #tpu.dot_dimension_numbers<[1], [0], [0], [1], [0, 0, 1, 1], [], []>} : vector<16x32xbf16>, vector<32x128xbf16>, vector<16x128xf32> -> vector<16x128xf32>
    %298 = arith.addf %277, %297 : vector<16x128xf32>
    %299 = vector.extract_strided_slice %255 {offsets = [0, 64], sizes = [16, 32], strides = [1, 1]} : vector<16x384xf32> to vector<16x32xf32>
    %300 = vector.extract_strided_slice %255 {offsets = [0, 192], sizes = [16, 32], strides = [1, 1]} : vector<16x384xf32> to vector<16x32xf32>
    %301 = vector.extract_strided_slice %255 {offsets = [0, 320], sizes = [16, 32], strides = [1, 1]} : vector<16x384xf32> to vector<16x32xf32>
    %302 = tpu.transpose %300, [1, 0] : vector<16x32xf32> -> vector<32x16xf32>
    %cst_113 = arith.constant dense<0.000000e+00> : vector<16x16xf32>
    %303 = tpu.matmul %299, %302, %cst_113 {dimension_numbers = #tpu.dot_dimension_numbers<[1], [0], [0], [1], [0, 0, 1, 1], [], []>} : vector<16x32xf32>, vector<32x16xf32>, vector<16x16xf32> -> vector<16x16xf32>
    %304 = arith.addf %303, %63 : vector<16x16xf32>
    %cst_114 = arith.constant dense<0xFF800000> : vector<16xf32>
    %305 = vector.multi_reduction <maximumf>, %304, %cst_114 [1] : vector<16x16xf32> to vector<16xf32>
    %306 = vector.shape_cast %305 : vector<16xf32> to vector<16x1xf32>
    %307 = vector.broadcast %306 : vector<16x1xf32> to vector<16x16xf32>
    %308 = arith.subf %304, %307 : vector<16x16xf32>
    %309 = math.exp %308 : vector<16x16xf32>
    %cst_115 = arith.constant dense<0.000000e+00> : vector<16xf32>
    %310 = vector.multi_reduction <add>, %309, %cst_115 [1] : vector<16x16xf32> to vector<16xf32>
    %311 = vector.shape_cast %310 : vector<16xf32> to vector<16x1xf32>
    %312 = tpu.reciprocal %311 {approx = true} : vector<16x1xf32> -> vector<16x1xf32>
    %313 = vector.broadcast %312 : vector<16x1xf32> to vector<16x16xf32>
    %314 = arith.mulf %309, %313 : vector<16x16xf32>
    %cst_116 = arith.constant dense<0.000000e+00> : vector<16x32xf32>
    %315 = tpu.matmul %314, %301, %cst_116 {dimension_numbers = #tpu.dot_dimension_numbers<[1], [0], [0], [1], [0, 0, 1, 1], [], []>} : vector<16x16xf32>, vector<16x32xf32>, vector<16x32xf32> -> vector<16x32xf32>
    %316 = vector.extract_strided_slice %249 {offsets = [64, 0], sizes = [32, 128], strides = [1, 1]} : vector<128x128xbf16> to vector<32x128xbf16>
    %317 = arith.truncf %315 : vector<16x32xf32> to vector<16x32xbf16>
    %cst_117 = arith.constant dense<0.000000e+00> : vector<16x128xf32>
    %318 = tpu.matmul %317, %316, %cst_117 {dimension_numbers = #tpu.dot_dimension_numbers<[1], [0], [0], [1], [0, 0, 1, 1], [], []>} : vector<16x32xbf16>, vector<32x128xbf16>, vector<16x128xf32> -> vector<16x128xf32>
    %319 = arith.addf %298, %318 : vector<16x128xf32>
    %320 = vector.extract_strided_slice %255 {offsets = [0, 96], sizes = [16, 32], strides = [1, 1]} : vector<16x384xf32> to vector<16x32xf32>
    %321 = vector.extract_strided_slice %255 {offsets = [0, 224], sizes = [16, 32], strides = [1, 1]} : vector<16x384xf32> to vector<16x32xf32>
    %322 = vector.extract_strided_slice %255 {offsets = [0, 352], sizes = [16, 32], strides = [1, 1]} : vector<16x384xf32> to vector<16x32xf32>
    %323 = tpu.transpose %321, [1, 0] : vector<16x32xf32> -> vector<32x16xf32>
    %cst_118 = arith.constant dense<0.000000e+00> : vector<16x16xf32>
    %324 = tpu.matmul %320, %323, %cst_118 {dimension_numbers = #tpu.dot_dimension_numbers<[1], [0], [0], [1], [0, 0, 1, 1], [], []>} : vector<16x32xf32>, vector<32x16xf32>, vector<16x16xf32> -> vector<16x16xf32>
    %325 = arith.addf %324, %63 : vector<16x16xf32>
    %cst_119 = arith.constant dense<0xFF800000> : vector<16xf32>
    %326 = vector.multi_reduction <maximumf>, %325, %cst_119 [1] : vector<16x16xf32> to vector<16xf32>
    %327 = vector.shape_cast %326 : vector<16xf32> to vector<16x1xf32>
    %328 = vector.broadcast %327 : vector<16x1xf32> to vector<16x16xf32>
    %329 = arith.subf %325, %328 : vector<16x16xf32>
    %330 = math.exp %329 : vector<16x16xf32>
    %cst_120 = arith.constant dense<0.000000e+00> : vector<16xf32>
    %331 = vector.multi_reduction <add>, %330, %cst_120 [1] : vector<16x16xf32> to vector<16xf32>
    %332 = vector.shape_cast %331 : vector<16xf32> to vector<16x1xf32>
    %333 = tpu.reciprocal %332 {approx = true} : vector<16x1xf32> -> vector<16x1xf32>
    %334 = vector.broadcast %333 : vector<16x1xf32> to vector<16x16xf32>
    %335 = arith.mulf %330, %334 : vector<16x16xf32>
    %cst_121 = arith.constant dense<0.000000e+00> : vector<16x32xf32>
    %336 = tpu.matmul %335, %322, %cst_121 {dimension_numbers = #tpu.dot_dimension_numbers<[1], [0], [0], [1], [0, 0, 1, 1], [], []>} : vector<16x16xf32>, vector<16x32xf32>, vector<16x32xf32> -> vector<16x32xf32>
    %337 = vector.extract_strided_slice %249 {offsets = [96, 0], sizes = [32, 128], strides = [1, 1]} : vector<128x128xbf16> to vector<32x128xbf16>
    %338 = arith.truncf %336 : vector<16x32xf32> to vector<16x32xbf16>
    %cst_122 = arith.constant dense<0.000000e+00> : vector<16x128xf32>
    %339 = tpu.matmul %338, %337, %cst_122 {dimension_numbers = #tpu.dot_dimension_numbers<[1], [0], [0], [1], [0, 0, 1, 1], [], []>} : vector<16x32xbf16>, vector<32x128xbf16>, vector<16x128xf32> -> vector<16x128xf32>
    %340 = arith.addf %319, %339 : vector<16x128xf32>
    %c1_123 = arith.constant 1 : index
    %c0_124 = arith.constant 0 : index
    %c0_125 = arith.constant 0 : index
    %341 = vector.load %arg8[%c1_123, %c0_124, %c0_125] : memref<2x1x128xf32, #tpu.memory_space<vmem>>, vector<1x1x128xf32>
    %342 = vector.shape_cast %341 : vector<1x1x128xf32> to vector<1x128xf32>
    %343 = vector.broadcast %342 : vector<1x128xf32> to vector<16x128xf32>
    %344 = arith.addf %340, %343 : vector<16x128xf32>
    %345 = arith.addf %344, %245 : vector<16x128xf32>
    %c1_126 = arith.constant 1 : index
    %c0_127 = arith.constant 0 : index
    %c0_128 = arith.constant 0 : index
    %346 = vector.load %arg9[%c1_126, %c0_127, %c0_128] : memref<2x1x128xf32, #tpu.memory_space<vmem>>, vector<1x1x128xf32>
    %347 = vector.shape_cast %346 : vector<1x1x128xf32> to vector<1x128xf32>
    %c1_129 = arith.constant 1 : index
    %c0_130 = arith.constant 0 : index
    %c0_131 = arith.constant 0 : index
    %348 = vector.load %arg10[%c1_129, %c0_130, %c0_131] : memref<2x1x128xf32, #tpu.memory_space<vmem>>, vector<1x1x128xf32>
    %349 = vector.shape_cast %348 : vector<1x1x128xf32> to vector<1x128xf32>
    %cst_132 = arith.constant dense<0.000000e+00> : vector<16xf32>
    %350 = vector.multi_reduction <add>, %345, %cst_132 [1] : vector<16x128xf32> to vector<16xf32>
    %351 = vector.shape_cast %350 : vector<16xf32> to vector<16x1xf32>
    %cst_133 = arith.constant 1.562500e-02 : f32
    %352 = vector.broadcast %cst_133 : f32 to vector<16x1xf32>
    %353 = arith.mulf %351, %352 : vector<16x1xf32>
    %354 = arith.mulf %345, %345 : vector<16x128xf32>
    %cst_134 = arith.constant dense<0.000000e+00> : vector<16xf32>
    %355 = vector.multi_reduction <add>, %354, %cst_134 [1] : vector<16x128xf32> to vector<16xf32>
    %356 = vector.shape_cast %355 : vector<16xf32> to vector<16x1xf32>
    %cst_135 = arith.constant 1.562500e-02 : f32
    %357 = vector.broadcast %cst_135 : f32 to vector<16x1xf32>
    %358 = arith.mulf %356, %357 : vector<16x1xf32>
    %359 = arith.mulf %353, %353 : vector<16x1xf32>
    %360 = arith.subf %358, %359 : vector<16x1xf32>
    %361 = vector.broadcast %353 : vector<16x1xf32> to vector<16x128xf32>
    %362 = arith.subf %345, %361 : vector<16x128xf32>
    %cst_136 = arith.constant 9.99999996E-13 : f32
    %363 = vector.broadcast %cst_136 : f32 to vector<16x1xf32>
    %364 = arith.addf %360, %363 : vector<16x1xf32>
    %365 = math.rsqrt %364 : vector<16x1xf32>
    %366 = vector.broadcast %365 : vector<16x1xf32> to vector<16x128xf32>
    %367 = arith.mulf %362, %366 : vector<16x128xf32>
    %368 = vector.broadcast %347 : vector<1x128xf32> to vector<16x128xf32>
    %369 = arith.mulf %367, %368 : vector<16x128xf32>
    %370 = vector.broadcast %349 : vector<1x128xf32> to vector<16x128xf32>
    %371 = arith.addf %369, %370 : vector<16x128xf32>
    %c1_137 = arith.constant 1 : index
    %c0_138 = arith.constant 0 : index
    %c0_139 = arith.constant 0 : index
    %372 = vector.load %arg11[%c1_137, %c0_138, %c0_139] : memref<2x128x128xbf16, #tpu.memory_space<vmem>>, vector<1x128x128xbf16>
    %373 = vector.shape_cast %372 : vector<1x128x128xbf16> to vector<128x128xbf16>
    %374 = arith.truncf %371 : vector<16x128xf32> to vector<16x128xbf16>
    %cst_140 = arith.constant dense<0.000000e+00> : vector<16x128xf32>
    %375 = tpu.matmul %374, %373, %cst_140 {dimension_numbers = #tpu.dot_dimension_numbers<[1], [0], [0], [1], [0, 0, 1, 1], [], []>} : vector<16x128xbf16>, vector<128x128xbf16>, vector<16x128xf32> -> vector<16x128xf32>
    %c1_141 = arith.constant 1 : index
    %c0_142 = arith.constant 0 : index
    %c0_143 = arith.constant 0 : index
    %376 = vector.load %arg12[%c1_141, %c0_142, %c0_143] : memref<2x1x128xf32, #tpu.memory_space<vmem>>, vector<1x1x128xf32>
    %377 = vector.shape_cast %376 : vector<1x1x128xf32> to vector<1x128xf32>
    %378 = vector.broadcast %377 : vector<1x128xf32> to vector<16x128xf32>
    %379 = arith.addf %375, %378 : vector<16x128xf32>
    %380 = arith.mulf %379, %379 : vector<16x128xf32>
    %381 = arith.mulf %379, %380 : vector<16x128xf32>
    %cst_144 = arith.constant 4.471500e-02 : f32
    %382 = vector.broadcast %cst_144 : f32 to vector<16x128xf32>
    %383 = arith.mulf %382, %381 : vector<16x128xf32>
    %384 = arith.addf %379, %383 : vector<16x128xf32>
    %cst_145 = arith.constant 0.797884583 : f32
    %385 = vector.broadcast %cst_145 : f32 to vector<16x128xf32>
    %386 = arith.mulf %385, %384 : vector<16x128xf32>
    %387 = math.tanh %386 : vector<16x128xf32>
    %cst_146 = arith.constant 1.000000e+00 : f32
    %388 = vector.broadcast %cst_146 : f32 to vector<16x128xf32>
    %389 = arith.addf %388, %387 : vector<16x128xf32>
    %cst_147 = arith.constant 5.000000e-01 : f32
    %390 = vector.broadcast %cst_147 : f32 to vector<16x128xf32>
    %391 = arith.mulf %390, %389 : vector<16x128xf32>
    %392 = arith.mulf %379, %391 : vector<16x128xf32>
    %c1_148 = arith.constant 1 : index
    %c0_149 = arith.constant 0 : index
    %c0_150 = arith.constant 0 : index
    %393 = vector.load %arg13[%c1_148, %c0_149, %c0_150] : memref<2x128x128xbf16, #tpu.memory_space<vmem>>, vector<1x128x128xbf16>
    %394 = vector.shape_cast %393 : vector<1x128x128xbf16> to vector<128x128xbf16>
    %395 = arith.truncf %392 : vector<16x128xf32> to vector<16x128xbf16>
    %cst_151 = arith.constant dense<0.000000e+00> : vector<16x128xf32>
    %396 = tpu.matmul %395, %394, %cst_151 {dimension_numbers = #tpu.dot_dimension_numbers<[1], [0], [0], [1], [0, 0, 1, 1], [], []>} : vector<16x128xbf16>, vector<128x128xbf16>, vector<16x128xf32> -> vector<16x128xf32>
    %c1_152 = arith.constant 1 : index
    %c0_153 = arith.constant 0 : index
    %c0_154 = arith.constant 0 : index
    %397 = vector.load %arg14[%c1_152, %c0_153, %c0_154] : memref<2x1x128xf32, #tpu.memory_space<vmem>>, vector<1x1x128xf32>
    %398 = vector.shape_cast %397 : vector<1x1x128xf32> to vector<1x128xf32>
    %399 = vector.broadcast %398 : vector<1x128xf32> to vector<16x128xf32>
    %400 = arith.addf %396, %399 : vector<16x128xf32>
    %401 = arith.addf %400, %371 : vector<16x128xf32>
    %c1_155 = arith.constant 1 : index
    %c0_156 = arith.constant 0 : index
    %c0_157 = arith.constant 0 : index
    %402 = vector.load %arg15[%c1_155, %c0_156, %c0_157] : memref<2x1x128xf32, #tpu.memory_space<vmem>>, vector<1x1x128xf32>
    %403 = vector.shape_cast %402 : vector<1x1x128xf32> to vector<1x128xf32>
    %c1_158 = arith.constant 1 : index
    %c0_159 = arith.constant 0 : index
    %c0_160 = arith.constant 0 : index
    %404 = vector.load %arg16[%c1_158, %c0_159, %c0_160] : memref<2x1x128xf32, #tpu.memory_space<vmem>>, vector<1x1x128xf32>
    %405 = vector.shape_cast %404 : vector<1x1x128xf32> to vector<1x128xf32>
    %cst_161 = arith.constant dense<0.000000e+00> : vector<16xf32>
    %406 = vector.multi_reduction <add>, %401, %cst_161 [1] : vector<16x128xf32> to vector<16xf32>
    %407 = vector.shape_cast %406 : vector<16xf32> to vector<16x1xf32>
    %cst_162 = arith.constant 1.562500e-02 : f32
    %408 = vector.broadcast %cst_162 : f32 to vector<16x1xf32>
    %409 = arith.mulf %407, %408 : vector<16x1xf32>
    %410 = arith.mulf %401, %401 : vector<16x128xf32>
    %cst_163 = arith.constant dense<0.000000e+00> : vector<16xf32>
    %411 = vector.multi_reduction <add>, %410, %cst_163 [1] : vector<16x128xf32> to vector<16xf32>
    %412 = vector.shape_cast %411 : vector<16xf32> to vector<16x1xf32>
    %cst_164 = arith.constant 1.562500e-02 : f32
    %413 = vector.broadcast %cst_164 : f32 to vector<16x1xf32>
    %414 = arith.mulf %412, %413 : vector<16x1xf32>
    %415 = arith.mulf %409, %409 : vector<16x1xf32>
    %416 = arith.subf %414, %415 : vector<16x1xf32>
    %417 = vector.broadcast %409 : vector<16x1xf32> to vector<16x128xf32>
    %418 = arith.subf %401, %417 : vector<16x128xf32>
    %cst_165 = arith.constant 9.99999996E-13 : f32
    %419 = vector.broadcast %cst_165 : f32 to vector<16x1xf32>
    %420 = arith.addf %416, %419 : vector<16x1xf32>
    %421 = math.rsqrt %420 : vector<16x1xf32>
    %422 = vector.broadcast %421 : vector<16x1xf32> to vector<16x128xf32>
    %423 = arith.mulf %418, %422 : vector<16x128xf32>
    %424 = vector.broadcast %403 : vector<1x128xf32> to vector<16x128xf32>
    %425 = arith.mulf %423, %424 : vector<16x128xf32>
    %426 = vector.broadcast %405 : vector<1x128xf32> to vector<16x128xf32>
    %427 = arith.addf %425, %426 : vector<16x128xf32>
    %428 = vector.extract_strided_slice %427 {offsets = [0, 0], sizes = [1, 128], strides = [1, 1]} : vector<16x128xf32> to vector<1x128xf32>
    %c0_166 = arith.constant 0 : index
    %c0_167 = arith.constant 0 : index
    %429 = vector.load %arg17[%c0_166, %c0_167] : memref<2x128xf32, #tpu.memory_space<vmem>>, vector<1x128xf32>
    tpu.vector_store %arg17[%c0_166, %c0_167], %428 {strides = array<i32>} : memref<2x128xf32, #tpu.memory_space<vmem>>, vector<1x128xf32>,
    %430 = vector.extract_strided_slice %427 {offsets = [8, 0], sizes = [1, 128], strides = [1, 1]} : vector<16x128xf32> to vector<1x128xf32>
    %c1_168 = arith.constant 1 : index
    %c0_169 = arith.constant 0 : index
    %431 = vector.load %arg17[%c1_168, %c0_169] : memref<2x128xf32, #tpu.memory_space<vmem>>, vector<1x128xf32>
    tpu.vector_store %arg17[%c1_168, %c0_169], %430 {strides = array<i32>} : memref<2x128xf32, #tpu.memory_space<vmem>>, vector<1x128xf32>,
    return
  }
  func.func @transform_0(%arg0: i32, %arg1: memref<2xi32, #tpu.memory_space<smem>>) -> (i32, i32) {
    %c0_i32 = arith.constant 0 : i32
    %c0_i32_0 = arith.constant 0 : i32
    return %arg0, %c0_i32 : i32, i32
  }
  func.func @transform_1(%arg0: i32, %arg1: memref<2xi32, #tpu.memory_space<smem>>) -> (i32, i32) {
    %c0_i32 = arith.constant 0 : i32
    %c0_i32_0 = arith.constant 0 : i32
    %c0_i32_1 = arith.constant 0 : i32
    return %c0_i32, %c0_i32_0 : i32, i32
  }
  func.func @transform_2(%arg0: i32, %arg1: memref<2xi32, #tpu.memory_space<smem>>) -> (i32, i32) {
    %c0_i32 = arith.constant 0 : i32
    %c0_i32_0 = arith.constant 0 : i32
    %c0_i32_1 = arith.constant 0 : i32
    return %c0_i32, %c0_i32_0 : i32, i32
  }
  func.func @transform_3(%arg0: i32, %arg1: memref<2xi32, #tpu.memory_space<smem>>) -> (i32, i32, i32) {
    %c0_i32 = arith.constant 0 : i32
    %c0_i32_0 = arith.constant 0 : i32
    %c0_i32_1 = arith.constant 0 : i32
    %c0_i32_2 = arith.constant 0 : i32
    return %c0_i32, %c0_i32_0, %c0_i32_1 : i32, i32, i32
  }
  func.func @transform_4(%arg0: i32, %arg1: memref<2xi32, #tpu.memory_space<smem>>) -> (i32, i32, i32) {
    %c0_i32 = arith.constant 0 : i32
    %c0_i32_0 = arith.constant 0 : i32
    %c0_i32_1 = arith.constant 0 : i32
    %c0_i32_2 = arith.constant 0 : i32
    return %c0_i32, %c0_i32_0, %c0_i32_1 : i32, i32, i32
  }
  func.func @transform_5(%arg0: i32, %arg1: memref<2xi32, #tpu.memory_space<smem>>) -> (i32, i32, i32) {
    %c0_i32 = arith.constant 0 : i32
    %c0_i32_0 = arith.constant 0 : i32
    %c0_i32_1 = arith.constant 0 : i32
    %c0_i32_2 = arith.constant 0 : i32
    return %c0_i32, %c0_i32_0, %c0_i32_1 : i32, i32, i32
  }
  func.func @transform_6(%arg0: i32, %arg1: memref<2xi32, #tpu.memory_space<smem>>) -> (i32, i32, i32) {
    %c0_i32 = arith.constant 0 : i32
    %c0_i32_0 = arith.constant 0 : i32
    %c0_i32_1 = arith.constant 0 : i32
    %c0_i32_2 = arith.constant 0 : i32
    return %c0_i32, %c0_i32_0, %c0_i32_1 : i32, i32, i32
  }
  func.func @transform_7(%arg0: i32, %arg1: memref<2xi32, #tpu.memory_space<smem>>) -> (i32, i32, i32) {
    %c0_i32 = arith.constant 0 : i32
    %c0_i32_0 = arith.constant 0 : i32
    %c0_i32_1 = arith.constant 0 : i32
    %c0_i32_2 = arith.constant 0 : i32
    return %c0_i32, %c0_i32_0, %c0_i32_1 : i32, i32, i32
  }
  func.func @transform_8(%arg0: i32, %arg1: memref<2xi32, #tpu.memory_space<smem>>) -> (i32, i32, i32) {
    %c0_i32 = arith.constant 0 : i32
    %c0_i32_0 = arith.constant 0 : i32
    %c0_i32_1 = arith.constant 0 : i32
    %c0_i32_2 = arith.constant 0 : i32
    return %c0_i32, %c0_i32_0, %c0_i32_1 : i32, i32, i32
  }
  func.func @transform_9(%arg0: i32, %arg1: memref<2xi32, #tpu.memory_space<smem>>) -> (i32, i32, i32) {
    %c0_i32 = arith.constant 0 : i32
    %c0_i32_0 = arith.constant 0 : i32
    %c0_i32_1 = arith.constant 0 : i32
    %c0_i32_2 = arith.constant 0 : i32
    return %c0_i32, %c0_i32_0, %c0_i32_1 : i32, i32, i32
  }
  func.func @transform_10(%arg0: i32, %arg1: memref<2xi32, #tpu.memory_space<smem>>) -> (i32, i32, i32) {
    %c0_i32 = arith.constant 0 : i32
    %c0_i32_0 = arith.constant 0 : i32
    %c0_i32_1 = arith.constant 0 : i32
    %c0_i32_2 = arith.constant 0 : i32
    return %c0_i32, %c0_i32_0, %c0_i32_1 : i32, i32, i32
  }
  func.func @transform_11(%arg0: i32, %arg1: memref<2xi32, #tpu.memory_space<smem>>) -> (i32, i32, i32) {
    %c0_i32 = arith.constant 0 : i32
    %c0_i32_0 = arith.constant 0 : i32
    %c0_i32_1 = arith.constant 0 : i32
    %c0_i32_2 = arith.constant 0 : i32
    return %c0_i32, %c0_i32_0, %c0_i32_1 : i32, i32, i32
  }
  func.func @transform_12(%arg0: i32, %arg1: memref<2xi32, #tpu.memory_space<smem>>) -> (i32, i32, i32) {
    %c0_i32 = arith.constant 0 : i32
    %c0_i32_0 = arith.constant 0 : i32
    %c0_i32_1 = arith.constant 0 : i32
    %c0_i32_2 = arith.constant 0 : i32
    return %c0_i32, %c0_i32_0, %c0_i32_1 : i32, i32, i32
  }
  func.func @transform_13(%arg0: i32, %arg1: memref<2xi32, #tpu.memory_space<smem>>) -> (i32, i32, i32) {
    %c0_i32 = arith.constant 0 : i32
    %c0_i32_0 = arith.constant 0 : i32
    %c0_i32_1 = arith.constant 0 : i32
    %c0_i32_2 = arith.constant 0 : i32
    return %c0_i32, %c0_i32_0, %c0_i32_1 : i32, i32, i32
  }
  func.func @transform_14(%arg0: i32, %arg1: memref<2xi32, #tpu.memory_space<smem>>) -> (i32, i32, i32) {
    %c0_i32 = arith.constant 0 : i32
    %c0_i32_0 = arith.constant 0 : i32
    %c0_i32_1 = arith.constant 0 : i32
    %c0_i32_2 = arith.constant 0 : i32
    return %c0_i32, %c0_i32_0, %c0_i32_1 : i32, i32, i32
  }
  func.func @transform_15(%arg0: i32, %arg1: memref<2xi32, #tpu.memory_space<smem>>) -> (i32, i32) {
    %c0_i32 = arith.constant 0 : i32
    %c0_i32_0 = arith.constant 0 : i32
    return %arg0, %c0_i32 : i32, i32
  }
}

</mosaic_0001>

<llo_original>
// kernel: distilbert_encoder.1
$region0: #{distilbert_encoder.1}
  #allocation0 [shape = 'u32[]', space=smem, size = 0x4, offset = 0x4, fixed_abs, tag = 'smem constant byte address 0x4 - core index']
  #allocation1 [shape = 'u32[72,128]{1,0:T(1,128)}', space=vmem, size = 0x9000, scoped, tag = 'internal scratch']
  #allocation2 [shape = 's32[1]{0}', space=sflag, size = 0x4, scoped, tag = 'scoped memory for distilbert_encoder.1']
  #allocation3 [shape = 'u8[512]{0}', space=smem, size = 0x200, scoped, tag = 'prefetched SMEM operand 0']
  %s0 = inlined_call_operand.vmem [shape: s32[2], index: 0, kind: input, shape index: {}]
  %s1 = inlined_call_operand.vmem [shape: f32[16,128], index: 1, kind: input, shape index: {}]
  %s2 = inlined_call_operand.vmem [shape: f32[1,128], index: 2, kind: input, shape index: {}]
  %s3 = inlined_call_operand.vmem [shape: f32[1,128], index: 3, kind: input, shape index: {}]
  %s4 = inlined_call_operand.hbm [shape: bf16[2,128,384], index: 4, kind: input, shape index: {}]
  %s5 = inlined_call_operand.vmem [shape: f32[2,1,384], index: 5, kind: input, shape index: {}]
  %s6 = inlined_call_operand.vmem [shape: bf16[2,128,128], index: 6, kind: input, shape index: {}]
  %s7 = inlined_call_operand.vmem [shape: f32[2,1,128], index: 7, kind: input, shape index: {}]
  %s8 = inlined_call_operand.vmem [shape: f32[2,1,128], index: 8, kind: input, shape index: {}]
  %s9 = inlined_call_operand.vmem [shape: f32[2,1,128], index: 9, kind: input, shape index: {}]
  %s10 = inlined_call_operand.hbm [shape: bf16[2,128,128], index: 10, kind: input, shape index: {}]
  %s11 = inlined_call_operand.vmem [shape: f32[2,1,128], index: 11, kind: input, shape index: {}]
  %s12 = inlined_call_operand.hbm [shape: bf16[2,128,128], index: 12, kind: input, shape index: {}]
  %s13 = inlined_call_operand.vmem [shape: f32[2,1,128], index: 13, kind: input, shape index: {}]
  %s14 = inlined_call_operand.vmem [shape: f32[2,1,128], index: 14, kind: input, shape index: {}]
  %s15 = inlined_call_operand.vmem [shape: f32[2,1,128], index: 15, kind: input, shape index: {}]
  %s16 = inlined_call_operand.hbm [shape: f32[2,128], index: 16, kind: output, shape index: {}]
  %s17 = sld [smem:[#allocation0]]
  $region82: #{distilbert_encoder.1} parent=0
    _
  %s19 = ssub.s32 1, %s17
  %s20 = scalar_select 0, %s19, %s17
  %s22 = sshll.u32 %s0, 4
  %s23 = int_to_ptr.vmem [resolvable:$true] %s22
  %25 = dma.vmem_to_smem %s23, 16, [#allocation3], [#allocation2]
  %27 = dma.done [#allocation2], 16
  %28 = sfence
  $region1: #{distilbert_encoder.1} parent=0
    #allocation4 [shape = 'u8[196608]{0}', space=vmem, size = 0x30000, scoped, tag = 'input window, operand 4, single buffered']
    #allocation5 [shape = 's32[1]{0}', space=sflag, size = 0x4, scoped, tag = 'scoped memory for distilbert_encoder.1']
    #allocation6 [shape = 's32[1]{0}', space=sflag, size = 0x4, scoped, tag = 'scoped memory for distilbert_encoder.1']
    #allocation7 [shape = 'u8[65536]{0}', space=vmem, size = 0x10000, scoped, tag = 'input window, operand 10, single buffered']
    #allocation8 [shape = 's32[1]{0}', space=sflag, size = 0x4, scoped, tag = 'scoped memory for distilbert_encoder.1']
    #allocation9 [shape = 'u8[65536]{0}', space=vmem, size = 0x10000, scoped, tag = 'input window, operand 12, single buffered']
    #allocation10 [shape = 'u8[1024]{0}', space=vmem, size = 0x400, scoped, tag = 'output window, operand 0, single buffered']
    %29 = vsyncpa [#allocation5], 0
    %30 = vsyncpa [#allocation8], 0
    %31 = vsyncpa [#allocation6], 0
    // Predicated region
    $region2: #{distilbert_encoder.1} parent=1 // pred_check
      _
    $region3: #{distilbert_encoder.1} parent=1 // pred_check_branch
      %33 = sbr.rel (0) target = $region5
    $region4: #{distilbert_encoder.1} parent=1 // pred_region
      _
    $region5: #{distilbert_encoder.1} parent=1 // pred_fallthru
      _
    // Predicated region
    $region6: #{distilbert_encoder.1} parent=1 // pred_check
      _
    $region7: #{distilbert_encoder.1} parent=1 // pred_check_branch
      %35 = sbr.rel (0) target = $region9
    $region8: #{distilbert_encoder.1} parent=1 // pred_region
      _
    $region9: #{distilbert_encoder.1} parent=1 // pred_fallthru
      _
    // Predicated region
    $region10: #{distilbert_encoder.1} parent=1 // pred_check
      _
    $region11: #{distilbert_encoder.1} parent=1 // pred_check_branch
      %37 = sbr.rel (0) target = $region13
    $region12: #{distilbert_encoder.1} parent=1 // pred_region
      _
    $region13: #{distilbert_encoder.1} parent=1 // pred_fallthru
      _
    // Predicated region
    $region14: #{distilbert_encoder.1} parent=1 // pred_check
      _
    $region15: #{distilbert_encoder.1} parent=1 // pred_check_branch
      %39 = sbr.rel (0) target = $region17
    $region16: #{distilbert_encoder.1} parent=1 // pred_region
      %41 = vsyncadd [#allocation5], 0
      %s42 = sshll.u32 %s4, 4
      %s43 = int_to_ptr.hbm [resolvable:$true] %s42
      %s44 = sshll.u32 [#allocation4], 4
      %s45 = int_to_ptr.vmem [resolvable:$true] %s44
      %50 = dma.hbm_to_vmem [thread:$0]  %s43, 6144, %s45, [#allocation5], 192, 192, 12
    $region17: #{distilbert_encoder.1} parent=1 // pred_fallthru
      _
    // Predicated region
    $region18: #{distilbert_encoder.1} parent=1 // pred_check
      _
    $region19: #{distilbert_encoder.1} parent=1 // pred_check_branch
      %52 = sbr.rel (0) target = $region21
    $region20: #{distilbert_encoder.1} parent=1 // pred_region
      _
    $region21: #{distilbert_encoder.1} parent=1 // pred_fallthru
      _
    // Predicated region
    $region22: #{distilbert_encoder.1} parent=1 // pred_check
      _
    $region23: #{distilbert_encoder.1} parent=1 // pred_check_branch
      %54 = sbr.rel (0) target = $region25
    $region24: #{distilbert_encoder.1} parent=1 // pred_region
      _
    $region25: #{distilbert_encoder.1} parent=1 // pred_fallthru
      _
    // Predicated region
    $region26: #{distilbert_encoder.1} parent=1 // pred_check
      _
    $region27: #{distilbert_encoder.1} parent=1 // pred_check_branch
      %56 = sbr.rel (0) target = $region29
    $region28: #{distilbert_encoder.1} parent=1 // pred_region
      _
    $region29: #{distilbert_encoder.1} parent=1 // pred_fallthru
      _
    // Predicated region
    $region30: #{distilbert_encoder.1} parent=1 // pred_check
      _
    $region31: #{distilbert_encoder.1} parent=1 // pred_check_branch
      %58 = sbr.rel (0) target = $region33
    $region32: #{distilbert_encoder.1} parent=1 // pred_region
      _
    $region33: #{distilbert_encoder.1} parent=1 // pred_fallthru
      _
    // Predicated region
    $region34: #{distilbert_encoder.1} parent=1 // pred_check
      _
    $region35: #{distilbert_encoder.1} parent=1 // pred_check_branch
      %60 = sbr.rel (0) target = $region37
    $region36: #{distilbert_encoder.1} parent=1 // pred_region
      _
    $region37: #{distilbert_encoder.1} parent=1 // pred_fallthru
      _
    // Predicated region
    $region38: #{distilbert_encoder.1} parent=1 // pred_check
      _
    $region39: #{distilbert_encoder.1} parent=1 // pred_check_branch
      %62 = sbr.rel (0) target = $region41
    $region40: #{distilbert_encoder.1} parent=1 // pred_region
      %64 = vsyncadd [#allocation8], 0
      %s65 = sshll.u32 %s10, 4
      %s66 = int_to_ptr.hbm [resolvable:$true] %s65
      %s67 = sshll.u32 [#allocation7], 4
      %s68 = int_to_ptr.vmem [resolvable:$true] %s67
      %73 = dma.hbm_to_vmem [thread:$0]  %s66, 2048, %s68, [#allocation8], 64, 64, 4
    $region41: #{distilbert_encoder.1} parent=1 // pred_fallthru
      _
    // Predicated region
    $region42: #{distilbert_encoder.1} parent=1 // pred_check
      _
    $region43: #{distilbert_encoder.1} parent=1 // pred_check_branch
      %75 = sbr.rel (0) target = $region45
    $region44: #{distilbert_encoder.1} parent=1 // pred_region
      _
    $region45: #{distilbert_encoder.1} parent=1 // pred_fallthru
      _
    // Predicated region
    $region46: #{distilbert_encoder.1} parent=1 // pred_check
      _
    $region47: #{distilbert_encoder.1} parent=1 // pred_check_branch
      %77 = sbr.rel (0) target = $region49
    $region48: #{distilbert_encoder.1} parent=1 // pred_region
      %79 = vsyncadd [#allocation8], 0
      %s80 = sshll.u32 %s12, 4
      %s81 = int_to_ptr.hbm [resolvable:$true] %s80
      %s82 = sshll.u32 [#allocation9], 4
      %s83 = int_to_ptr.vmem [resolvable:$true] %s82
      %88 = dma.hbm_to_vmem [thread:$0]  %s81, 2048, %s83, [#allocation8], 64, 64, 4
    $region49: #{distilbert_encoder.1} parent=1 // pred_fallthru
      _
    // Predicated region
    $region50: #{distilbert_encoder.1} parent=1 // pred_check
      _
    $region51: #{distilbert_encoder.1} parent=1 // pred_check_branch
      %90 = sbr.rel (0) target = $region53
    $region52: #{distilbert_encoder.1} parent=1 // pred_region
      _
    $region53: #{distilbert_encoder.1} parent=1 // pred_fallthru
      _
    // Predicated region
    $region54: #{distilbert_encoder.1} parent=1 // pred_check
      _
    $region55: #{distilbert_encoder.1} parent=1 // pred_check_branch
      %92 = sbr.rel (0) target = $region57
    $region56: #{distilbert_encoder.1} parent=1 // pred_region
      _
    $region57: #{distilbert_encoder.1} parent=1 // pred_fallthru
      _
    // Predicated region
    $region58: #{distilbert_encoder.1} parent=1 // pred_check
      _
    $region59: #{distilbert_encoder.1} parent=1 // pred_check_branch
      %94 = sbr.rel (0) target = $region61
    $region60: #{distilbert_encoder.1} parent=1 // pred_region
      _
    $region61: #{distilbert_encoder.1} parent=1 // pred_fallthru
      _
    // Predicated region
    $region62: #{distilbert_encoder.1} parent=1 // pred_check
      _
    $region63: #{distilbert_encoder.1} parent=1 // pred_check_branch
      %96 = sbr.rel (0) target = $region65
    $region64: #{distilbert_encoder.1} parent=1 // pred_region
      %98 = dma.done [#allocation5], 6144
    $region65: #{distilbert_encoder.1} parent=1 // pred_fallthru
      _
    // Predicated region
    $region66: #{distilbert_encoder.1} parent=1 // pred_check
      _
    $region67: #{distilbert_encoder.1} parent=1 // pred_check_branch
      %100 = sbr.rel (0) target = $region69
    $region68: #{distilbert_encoder.1} parent=1 // pred_region
      %102 = dma.done [#allocation8], 2048
    $region69: #{distilbert_encoder.1} parent=1 // pred_fallthru
      _
    // Predicated region
    $region70: #{distilbert_encoder.1} parent=1 // pred_check
      _
    $region71: #{distilbert_encoder.1} parent=1 // pred_check_branch
      %104 = sbr.rel (0) target = $region73
    $region72: #{distilbert_encoder.1} parent=1 // pred_region
      %106 = dma.done [#allocation8], 2048
    $region73: #{distilbert_encoder.1} parent=1 // pred_fallthru
      _
    %v108 = vld [vmem:[%s1] sm:$0xff]
    %v109 = vld [vmem:[%s1 + $0x8] sm:$0xff]
    %v110 = vld [vmem:[%s2] sm:$0x1]
    %v111 = vld [vmem:[%s3] sm:$0x1]
    %112 = vadd.xlane.f32.xlu0 %v108
    %v113 = vpop.xlane.xlu0 %112
    %114 = vadd.xlane.f32.xlu0 %v109
    %v115 = vpop.xlane.xlu0 %114
    %v116 = vmul.f32 %v113, 0.015625
    %v117 = vmul.f32 %v115, 0.015625
    %v118 = vmul.f32 %v108, %v108
    %v119 = vmul.f32 %v109, %v109
    %120 = vadd.xlane.f32.xlu0 %v118
    %v121 = vpop.xlane.xlu0 %120
    %122 = vadd.xlane.f32.xlu0 %v119
    %v123 = vpop.xlane.xlu0 %122
    %v124 = vmul.f32 %v121, 0.015625
    %v125 = vmul.f32 %v123, 0.015625
    %v126 = vmul.f32 %v116, %v116
    %v127 = vmul.f32 %v117, %v117
    %v128 = vsub.f32 %v124, %v126
    %v129 = vsub.f32 %v125, %v127
    %v130 = vsub.f32 %v108, %v116
    %v131 = vsub.f32 %v109, %v117
    %v132 = vadd.f32 %v128, 1e-12
    %v133 = vadd.f32 %v129, 1e-12
    %v134 = vrsqrt.pop %v132
    %v135 = vmul.f32 %v134, %v132
    %v136 = vmul.f32 %v135, %v134
    %v137 = vmul.f32 0.5, %v136
    %v138 = vsub.f32 1.5, %v137
    %v139 = vmul.f32 %v134, %v138
    %vm140 = vweird.f32 %v132
    %vm141 = vweird.f32 %v134
    %vm142 = vmor %vm140, %vm141
    %v143 = vsel %vm142, %v134, %v139
    %v144 = vrsqrt.pop %v133
    %v145 = vmul.f32 %v144, %v133
    %v146 = vmul.f32 %v145, %v144
    %v147 = vmul.f32 0.5, %v146
    %v148 = vsub.f32 1.5, %v147
    %v149 = vmul.f32 %v144, %v148
    %vm150 = vweird.f32 %v133
    %vm151 = vweird.f32 %v144
    %vm152 = vmor %vm150, %vm151
    %v153 = vsel %vm152, %v144, %v149
    %v154 = vmul.f32 %v130, %v143
    %v155 = vmul.f32 %v131, %v153
    %v157 = vperm.slane %v110, 0
    %v159 = vmul.f32 %v154, %v157
    %v160 = vmul.f32 %v155, %v157
    %v162 = vperm.slane %v111, 0
    %v164 = vadd.f32 %v159, %v162
    %v165 = vadd.f32 %v160, %v162
    %v166 = vlaneseq
    %v167 = vshrl.u32 %v166, 7
    %v168 = vadd.s32 %v167, 8
    %v169 = vlaneseq
    %v170 = vand.u32 %v169, 127
    %s171 = smul.u32 0, 2
    %s172 = sld [smem:[#allocation3 + %s171]]
    %vm173 = vcmp.ge.s32.totalorder %v167, 0
    %vm174 = vcmp.ge.s32.totalorder %v168, 0
    %vm175 = vcmp.lt.s32.totalorder %v167, 8
    %vm176 = vcmp.lt.s32.totalorder %v168, 8
    %vm177 = vmand %vm173, %vm175
    %vm178 = vmand %vm174, %vm176
    %vm179 = vcmp.ge.s32.totalorder %v170, 0
    %v180 = vstv %s172
    %vm181 = vcmp.lt.s32.totalorder %v170, %v180
    %vm182 = vmand %vm179, %vm181
    %vm183 = vmand %vm177, %vm182
    %vm184 = vmand %vm178, %vm182
    %v185 = vsel %vm183, 0.0, -1e+09
    %v186 = vsel %vm184, 0.0, -1e+09
    %s187 = sadd.s32 %s171, 1
    %s188 = sld [smem:[#allocation3 + %s187]]
    %vm189 = vcmp.ge.s32.totalorder %v167, 8
    %vm190 = vcmp.ge.s32.totalorder %v168, 8
    %vm191 = vcmp.lt.s32.totalorder %v167, 16
    %vm192 = vcmp.lt.s32.totalorder %v168, 16
    %vm193 = vmand %vm189, %vm191
    %vm194 = vmand %vm190, %vm192
    %vm195 = vcmp.ge.s32.totalorder %v170, 8
    %s196 = sadd.s32 %s188, 8
    %v197 = vstv %s196
    %vm198 = vcmp.lt.s32.totalorder %v170, %v197
    %vm199 = vmand %vm195, %vm198
    %vm200 = vmand %vm193, %vm199
    %vm201 = vmand %vm194, %vm199
    %v202 = vsel %vm200, 0.0, %v185
    %v203 = vsel %vm201, 0.0, %v186
    %v204 = vld [vmem:[#allocation4] sm:$0xff]
    %v205 = vld [vmem:[#allocation4 + $0x8] sm:$0xf]
    %v206 = vld [vmem:[#allocation4 + $0xc] sm:$0xff]
    %v207 = vld [vmem:[#allocation4 + $0x14] sm:$0xf]
    %v208 = vld [vmem:[#allocation4 + $0x18] sm:$0xff]
    %v209 = vld [vmem:[#allocation4 + $0x20] sm:$0xf]
    %v210 = vld [vmem:[#allocation4 + $0x24] sm:$0xff]
    %v211 = vld [vmem:[#allocation4 + $0x2c] sm:$0xf]
    %v212 = vld [vmem:[#allocation4 + $0x30] sm:$0xff]
    %v213 = vld [vmem:[#allocation4 + $0x38] sm:$0xf]
    %v214 = vld [vmem:[#allocation4 + $0x3c] sm:$0xff]
    %v215 = vld [vmem:[#allocation4 + $0x44] sm:$0xf]
    %v216 = vld [vmem:[#allocation4 + $0x48] sm:$0xff]
    %v217 = vld [vmem:[#allocation4 + $0x50] sm:$0xf]
    %v218 = vld [vmem:[#allocation4 + $0x54] sm:$0xff]
    %v219 = vld [vmem:[#allocation4 + $0x5c] sm:$0xf]
    %v220 = vld [vmem:[#allocation4 + $0x60] sm:$0xff]
    %v221 = vld [vmem:[#allocation4 + $0x68] sm:$0xf]
    %v222 = vld [vmem:[#allocation4 + $0x6c] sm:$0xff]
    %v223 = vld [vmem:[#allocation4 + $0x74] sm:$0xf]
    %v224 = vld [vmem:[#allocation4 + $0x78] sm:$0xff]
    %v225 = vld [vmem:[#allocation4 + $0x80] sm:$0xf]
    %v226 = vld [vmem:[#allocation4 + $0x84] sm:$0xff]
    %v227 = vld [vmem:[#allocation4 + $0x8c] sm:$0xf]
    %v228 = vld [vmem:[#allocation4 + $0x90] sm:$0xff]
    %v229 = vld [vmem:[#allocation4 + $0x98] sm:$0xf]
    %v230 = vld [vmem:[#allocation4 + $0x9c] sm:$0xff]
    %v231 = vld [vmem:[#allocation4 + $0xa4] sm:$0xf]
    %v232 = vld [vmem:[#allocation4 + $0xa8] sm:$0xff]
    %v233 = vld [vmem:[#allocation4 + $0xb0] sm:$0xf]
    %v234 = vld [vmem:[#allocation4 + $0xb4] sm:$0xff]
    %v235 = vld [vmem:[#allocation4 + $0xbc] sm:$0xf]
    %v236 = vld [vmem:[%s6] sm:$0xf]
    %v237 = vld [vmem:[%s6 + $0x4] sm:$0xf]
    %v238 = vld [vmem:[%s6 + $0x8] sm:$0xf]
    %v239 = vld [vmem:[%s6 + $0xc] sm:$0xf]
    %v240 = vld [vmem:[%s6 + $0x10] sm:$0xf]
    %v241 = vld [vmem:[%s6 + $0x14] sm:$0xf]
    %v242 = vld [vmem:[%s6 + $0x18] sm:$0xf]
    %v243 = vld [vmem:[%s6 + $0x1c] sm:$0xf]
    %v244 = vld [vmem:[%s6 + $0x20] sm:$0xf]
    %v245 = vld [vmem:[%s6 + $0x24] sm:$0xf]
    %v246 = vld [vmem:[%s6 + $0x28] sm:$0xf]
    %v247 = vld [vmem:[%s6 + $0x2c] sm:$0xf]
    %v248 = vld [vmem:[%s6 + $0x30] sm:$0xf]
    %v249 = vld [vmem:[%s6 + $0x34] sm:$0xf]
    %v250 = vld [vmem:[%s6 + $0x38] sm:$0xf]
    %v251 = vld [vmem:[%s6 + $0x3c] sm:$0xf]
    %v252 = vpack.c.bf16 %v165, %v164
    %v253 = vld [vmem:[%s5] sm:$0x7]
    %v255 = vperm.slane %v253, 0
    %v256 = vperm.slane %v253, 1
    %v257 = vperm.slane %v253, 2
    %v293 = vunpack.c.l.b16 %v204
    %v294 = vunpack.c.h.b16 %v204
    %v295 = vunpack.c.l.b16 %v205
    %v296 = vunpack.c.l.b16 %v206
    %v297 = vunpack.c.h.b16 %v206
    %v298 = vunpack.c.l.b16 %v207
    %v299 = vunpack.c.l.b16 %v208
    %v300 = vunpack.c.h.b16 %v208
    %v301 = vunpack.c.l.b16 %v209
    %v302 = vunpack.c.l.b16 %v210
    %v303 = vunpack.c.h.b16 %v210
    %v304 = vunpack.c.l.b16 %v211
    %v305 = vunpack.c.l.b16 %v212
    %v306 = vunpack.c.h.b16 %v212
    %v307 = vunpack.c.l.b16 %v213
    %v308 = vunpack.c.l.b16 %v214
    %v309 = vunpack.c.h.b16 %v214
    %v310 = vunpack.c.l.b16 %v215
    %v311 = vunpack.c.l.b16 %v216
    %v312 = vunpack.c.h.b16 %v216
    %v313 = vunpack.c.l.b16 %v217
    %v314 = vunpack.c.l.b16 %v218
    %v315 = vunpack.c.h.b16 %v218
    %v316 = vunpack.c.l.b16 %v219
    %v317 = vunpack.c.l.b16 %v220
    %v318 = vunpack.c.h.b16 %v220
    %v319 = vunpack.c.l.b16 %v221
    %v320 = vunpack.c.l.b16 %v222
    %v321 = vunpack.c.h.b16 %v222
    %v322 = vunpack.c.l.b16 %v223
    %v323 = vunpack.c.l.b16 %v224
    %v324 = vunpack.c.h.b16 %v224
    %v325 = vunpack.c.l.b16 %v225
    %v326 = vunpack.c.l.b16 %v226
    %v327 = vunpack.c.h.b16 %v226
    %v328 = vunpack.c.l.b16 %v227
    %v329 = vunpack.c.l.b16 %v228
    %v330 = vunpack.c.h.b16 %v228
    %v331 = vunpack.c.l.b16 %v229
    %v332 = vunpack.c.l.b16 %v230
    %v333 = vunpack.c.h.b16 %v230
    %v334 = vunpack.c.l.b16 %v231
    %v335 = vunpack.c.l.b16 %v232
    %v336 = vunpack.c.h.b16 %v232
    %v337 = vunpack.c.l.b16 %v233
    %v338 = vunpack.c.l.b16 %v234
    %v339 = vunpack.c.h.b16 %v234
    %v340 = vunpack.c.l.b16 %v235
    %v341 = vpack.c.b16 %v296, %v293
    %v342 = vpack.c.b16 %v297, %v294
    %v343 = vpack.c.b16 %v298, %v295
    %v344 = vpack.c.b16 %v302, %v299
    %v345 = vpack.c.b16 %v303, %v300
    %v346 = vpack.c.b16 %v304, %v301
    %v347 = vpack.c.b16 %v308, %v305
    %v348 = vpack.c.b16 %v309, %v306
    %v349 = vpack.c.b16 %v310, %v307
    %v350 = vpack.c.b16 %v314, %v311
    %v351 = vpack.c.b16 %v315, %v312
    %v352 = vpack.c.b16 %v316, %v313
    %v353 = vpack.c.b16 %v320, %v317
    %v354 = vpack.c.b16 %v321, %v318
    %v355 = vpack.c.b16 %v322, %v319
    %v356 = vpack.c.b16 %v326, %v323
    %v357 = vpack.c.b16 %v327, %v324
    %v358 = vpack.c.b16 %v328, %v325
    %v359 = vpack.c.b16 %v332, %v329
    %v360 = vpack.c.b16 %v333, %v330
    %v361 = vpack.c.b16 %v334, %v331
    %v362 = vpack.c.b16 %v338, %v335
    %v363 = vpack.c.b16 %v339, %v336
    %v364 = vpack.c.b16 %v340, %v337
    %389 = vmatpush.bf16.msra.mxu0 %v362
    %390 = vmatpush.bf16.msra.mxu0 %v359
    %391 = vmatpush.bf16.msra.mxu0 %v356
    %392 = vmatpush.bf16.msra.mxu0 %v353
    %393 = vmatpush.bf16.msra.mxu0 %v350
    %394 = vmatpush.bf16.msra.mxu0 %v347
    %395 = vmatpush.bf16.msra.mxu0 %v344
    %396 = vmatpush.bf16.msra.mxu0 %v341
    %397 = vmatmul.bf16.gmra.mxu0 %v252
    %v398 = vpop.f32.mrf.mxu0
    %v399 = vadd.f32 %v255, %v398
    %v400 = vpop.f32.mrf.mxu0
    %v401 = vadd.f32 %v255, %v400
    %402 = vdwg.mxu0
    %403 = vmatpush.bf16.msra.mxu0 %v363
    %404 = vmatpush.bf16.msra.mxu0 %v360
    %405 = vmatpush.bf16.msra.mxu0 %v357
    %406 = vmatpush.bf16.msra.mxu0 %v354
    %407 = vmatpush.bf16.msra.mxu0 %v351
    %408 = vmatpush.bf16.msra.mxu0 %v348
    %409 = vmatpush.bf16.msra.mxu0 %v345
    %410 = vmatpush.bf16.msra.mxu0 %v342
    %411 = vmatmul.bf16.gmra.mxu0 %v252
    %v412 = vpop.f32.mrf.mxu0
    %v413 = vadd.f32 %v256, %v412
    %v414 = vpop.f32.mrf.mxu0
    %v415 = vadd.f32 %v256, %v414
    %416 = vdwg.mxu0
    %417 = vmatpush.bf16.msra.mxu0 %v364
    %418 = vmatpush.bf16.msra.mxu0 %v361
    %419 = vmatpush.bf16.msra.mxu0 %v358
    %420 = vmatpush.bf16.msra.mxu0 %v355
    %421 = vmatpush.bf16.msra.mxu0 %v352
    %422 = vmatpush.bf16.msra.mxu0 %v349
    %423 = vmatpush.bf16.msra.mxu0 %v346
    %424 = vmatpush.bf16.msra.mxu0 %v343
    %425 = vmatmul.bf16.gmra.mxu0 %v252
    %v426 = vpop.f32.mrf.mxu0
    %v427 = vadd.f32 %v257, %v426
    %v428 = vpop.f32.mrf.mxu0
    %v429 = vadd.f32 %v257, %v428
    %430 = vdwg.mxu0
    %vm431 = vcmask 261120
    %v433 = vsel %vm431, %v399, 0
    %v436 = vsel %vm431, %v401, 0
    %v439 = vsel %vm431, %v413, 0
    %v442 = vsel %vm431, %v415, 0
    %444 = vmatpush.xpose.msra.mxu0 0.0
    %445 = vmatpush.xpose.msra.mxu0 0.0
    %446 = vmatpush.xpose.msra.mxu0 0.0
    %447 = vmatpush.xpose.msra.mxu0 0.0
    %448 = vmatpush.xpose.msra.mxu0 0.0
    %449 = vmatpush.xpose.msra.mxu0 0.0
    %450 = vmatpush.xpose.msra.mxu0 0.0
    %451 = vmatpush.xpose.msra.mxu0 0.0
    %452 = vmatpush.xpose.msra.mxu0 0.0
    %453 = vmatpush.xpose.msra.mxu0 0.0
    %454 = vmatpush.xpose.msra.mxu0 0.0
    %455 = vmatpush.xpose.msra.mxu0 0.0
    %456 = vmatpush.xpose.msra.mxu0 0.0
    %457 = vmatpush.xpose.msra.mxu0 0.0
    %458 = vmatpush.xpose.msra.mxu0 %v442
    %459 = vmatpush.xpose.msra.mxu0 %v439
    %460 = vmatmul.f32.gmra.mxu0 %v433
    %v461 = vpop.f32.mrf.mxu0
    %v462 = vadd.f32 %v202, %v461
    %463 = vmatmul.f32.gmra.mxu0 %v436
    %v464 = vpop.f32.mrf.mxu0
    %v465 = vadd.f32 %v203, %v464
    %466 = vdwg.mxu0
    %vm467 = vcmask 130048
    %v468 = vsel %vm467, %v462, -inf
    %469 = vmax.xlane.f32.xlu0 %v468
    %v470 = vpop.xlane.xlu0 %469
    %v471 = vsel %vm467, %v465, -inf
    %472 = vmax.xlane.f32.xlu0 %v471
    %v473 = vpop.xlane.xlu0 %472
    %v474 = vsub.f32 %v462, %v470
    %v475 = vsub.f32 %v465, %v473
    %v476 = vmul.f32 %v474, 1.442695
    %v477 = vpow.pop %v476
    %v478 = vmul.f32 %v475, 1.442695
    %v479 = vpow.pop %v478
    %v480 = vsel %vm467, %v477, 0.0
    %481 = vadd.xlane.f32.xlu0 %v480
    %v482 = vpop.xlane.xlu0 %481
    %v483 = vsel %vm467, %v479, 0.0
    %484 = vadd.xlane.f32.xlu0 %v483
    %v485 = vpop.xlane.xlu0 %484
    %v486 = vrcp.pop %v482
    %v487 = vrcp.pop %v485
    %v488 = vmul.f32 %v477, %v486
    %v489 = vmul.f32 %v479, %v487
    %v491 = vsel %vm467, %v488, 0
    %v494 = vsel %vm467, %v489, 0
    %496 = vmatpush.msra.mxu0 0.0
    %497 = vmatpush.msra.mxu0 0.0
    %498 = vmatpush.msra.mxu0 0.0
    %499 = vmatpush.msra.mxu0 0.0
    %500 = vmatpush.msra.mxu0 0.0
    %501 = vmatpush.msra.mxu0 0.0
    %502 = vmatpush.msra.mxu0 0.0
    %503 = vmatpush.msra.mxu0 0.0
    %504 = vmatpush.msra.mxu0 0.0
    %505 = vmatpush.msra.mxu0 0.0
    %506 = vmatpush.msra.mxu0 0.0
    %507 = vmatpush.msra.mxu0 0.0
    %508 = vmatpush.msra.mxu0 0.0
    %509 = vmatpush.msra.mxu0 0.0
    %510 = vmatpush.msra.mxu0 %v429
    %511 = vmatpush.msra.mxu0 %v427
    %512 = vmatmul.f32.gmra.mxu0 %v491
    %v513 = vpop.f32.mrf.mxu0
    %v514 = vadd.f32 0.0, %v513
    %515 = vmatmul.f32.gmra.mxu0 %v494
    %v516 = vpop.f32.mrf.mxu0
    %v517 = vadd.f32 0.0, %v516
    %518 = vdwg.mxu0
    %v519 = vpack.c.bf16 %v517, %v514
    %520 = vrot.lane.b32.xlu0 %v399, 96
    %v521 = vpop.permute.xlu0 %520
    %522 = vrot.lane.b32.xlu0 %v401, 96
    %v523 = vpop.permute.xlu0 %522
    %524 = vrot.lane.b32.xlu0 %v413, 96
    %v525 = vpop.permute.xlu0 %524
    %526 = vrot.lane.b32.xlu0 %v415, 96
    %v527 = vpop.permute.xlu0 %526
    %v528 = vsel %vm431, %v521, 0
    %v530 = vsel %vm431, %v523, 0
    %v532 = vsel %vm431, %v525, 0
    %v534 = vsel %vm431, %v527, 0
    %536 = vmatpush.xpose.msra.mxu0 0.0
    %537 = vmatpush.xpose.msra.mxu0 0.0
    %538 = vmatpush.xpose.msra.mxu0 0.0
    %539 = vmatpush.xpose.msra.mxu0 0.0
    %540 = vmatpush.xpose.msra.mxu0 0.0
    %541 = vmatpush.xpose.msra.mxu0 0.0
    %542 = vmatpush.xpose.msra.mxu0 0.0
    %543 = vmatpush.xpose.msra.mxu0 0.0
    %544 = vmatpush.xpose.msra.mxu0 0.0
    %545 = vmatpush.xpose.msra.mxu0 0.0
    %546 = vmatpush.xpose.msra.mxu0 0.0
    %547 = vmatpush.xpose.msra.mxu0 0.0
    %548 = vmatpush.xpose.msra.mxu0 0.0
    %549 = vmatpush.xpose.msra.mxu0 0.0
    %550 = vmatpush.xpose.msra.mxu0 %v534
    %551 = vmatpush.xpose.msra.mxu0 %v532
    %552 = vmatmul.f32.gmra.mxu0 %v528
    %v553 = vpop.f32.mrf.mxu0
    %v554 = vadd.f32 %v202, %v553
    %555 = vmatmul.f32.gmra.mxu0 %v530
    %v556 = vpop.f32.mrf.mxu0
    %v557 = vadd.f32 %v203, %v556
    %558 = vdwg.mxu0
    %v559 = vsel %vm467, %v554, -inf
    %560 = vmax.xlane.f32.xlu0 %v559
    %v561 = vpop.xlane.xlu0 %560
    %v562 = vsel %vm467, %v557, -inf
    %563 = vmax.xlane.f32.xlu0 %v562
    %v564 = vpop.xlane.xlu0 %563
    %v565 = vsub.f32 %v554, %v561
    %v566 = vsub.f32 %v557, %v564
    %v567 = vmul.f32 %v565, 1.442695
    %v568 = vpow.pop %v567
    %v569 = vmul.f32 %v566, 1.442695
    %v570 = vpow.pop %v569
    %v571 = vsel %vm467, %v568, 0.0
    %572 = vadd.xlane.f32.xlu0 %v571
    %v573 = vpop.xlane.xlu0 %572
    %v574 = vsel %vm467, %v570, 0.0
    %575 = vadd.xlane.f32.xlu0 %v574
    %v576 = vpop.xlane.xlu0 %575
    %v577 = vrcp.pop %v573
    %v578 = vrcp.pop %v576
    %v579 = vmul.f32 %v568, %v577
    %v580 = vmul.f32 %v570, %v578
    %583 = vrot.lane.b32.xlu0 %v427, 96
    %v584 = vpop.permute.xlu0 %583
    %585 = vrot.lane.b32.xlu0 %v429, 96
    %v586 = vpop.permute.xlu0 %585
    %v590 = vsel %vm467, %v579, 0
    %v593 = vsel %vm467, %v580, 0
    %595 = vmatpush.msra.mxu0 0.0
    %596 = vmatpush.msra.mxu0 0.0
    %597 = vmatpush.msra.mxu0 0.0
    %598 = vmatpush.msra.mxu0 0.0
    %599 = vmatpush.msra.mxu0 0.0
    %600 = vmatpush.msra.mxu0 0.0
    %601 = vmatpush.msra.mxu0 0.0
    %602 = vmatpush.msra.mxu0 0.0
    %603 = vmatpush.msra.mxu0 0.0
    %604 = vmatpush.msra.mxu0 0.0
    %605 = vmatpush.msra.mxu0 0.0
    %606 = vmatpush.msra.mxu0 0.0
    %607 = vmatpush.msra.mxu0 0.0
    %608 = vmatpush.msra.mxu0 0.0
    %609 = vmatpush.msra.mxu0 %v586
    %610 = vmatpush.msra.mxu0 %v584
    %611 = vmatmul.f32.gmra.mxu0 %v590
    %v612 = vpop.f32.mrf.mxu0
    %v613 = vadd.f32 0.0, %v612
    %614 = vmatmul.f32.gmra.mxu0 %v593
    %v615 = vpop.f32.mrf.mxu0
    %v616 = vadd.f32 0.0, %v615
    %617 = vdwg.mxu0
    %v618 = vpack.c.bf16 %v616, %v613
    %v623 = vunpack.c.l.b16 %v240
    %v624 = vunpack.c.l.b16 %v241
    %v625 = vunpack.c.l.b16 %v242
    %v626 = vunpack.c.l.b16 %v243
    %v627 = vpack.c.b16 %v624, %v623
    %v628 = vpack.c.b16 %v626, %v625
    %v632 = vsel %vm431, %v618, 0
    %634 = vmatpush.bf16.msra.mxu0 0
    %635 = vmatpush.bf16.msra.mxu0 0
    %636 = vmatpush.bf16.msra.mxu0 0
    %637 = vmatpush.bf16.msra.mxu0 0
    %638 = vmatpush.bf16.msra.mxu0 0
    %639 = vmatpush.bf16.msra.mxu0 0
    %640 = vmatpush.bf16.msra.mxu0 %v628
    %641 = vmatpush.bf16.msra.mxu0 %v627
    %642 = vmatmul.bf16.gmra.mxu0 %v632
    %v643 = vpop.f32.mrf.mxu0
    %v644 = vadd.f32 0.0, %v643
    %v645 = vpop.f32.mrf.mxu0
    %v646 = vadd.f32 0.0, %v645
    %647 = vdwg.mxu0
    %v652 = vunpack.c.l.b16 %v236
    %v653 = vunpack.c.l.b16 %v237
    %v654 = vunpack.c.l.b16 %v238
    %v655 = vunpack.c.l.b16 %v239
    %v656 = vpack.c.b16 %v653, %v652
    %v657 = vpack.c.b16 %v655, %v654
    %v661 = vsel %vm431, %v519, 0
    %663 = vmatpush.bf16.msra.mxu0 0
    %664 = vmatpush.bf16.msra.mxu0 0
    %665 = vmatpush.bf16.msra.mxu0 0
    %666 = vmatpush.bf16.msra.mxu0 0
    %667 = vmatpush.bf16.msra.mxu0 0
    %668 = vmatpush.bf16.msra.mxu0 0
    %669 = vmatpush.bf16.msra.mxu0 %v657
    %670 = vmatpush.bf16.msra.mxu0 %v656
    %671 = vmatmul.bf16.gmra.mxu0 %v661
    %v672 = vpop.f32.mrf.mxu0
    %v673 = vadd.f32 %v644, %v672
    %v674 = vpop.f32.mrf.mxu0
    %v675 = vadd.f32 %v646, %v674
    %676 = vdwg.mxu0
    %677 = vrot.lane.b32.xlu0 %v399, 64
    %v678 = vpop.permute.xlu0 %677
    %679 = vrot.lane.b32.xlu0 %v401, 64
    %v680 = vpop.permute.xlu0 %679
    %681 = vrot.lane.b32.xlu0 %v413, 64
    %v682 = vpop.permute.xlu0 %681
    %683 = vrot.lane.b32.xlu0 %v415, 64
    %v684 = vpop.permute.xlu0 %683
    %v685 = vsel %vm431, %v678, 0
    %v687 = vsel %vm431, %v680, 0
    %v689 = vsel %vm431, %v682, 0
    %v691 = vsel %vm431, %v684, 0
    %693 = vmatpush.xpose.msra.mxu0 0.0
    %694 = vmatpush.xpose.msra.mxu0 0.0
    %695 = vmatpush.xpose.msra.mxu0 0.0
    %696 = vmatpush.xpose.msra.mxu0 0.0
    %697 = vmatpush.xpose.msra.mxu0 0.0
    %698 = vmatpush.xpose.msra.mxu0 0.0
    %699 = vmatpush.xpose.msra.mxu0 0.0
    %700 = vmatpush.xpose.msra.mxu0 0.0
    %701 = vmatpush.xpose.msra.mxu0 0.0
    %702 = vmatpush.xpose.msra.mxu0 0.0
    %703 = vmatpush.xpose.msra.mxu0 0.0
    %704 = vmatpush.xpose.msra.mxu0 0.0
    %705 = vmatpush.xpose.msra.mxu0 0.0
    %706 = vmatpush.xpose.msra.mxu0 0.0
    %707 = vmatpush.xpose.msra.mxu0 %v691
    %708 = vmatpush.xpose.msra.mxu0 %v689
    %709 = vmatmul.f32.gmra.mxu0 %v685
    %v710 = vpop.f32.mrf.mxu0
    %v711 = vadd.f32 %v202, %v710
    %712 = vmatmul.f32.gmra.mxu0 %v687
    %v713 = vpop.f32.mrf.mxu0
    %v714 = vadd.f32 %v203, %v713
    %715 = vdwg.mxu0
    %v716 = vsel %vm467, %v711, -inf
    %717 = vmax.xlane.f32.xlu0 %v716
    %v718 = vpop.xlane.xlu0 %717
    %v719 = vsel %vm467, %v714, -inf
    %720 = vmax.xlane.f32.xlu0 %v719
    %v721 = vpop.xlane.xlu0 %720
    %v722 = vsub.f32 %v711, %v718
    %v723 = vsub.f32 %v714, %v721
    %v724 = vmul.f32 %v722, 1.442695
    %v725 = vpow.pop %v724
    %v726 = vmul.f32 %v723, 1.442695
    %v727 = vpow.pop %v726
    %v728 = vsel %vm467, %v725, 0.0
    %729 = vadd.xlane.f32.xlu0 %v728
    %v730 = vpop.xlane.xlu0 %729
    %v731 = vsel %vm467, %v727, 0.0
    %732 = vadd.xlane.f32.xlu0 %v731
    %v733 = vpop.xlane.xlu0 %732
    %v734 = vrcp.pop %v730
    %v735 = vrcp.pop %v733
    %v736 = vmul.f32 %v725, %v734
    %v737 = vmul.f32 %v727, %v735
    %738 = vrot.lane.b32.xlu0 %v427, 64
    %v739 = vpop.permute.xlu0 %738
    %740 = vrot.lane.b32.xlu0 %v429, 64
    %v741 = vpop.permute.xlu0 %740
    %v745 = vsel %vm467, %v736, 0
    %v748 = vsel %vm467, %v737, 0
    %750 = vmatpush.msra.mxu0 0.0
    %751 = vmatpush.msra.mxu0 0.0
    %752 = vmatpush.msra.mxu0 0.0
    %753 = vmatpush.msra.mxu0 0.0
    %754 = vmatpush.msra.mxu0 0.0
    %755 = vmatpush.msra.mxu0 0.0
    %756 = vmatpush.msra.mxu0 0.0
    %757 = vmatpush.msra.mxu0 0.0
    %758 = vmatpush.msra.mxu0 0.0
    %759 = vmatpush.msra.mxu0 0.0
    %760 = vmatpush.msra.mxu0 0.0
    %761 = vmatpush.msra.mxu0 0.0
    %762 = vmatpush.msra.mxu0 0.0
    %763 = vmatpush.msra.mxu0 0.0
    %764 = vmatpush.msra.mxu0 %v741
    %765 = vmatpush.msra.mxu0 %v739
    %766 = vmatmul.f32.gmra.mxu0 %v745
    %v767 = vpop.f32.mrf.mxu0
    %v768 = vadd.f32 0.0, %v767
    %769 = vmatmul.f32.gmra.mxu0 %v748
    %v770 = vpop.f32.mrf.mxu0
    %v771 = vadd.f32 0.0, %v770
    %772 = vdwg.mxu0
    %v773 = vpack.c.bf16 %v771, %v768
    %v778 = vunpack.c.l.b16 %v244
    %v779 = vunpack.c.l.b16 %v245
    %v780 = vunpack.c.l.b16 %v246
    %v781 = vunpack.c.l.b16 %v247
    %v782 = vpack.c.b16 %v779, %v778
    %v783 = vpack.c.b16 %v781, %v780
    %v787 = vsel %vm431, %v773, 0
    %789 = vmatpush.bf16.msra.mxu0 0
    %790 = vmatpush.bf16.msra.mxu0 0
    %791 = vmatpush.bf16.msra.mxu0 0
    %792 = vmatpush.bf16.msra.mxu0 0
    %793 = vmatpush.bf16.msra.mxu0 0
    %794 = vmatpush.bf16.msra.mxu0 0
    %795 = vmatpush.bf16.msra.mxu0 %v783
    %796 = vmatpush.bf16.msra.mxu0 %v782
    %797 = vmatmul.bf16.gmra.mxu0 %v787
    %v798 = vpop.f32.mrf.mxu0
    %v799 = vadd.f32 0.0, %v798
    %v800 = vpop.f32.mrf.mxu0
    %v801 = vadd.f32 0.0, %v800
    %802 = vdwg.mxu0
    %v803 = vadd.f32 %v673, %v799
    %v804 = vadd.f32 %v675, %v801
    %805 = vrot.lane.b32.xlu0 %v399, 32
    %v806 = vpop.permute.xlu0 %805
    %807 = vrot.lane.b32.xlu0 %v401, 32
    %v808 = vpop.permute.xlu0 %807
    %809 = vrot.lane.b32.xlu0 %v413, 32
    %v810 = vpop.permute.xlu0 %809
    %811 = vrot.lane.b32.xlu0 %v415, 32
    %v812 = vpop.permute.xlu0 %811
    %v813 = vsel %vm431, %v806, 0
    %v815 = vsel %vm431, %v808, 0
    %v817 = vsel %vm431, %v810, 0
    %v819 = vsel %vm431, %v812, 0
    %821 = vmatpush.xpose.msra.mxu0 0.0
    %822 = vmatpush.xpose.msra.mxu0 0.0
    %823 = vmatpush.xpose.msra.mxu0 0.0
    %824 = vmatpush.xpose.msra.mxu0 0.0
    %825 = vmatpush.xpose.msra.mxu0 0.0
    %826 = vmatpush.xpose.msra.mxu0 0.0
    %827 = vmatpush.xpose.msra.mxu0 0.0
    %828 = vmatpush.xpose.msra.mxu0 0.0
    %829 = vmatpush.xpose.msra.mxu0 0.0
    %830 = vmatpush.xpose.msra.mxu0 0.0
    %831 = vmatpush.xpose.msra.mxu0 0.0
    %832 = vmatpush.xpose.msra.mxu0 0.0
    %833 = vmatpush.xpose.msra.mxu0 0.0
    %834 = vmatpush.xpose.msra.mxu0 0.0
    %835 = vmatpush.xpose.msra.mxu0 %v819
    %836 = vmatpush.xpose.msra.mxu0 %v817
    %837 = vmatmul.f32.gmra.mxu0 %v813
    %v838 = vpop.f32.mrf.mxu0
    %v839 = vadd.f32 %v202, %v838
    %840 = vmatmul.f32.gmra.mxu0 %v815
    %v841 = vpop.f32.mrf.mxu0
    %v842 = vadd.f32 %v203, %v841
    %843 = vdwg.mxu0
    %v844 = vsel %vm467, %v839, -inf
    %845 = vmax.xlane.f32.xlu0 %v844
    %v846 = vpop.xlane.xlu0 %845
    %v847 = vsel %vm467, %v842, -inf
    %848 = vmax.xlane.f32.xlu0 %v847
    %v849 = vpop.xlane.xlu0 %848
    %v850 = vsub.f32 %v839, %v846
    %v851 = vsub.f32 %v842, %v849
    %v852 = vmul.f32 %v850, 1.442695
    %v853 = vpow.pop %v852
    %v854 = vmul.f32 %v851, 1.442695
    %v855 = vpow.pop %v854
    %v856 = vsel %vm467, %v853, 0.0
    %857 = vadd.xlane.f32.xlu0 %v856
    %v858 = vpop.xlane.xlu0 %857
    %v859 = vsel %vm467, %v855, 0.0
    %860 = vadd.xlane.f32.xlu0 %v859
    %v861 = vpop.xlane.xlu0 %860
    %v862 = vrcp.pop %v858
    %v863 = vrcp.pop %v861
    %v864 = vmul.f32 %v853, %v862
    %v865 = vmul.f32 %v855, %v863
    %866 = vrot.lane.b32.xlu0 %v427, 32
    %v867 = vpop.permute.xlu0 %866
    %868 = vrot.lane.b32.xlu0 %v429, 32
    %v869 = vpop.permute.xlu0 %868
    %v873 = vsel %vm467, %v864, 0
    %v876 = vsel %vm467, %v865, 0
    %878 = vmatpush.msra.mxu0 0.0
    %879 = vmatpush.msra.mxu0 0.0
    %880 = vmatpush.msra.mxu0 0.0
    %881 = vmatpush.msra.mxu0 0.0
    %882 = vmatpush.msra.mxu0 0.0
    %883 = vmatpush.msra.mxu0 0.0
    %884 = vmatpush.msra.mxu0 0.0
    %885 = vmatpush.msra.mxu0 0.0
    %886 = vmatpush.msra.mxu0 0.0
    %887 = vmatpush.msra.mxu0 0.0
    %888 = vmatpush.msra.mxu0 0.0
    %889 = vmatpush.msra.mxu0 0.0
    %890 = vmatpush.msra.mxu0 0.0
    %891 = vmatpush.msra.mxu0 0.0
    %892 = vmatpush.msra.mxu0 %v869
    %893 = vmatpush.msra.mxu0 %v867
    %894 = vmatmul.f32.gmra.mxu0 %v873
    %v895 = vpop.f32.mrf.mxu0
    %v896 = vadd.f32 0.0, %v895
    %897 = vmatmul.f32.gmra.mxu0 %v876
    %v898 = vpop.f32.mrf.mxu0
    %v899 = vadd.f32 0.0, %v898
    %900 = vdwg.mxu0
    %v901 = vpack.c.bf16 %v899, %v896
    %v906 = vunpack.c.l.b16 %v248
    %v907 = vunpack.c.l.b16 %v249
    %v908 = vunpack.c.l.b16 %v250
    %v909 = vunpack.c.l.b16 %v251
    %v910 = vpack.c.b16 %v907, %v906
    %v911 = vpack.c.b16 %v909, %v908
    %v915 = vsel %vm431, %v901, 0
    %917 = vmatpush.bf16.msra.mxu0 0
    %918 = vmatpush.bf16.msra.mxu0 0
    %919 = vmatpush.bf16.msra.mxu0 0
    %920 = vmatpush.bf16.msra.mxu0 0
    %921 = vmatpush.bf16.msra.mxu0 0
    %922 = vmatpush.bf16.msra.mxu0 0
    %923 = vmatpush.bf16.msra.mxu0 %v911
    %924 = vmatpush.bf16.msra.mxu0 %v910
    %925 = vmatmul.bf16.gmra.mxu0 %v915
    %v926 = vpop.f32.mrf.mxu0
    %v927 = vadd.f32 0.0, %v926
    %v928 = vpop.f32.mrf.mxu0
    %v929 = vadd.f32 0.0, %v928
    %930 = vdwg.mxu0
    %v931 = vadd.f32 %v803, %v927
    %v932 = vadd.f32 %v804, %v929
    %v933 = vld [vmem:[%s7] sm:$0x1]
    %v935 = vperm.slane %v933, 0
    %v937 = vadd.f32 %v931, %v935
    %v938 = vadd.f32 %v932, %v935
    %v939 = vadd.f32 %v937, %v164
    %v940 = vadd.f32 %v938, %v165
    %v941 = vld [vmem:[%s8] sm:$0x1]
    %v942 = vld [vmem:[%s9] sm:$0x1]
    %943 = vadd.xlane.f32.xlu0 %v939
    %v944 = vpop.xlane.xlu0 %943
    %945 = vadd.xlane.f32.xlu0 %v940
    %v946 = vpop.xlane.xlu0 %945
    %v947 = vmul.f32 %v944, 0.015625
    %v948 = vmul.f32 %v946, 0.015625
    %v949 = vmul.f32 %v939, %v939
    %v950 = vmul.f32 %v940, %v940
    %951 = vadd.xlane.f32.xlu0 %v949
    %v952 = vpop.xlane.xlu0 %951
    %953 = vadd.xlane.f32.xlu0 %v950
    %v954 = vpop.xlane.xlu0 %953
    %v955 = vmul.f32 %v952, 0.015625
    %v956 = vmul.f32 %v954, 0.015625
    %v957 = vmul.f32 %v947, %v947
    %v958 = vmul.f32 %v948, %v948
    %v959 = vsub.f32 %v955, %v957
    %v960 = vsub.f32 %v956, %v958
    %v961 = vsub.f32 %v939, %v947
    %v962 = vsub.f32 %v940, %v948
    %v963 = vadd.f32 %v959, 1e-12
    %v964 = vadd.f32 %v960, 1e-12
    %v965 = vrsqrt.pop %v963
    %v966 = vmul.f32 %v965, %v963
    %v967 = vmul.f32 %v966, %v965
    %v968 = vmul.f32 0.5, %v967
    %v969 = vsub.f32 1.5, %v968
    %v970 = vmul.f32 %v965, %v969
    %vm971 = vweird.f32 %v963
    %vm972 = vweird.f32 %v965
    %vm973 = vmor %vm971, %vm972
    %v974 = vsel %vm973, %v965, %v970
    %v975 = vrsqrt.pop %v964
    %v976 = vmul.f32 %v975, %v964
    %v977 = vmul.f32 %v976, %v975
    %v978 = vmul.f32 0.5, %v977
    %v979 = vsub.f32 1.5, %v978
    %v980 = vmul.f32 %v975, %v979
    %vm981 = vweird.f32 %v964
    %vm982 = vweird.f32 %v975
    %vm983 = vmor %vm981, %vm982
    %v984 = vsel %vm983, %v975, %v980
    %v985 = vmul.f32 %v961, %v974
    %v986 = vmul.f32 %v962, %v984
    %v988 = vperm.slane %v941, 0
    %v990 = vmul.f32 %v985, %v988
    %v991 = vmul.f32 %v986, %v988
    %v993 = vperm.slane %v942, 0
    %v995 = vadd.f32 %v990, %v993
    %v996 = vadd.f32 %v991, %v993
    %v997 = vld [vmem:[#allocation7] sm:$0xf]
    %v998 = vld [vmem:[#allocation7 + $0x4] sm:$0xf]
    %v999 = vld [vmem:[#allocation7 + $0x8] sm:$0xf]
    %v1000 = vld [vmem:[#allocation7 + $0xc] sm:$0xf]
    %v1001 = vld [vmem:[#allocation7 + $0x10] sm:$0xf]
    %v1002 = vld [vmem:[#allocation7 + $0x14] sm:$0xf]
    %v1003 = vld [vmem:[#allocation7 + $0x18] sm:$0xf]
    %v1004 = vld [vmem:[#allocation7 + $0x1c] sm:$0xf]
    %v1005 = vld [vmem:[#allocation7 + $0x20] sm:$0xf]
    %v1006 = vld [vmem:[#allocation7 + $0x24] sm:$0xf]
    %v1007 = vld [vmem:[#allocation7 + $0x28] sm:$0xf]
    %v1008 = vld [vmem:[#allocation7 + $0x2c] sm:$0xf]
    %v1009 = vld [vmem:[#allocation7 + $0x30] sm:$0xf]
    %v1010 = vld [vmem:[#allocation7 + $0x34] sm:$0xf]
    %v1011 = vld [vmem:[#allocation7 + $0x38] sm:$0xf]
    %v1012 = vld [vmem:[#allocation7 + $0x3c] sm:$0xf]
    %v1013 = vpack.c.bf16 %v996, %v995
    %v1014 = vld [vmem:[%s11] sm:$0x1]
    %v1016 = vperm.slane %v1014, 0
    %v1034 = vunpack.c.l.b16 %v997
    %v1035 = vunpack.c.l.b16 %v998
    %v1036 = vunpack.c.l.b16 %v999
    %v1037 = vunpack.c.l.b16 %v1000
    %v1038 = vunpack.c.l.b16 %v1001
    %v1039 = vunpack.c.l.b16 %v1002
    %v1040 = vunpack.c.l.b16 %v1003
    %v1041 = vunpack.c.l.b16 %v1004
    %v1042 = vunpack.c.l.b16 %v1005
    %v1043 = vunpack.c.l.b16 %v1006
    %v1044 = vunpack.c.l.b16 %v1007
    %v1045 = vunpack.c.l.b16 %v1008
    %v1046 = vunpack.c.l.b16 %v1009
    %v1047 = vunpack.c.l.b16 %v1010
    %v1048 = vunpack.c.l.b16 %v1011
    %v1049 = vunpack.c.l.b16 %v1012
    %v1050 = vpack.c.b16 %v1035, %v1034
    %v1051 = vpack.c.b16 %v1037, %v1036
    %v1052 = vpack.c.b16 %v1039, %v1038
    %v1053 = vpack.c.b16 %v1041, %v1040
    %v1054 = vpack.c.b16 %v1043, %v1042
    %v1055 = vpack.c.b16 %v1045, %v1044
    %v1056 = vpack.c.b16 %v1047, %v1046
    %v1057 = vpack.c.b16 %v1049, %v1048
    %1066 = vmatpush.bf16.msra.mxu0 %v1057
    %1067 = vmatpush.bf16.msra.mxu0 %v1056
    %1068 = vmatpush.bf16.msra.mxu0 %v1055
    %1069 = vmatpush.bf16.msra.mxu0 %v1054
    %1070 = vmatpush.bf16.msra.mxu0 %v1053
    %1071 = vmatpush.bf16.msra.mxu0 %v1052
    %1072 = vmatpush.bf16.msra.mxu0 %v1051
    %1073 = vmatpush.bf16.msra.mxu0 %v1050
    %1074 = vmatmul.bf16.gmra.mxu0 %v1013
    %v1075 = vpop.f32.mrf.mxu0
    %v1076 = vadd.f32 %v1016, %v1075
    %v1077 = vpop.f32.mrf.mxu0
    %v1078 = vadd.f32 %v1016, %v1077
    %1079 = vdwg.mxu0
    %v1080 = vmul.f32 %v1076, %v1076
    %v1081 = vmul.f32 %v1078, %v1078
    %v1082 = vmul.f32 %v1076, %v1080
    %v1083 = vmul.f32 %v1078, %v1081
    %v1084 = vmul.f32 %v1082, 0.044715
    %v1085 = vmul.f32 %v1083, 0.044715
    %v1086 = vadd.f32 %v1076, %v1084
    %v1087 = vadd.f32 %v1078, %v1085
    %v1088 = vmul.f32 %v1086, 0.7978846
    %v1089 = vmul.f32 %v1087, 0.7978846
    %v1090 = vtanh.pop %v1088
    %v1091 = vtanh.pop %v1089
    %v1092 = vadd.f32 %v1090, 1.0
    %v1093 = vadd.f32 %v1091, 1.0
    %v1094 = vmul.f32 %v1092, 0.5
    %v1095 = vmul.f32 %v1093, 0.5
    %v1096 = vmul.f32 %v1076, %v1094
    %v1097 = vmul.f32 %v1078, %v1095
    %v1098 = vld [vmem:[#allocation9] sm:$0xf]
    %v1099 = vld [vmem:[#allocation9 + $0x4] sm:$0xf]
    %v1100 = vld [vmem:[#allocation9 + $0x8] sm:$0xf]
    %v1101 = vld [vmem:[#allocation9 + $0xc] sm:$0xf]
    %v1102 = vld [vmem:[#allocation9 + $0x10] sm:$0xf]
    %v1103 = vld [vmem:[#allocation9 + $0x14] sm:$0xf]
    %v1104 = vld [vmem:[#allocation9 + $0x18] sm:$0xf]
    %v1105 = vld [vmem:[#allocation9 + $0x1c] sm:$0xf]
    %v1106 = vld [vmem:[#allocation9 + $0x20] sm:$0xf]
    %v1107 = vld [vmem:[#allocation9 + $0x24] sm:$0xf]
    %v1108 = vld [vmem:[#allocation9 + $0x28] sm:$0xf]
    %v1109 = vld [vmem:[#allocation9 + $0x2c] sm:$0xf]
    %v1110 = vld [vmem:[#allocation9 + $0x30] sm:$0xf]
    %v1111 = vld [vmem:[#allocation9 + $0x34] sm:$0xf]
    %v1112 = vld [vmem:[#allocation9 + $0x38] sm:$0xf]
    %v1113 = vld [vmem:[#allocation9 + $0x3c] sm:$0xf]
    %v1114 = vpack.c.bf16 %v1097, %v1096
    %v1115 = vld [vmem:[%s13] sm:$0x1]
    %v1117 = vperm.slane %v1115, 0
    %v1135 = vunpack.c.l.b16 %v1098
    %v1136 = vunpack.c.l.b16 %v1099
    %v1137 = vunpack.c.l.b16 %v1100
    %v1138 = vunpack.c.l.b16 %v1101
    %v1139 = vunpack.c.l.b16 %v1102
    %v1140 = vunpack.c.l.b16 %v1103
    %v1141 = vunpack.c.l.b16 %v1104
    %v1142 = vunpack.c.l.b16 %v1105
    %v1143 = vunpack.c.l.b16 %v1106
    %v1144 = vunpack.c.l.b16 %v1107
    %v1145 = vunpack.c.l.b16 %v1108
    %v1146 = vunpack.c.l.b16 %v1109
    %v1147 = vunpack.c.l.b16 %v1110
    %v1148 = vunpack.c.l.b16 %v1111
    %v1149 = vunpack.c.l.b16 %v1112
    %v1150 = vunpack.c.l.b16 %v1113
    %v1151 = vpack.c.b16 %v1136, %v1135
    %v1152 = vpack.c.b16 %v1138, %v1137
    %v1153 = vpack.c.b16 %v1140, %v1139
    %v1154 = vpack.c.b16 %v1142, %v1141
    %v1155 = vpack.c.b16 %v1144, %v1143
    %v1156 = vpack.c.b16 %v1146, %v1145
    %v1157 = vpack.c.b16 %v1148, %v1147
    %v1158 = vpack.c.b16 %v1150, %v1149
    %1167 = vmatpush.bf16.msra.mxu0 %v1158
    %1168 = vmatpush.bf16.msra.mxu0 %v1157
    %1169 = vmatpush.bf16.msra.mxu0 %v1156
    %1170 = vmatpush.bf16.msra.mxu0 %v1155
    %1171 = vmatpush.bf16.msra.mxu0 %v1154
    %1172 = vmatpush.bf16.msra.mxu0 %v1153
    %1173 = vmatpush.bf16.msra.mxu0 %v1152
    %1174 = vmatpush.bf16.msra.mxu0 %v1151
    %1175 = vmatmul.bf16.gmra.mxu0 %v1114
    %v1176 = vpop.f32.mrf.mxu0
    %v1177 = vadd.f32 %v1117, %v1176
    %v1178 = vpop.f32.mrf.mxu0
    %v1179 = vadd.f32 %v1117, %v1178
    %1180 = vdwg.mxu0
    %v1181 = vadd.f32 %v1177, %v995
    %v1182 = vadd.f32 %v1179, %v996
    %v1183 = vld [vmem:[%s14] sm:$0x1]
    %v1184 = vld [vmem:[%s15] sm:$0x1]
    %1185 = vadd.xlane.f32.xlu0 %v1181
    %v1186 = vpop.xlane.xlu0 %1185
    %1187 = vadd.xlane.f32.xlu0 %v1182
    %v1188 = vpop.xlane.xlu0 %1187
    %v1189 = vmul.f32 %v1186, 0.015625
    %v1190 = vmul.f32 %v1188, 0.015625
    %v1191 = vmul.f32 %v1181, %v1181
    %v1192 = vmul.f32 %v1182, %v1182
    %1193 = vadd.xlane.f32.xlu0 %v1191
    %v1194 = vpop.xlane.xlu0 %1193
    %1195 = vadd.xlane.f32.xlu0 %v1192
    %v1196 = vpop.xlane.xlu0 %1195
    %v1197 = vmul.f32 %v1194, 0.015625
    %v1198 = vmul.f32 %v1196, 0.015625
    %v1199 = vmul.f32 %v1189, %v1189
    %v1200 = vmul.f32 %v1190, %v1190
    %v1201 = vsub.f32 %v1197, %v1199
    %v1202 = vsub.f32 %v1198, %v1200
    %v1203 = vsub.f32 %v1181, %v1189
    %v1204 = vsub.f32 %v1182, %v1190
    %v1205 = vadd.f32 %v1201, 1e-12
    %v1206 = vadd.f32 %v1202, 1e-12
    %v1207 = vrsqrt.pop %v1205
    %v1208 = vmul.f32 %v1207, %v1205
    %v1209 = vmul.f32 %v1208, %v1207
    %v1210 = vmul.f32 0.5, %v1209
    %v1211 = vsub.f32 1.5, %v1210
    %v1212 = vmul.f32 %v1207, %v1211
    %vm1213 = vweird.f32 %v1205
    %vm1214 = vweird.f32 %v1207
    %vm1215 = vmor %vm1213, %vm1214
    %v1216 = vsel %vm1215, %v1207, %v1212
    %v1217 = vrsqrt.pop %v1206
    %v1218 = vmul.f32 %v1217, %v1206
    %v1219 = vmul.f32 %v1218, %v1217
    %v1220 = vmul.f32 0.5, %v1219
    %v1221 = vsub.f32 1.5, %v1220
    %v1222 = vmul.f32 %v1217, %v1221
    %vm1223 = vweird.f32 %v1206
    %vm1224 = vweird.f32 %v1217
    %vm1225 = vmor %vm1223, %vm1224
    %v1226 = vsel %vm1225, %v1217, %v1222
    %v1227 = vmul.f32 %v1203, %v1216
    %v1228 = vmul.f32 %v1204, %v1226
    %v1230 = vperm.slane %v1183, 0
    %v1232 = vmul.f32 %v1227, %v1230
    %v1233 = vmul.f32 %v1228, %v1230
    %v1235 = vperm.slane %v1184, 0
    %v1237 = vadd.f32 %v1232, %v1235
    %v1238 = vadd.f32 %v1233, %v1235
    %s1239 = scalar_lea.vmem [#allocation4], 192
    %v1240 = vld [vmem:[%s1239] sm:$0xff]
    %v1241 = vld [vmem:[%s1239 + $0x8] sm:$0xf]
    %v1242 = vld [vmem:[%s1239 + $0xc] sm:$0xff]
    %v1243 = vld [vmem:[%s1239 + $0x14] sm:$0xf]
    %v1244 = vld [vmem:[%s1239 + $0x18] sm:$0xff]
    %v1245 = vld [vmem:[%s1239 + $0x20] sm:$0xf]
    %v1246 = vld [vmem:[%s1239 + $0x24] sm:$0xff]
    %v1247 = vld [vmem:[%s1239 + $0x2c] sm:$0xf]
    %v1248 = vld [vmem:[%s1239 + $0x30] sm:$0xff]
    %v1249 = vld [vmem:[%s1239 + $0x38] sm:$0xf]
    %v1250 = vld [vmem:[%s1239 + $0x3c] sm:$0xff]
    %v1251 = vld [vmem:[%s1239 + $0x44] sm:$0xf]
    %v1252 = vld [vmem:[%s1239 + $0x48] sm:$0xff]
    %v1253 = vld [vmem:[%s1239 + $0x50] sm:$0xf]
    %v1254 = vld [vmem:[%s1239 + $0x54] sm:$0xff]
    %v1255 = vld [vmem:[%s1239 + $0x5c] sm:$0xf]
    %v1256 = vld [vmem:[%s1239 + $0x60] sm:$0xff]
    %v1257 = vld [vmem:[%s1239 + $0x68] sm:$0xf]
    %v1258 = vld [vmem:[%s1239 + $0x6c] sm:$0xff]
    %v1259 = vld [vmem:[%s1239 + $0x74] sm:$0xf]
    %v1260 = vld [vmem:[%s1239 + $0x78] sm:$0xff]
    %v1261 = vld [vmem:[%s1239 + $0x80] sm:$0xf]
    %v1262 = vld [vmem:[%s1239 + $0x84] sm:$0xff]
    %v1263 = vld [vmem:[%s1239 + $0x8c] sm:$0xf]
    %v1264 = vld [vmem:[%s1239 + $0x90] sm:$0xff]
    %v1265 = vld [vmem:[%s1239 + $0x98] sm:$0xf]
    %v1266 = vld [vmem:[%s1239 + $0x9c] sm:$0xff]
    %v1267 = vld [vmem:[%s1239 + $0xa4] sm:$0xf]
    %v1268 = vld [vmem:[%s1239 + $0xa8] sm:$0xff]
    %v1269 = vld [vmem:[%s1239 + $0xb0] sm:$0xf]
    %v1270 = vld [vmem:[%s1239 + $0xb4] sm:$0xff]
    %v1271 = vld [vmem:[%s1239 + $0xbc] sm:$0xf]
    %s1272 = scalar_lea.vmem %s6, 64
    %v1273 = vld [vmem:[%s1272] sm:$0xf]
    %v1274 = vld [vmem:[%s1272 + $0x4] sm:$0xf]
    %v1275 = vld [vmem:[%s1272 + $0x8] sm:$0xf]
    %v1276 = vld [vmem:[%s1272 + $0xc] sm:$0xf]
    %v1277 = vld [vmem:[%s1272 + $0x10] sm:$0xf]
    %v1278 = vld [vmem:[%s1272 + $0x14] sm:$0xf]
    %v1279 = vld [vmem:[%s1272 + $0x18] sm:$0xf]
    %v1280 = vld [vmem:[%s1272 + $0x1c] sm:$0xf]
    %v1281 = vld [vmem:[%s1272 + $0x20] sm:$0xf]
    %v1282 = vld [vmem:[%s1272 + $0x24] sm:$0xf]
    %v1283 = vld [vmem:[%s1272 + $0x28] sm:$0xf]
    %v1284 = vld [vmem:[%s1272 + $0x2c] sm:$0xf]
    %v1285 = vld [vmem:[%s1272 + $0x30] sm:$0xf]
    %v1286 = vld [vmem:[%s1272 + $0x34] sm:$0xf]
    %v1287 = vld [vmem:[%s1272 + $0x38] sm:$0xf]
    %v1288 = vld [vmem:[%s1272 + $0x3c] sm:$0xf]
    %v1289 = vpack.c.bf16 %v1238, %v1237
    %s1290 = scalar_lea.vmem %s5, 3
    %v1291 = vld [vmem:[%s1290] sm:$0x7]
    %v1293 = vperm.slane %v1291, 0
    %v1294 = vperm.slane %v1291, 1
    %v1295 = vperm.slane %v1291, 2
    %v1331 = vunpack.c.l.b16 %v1240
    %v1332 = vunpack.c.h.b16 %v1240
    %v1333 = vunpack.c.l.b16 %v1241
    %v1334 = vunpack.c.l.b16 %v1242
    %v1335 = vunpack.c.h.b16 %v1242
    %v1336 = vunpack.c.l.b16 %v1243
    %v1337 = vunpack.c.l.b16 %v1244
    %v1338 = vunpack.c.h.b16 %v1244
    %v1339 = vunpack.c.l.b16 %v1245
    %v1340 = vunpack.c.l.b16 %v1246
    %v1341 = vunpack.c.h.b16 %v1246
    %v1342 = vunpack.c.l.b16 %v1247
    %v1343 = vunpack.c.l.b16 %v1248
    %v1344 = vunpack.c.h.b16 %v1248
    %v1345 = vunpack.c.l.b16 %v1249
    %v1346 = vunpack.c.l.b16 %v1250
    %v1347 = vunpack.c.h.b16 %v1250
    %v1348 = vunpack.c.l.b16 %v1251
    %v1349 = vunpack.c.l.b16 %v1252
    %v1350 = vunpack.c.h.b16 %v1252
    %v1351 = vunpack.c.l.b16 %v1253
    %v1352 = vunpack.c.l.b16 %v1254
    %v1353 = vunpack.c.h.b16 %v1254
    %v1354 = vunpack.c.l.b16 %v1255
    %v1355 = vunpack.c.l.b16 %v1256
    %v1356 = vunpack.c.h.b16 %v1256
    %v1357 = vunpack.c.l.b16 %v1257
    %v1358 = vunpack.c.l.b16 %v1258
    %v1359 = vunpack.c.h.b16 %v1258
    %v1360 = vunpack.c.l.b16 %v1259
    %v1361 = vunpack.c.l.b16 %v1260
    %v1362 = vunpack.c.h.b16 %v1260
    %v1363 = vunpack.c.l.b16 %v1261
    %v1364 = vunpack.c.l.b16 %v1262
    %v1365 = vunpack.c.h.b16 %v1262
    %v1366 = vunpack.c.l.b16 %v1263
    %v1367 = vunpack.c.l.b16 %v1264
    %v1368 = vunpack.c.h.b16 %v1264
    %v1369 = vunpack.c.l.b16 %v1265
    %v1370 = vunpack.c.l.b16 %v1266
    %v1371 = vunpack.c.h.b16 %v1266
    %v1372 = vunpack.c.l.b16 %v1267
    %v1373 = vunpack.c.l.b16 %v1268
    %v1374 = vunpack.c.h.b16 %v1268
    %v1375 = vunpack.c.l.b16 %v1269
    %v1376 = vunpack.c.l.b16 %v1270
    %v1377 = vunpack.c.h.b16 %v1270
    %v1378 = vunpack.c.l.b16 %v1271
    %v1379 = vpack.c.b16 %v1334, %v1331
    %v1380 = vpack.c.b16 %v1335, %v1332
    %v1381 = vpack.c.b16 %v1336, %v1333
    %v1382 = vpack.c.b16 %v1340, %v1337
    %v1383 = vpack.c.b16 %v1341, %v1338
    %v1384 = vpack.c.b16 %v1342, %v1339
    %v1385 = vpack.c.b16 %v1346, %v1343
    %v1386 = vpack.c.b16 %v1347, %v1344
    %v1387 = vpack.c.b16 %v1348, %v1345
    %v1388 = vpack.c.b16 %v1352, %v1349
    %v1389 = vpack.c.b16 %v1353, %v1350
    %v1390 = vpack.c.b16 %v1354, %v1351
    %v1391 = vpack.c.b16 %v1358, %v1355
    %v1392 = vpack.c.b16 %v1359, %v1356
    %v1393 = vpack.c.b16 %v1360, %v1357
    %v1394 = vpack.c.b16 %v1364, %v1361
    %v1395 = vpack.c.b16 %v1365, %v1362
    %v1396 = vpack.c.b16 %v1366, %v1363
    %v1397 = vpack.c.b16 %v1370, %v1367
    %v1398 = vpack.c.b16 %v1371, %v1368
    %v1399 = vpack.c.b16 %v1372, %v1369
    %v1400 = vpack.c.b16 %v1376, %v1373
    %v1401 = vpack.c.b16 %v1377, %v1374
    %v1402 = vpack.c.b16 %v1378, %v1375
    %1427 = vmatpush.bf16.msra.mxu0 %v1400
    %1428 = vmatpush.bf16.msra.mxu0 %v1397
    %1429 = vmatpush.bf16.msra.mxu0 %v1394
    %1430 = vmatpush.bf16.msra.mxu0 %v1391
    %1431 = vmatpush.bf16.msra.mxu0 %v1388
    %1432 = vmatpush.bf16.msra.mxu0 %v1385
    %1433 = vmatpush.bf16.msra.mxu0 %v1382
    %1434 = vmatpush.bf16.msra.mxu0 %v1379
    %1435 = vmatmul.bf16.gmra.mxu0 %v1289
    %v1436 = vpop.f32.mrf.mxu0
    %v1437 = vadd.f32 %v1293, %v1436
    %v1438 = vpop.f32.mrf.mxu0
    %v1439 = vadd.f32 %v1293, %v1438
    %1440 = vdwg.mxu0
    %1441 = vmatpush.bf16.msra.mxu0 %v1401
    %1442 = vmatpush.bf16.msra.mxu0 %v1398
    %1443 = vmatpush.bf16.msra.mxu0 %v1395
    %1444 = vmatpush.bf16.msra.mxu0 %v1392
    %1445 = vmatpush.bf16.msra.mxu0 %v1389
    %1446 = vmatpush.bf16.msra.mxu0 %v1386
    %1447 = vmatpush.bf16.msra.mxu0 %v1383
    %1448 = vmatpush.bf16.msra.mxu0 %v1380
    %1449 = vmatmul.bf16.gmra.mxu0 %v1289
    %v1450 = vpop.f32.mrf.mxu0
    %v1451 = vadd.f32 %v1294, %v1450
    %v1452 = vpop.f32.mrf.mxu0
    %v1453 = vadd.f32 %v1294, %v1452
    %1454 = vdwg.mxu0
    %1455 = vmatpush.bf16.msra.mxu0 %v1402
    %1456 = vmatpush.bf16.msra.mxu0 %v1399
    %1457 = vmatpush.bf16.msra.mxu0 %v1396
    %1458 = vmatpush.bf16.msra.mxu0 %v1393
    %1459 = vmatpush.bf16.msra.mxu0 %v1390
    %1460 = vmatpush.bf16.msra.mxu0 %v1387
    %1461 = vmatpush.bf16.msra.mxu0 %v1384
    %1462 = vmatpush.bf16.msra.mxu0 %v1381
    %1463 = vmatmul.bf16.gmra.mxu0 %v1289
    %v1464 = vpop.f32.mrf.mxu0
    %v1465 = vadd.f32 %v1295, %v1464
    %v1466 = vpop.f32.mrf.mxu0
    %v1467 = vadd.f32 %v1295, %v1466
    %1468 = vdwg.mxu0
    %v1470 = vsel %vm431, %v1437, 0
    %v1473 = vsel %vm431, %v1439, 0
    %v1476 = vsel %vm431, %v1451, 0
    %v1479 = vsel %vm431, %v1453, 0
    %1481 = vmatpush.xpose.msra.mxu0 0.0
    %1482 = vmatpush.xpose.msra.mxu0 0.0
    %1483 = vmatpush.xpose.msra.mxu0 0.0
    %1484 = vmatpush.xpose.msra.mxu0 0.0
    %1485 = vmatpush.xpose.msra.mxu0 0.0
    %1486 = vmatpush.xpose.msra.mxu0 0.0
    %1487 = vmatpush.xpose.msra.mxu0 0.0
    %1488 = vmatpush.xpose.msra.mxu0 0.0
    %1489 = vmatpush.xpose.msra.mxu0 0.0
    %1490 = vmatpush.xpose.msra.mxu0 0.0
    %1491 = vmatpush.xpose.msra.mxu0 0.0
    %1492 = vmatpush.xpose.msra.mxu0 0.0
    %1493 = vmatpush.xpose.msra.mxu0 0.0
    %1494 = vmatpush.xpose.msra.mxu0 0.0
    %1495 = vmatpush.xpose.msra.mxu0 %v1479
    %1496 = vmatpush.xpose.msra.mxu0 %v1476
    %1497 = vmatmul.f32.gmra.mxu0 %v1470
    %v1498 = vpop.f32.mrf.mxu0
    %v1499 = vadd.f32 %v202, %v1498
    %1500 = vmatmul.f32.gmra.mxu0 %v1473
    %v1501 = vpop.f32.mrf.mxu0
    %v1502 = vadd.f32 %v203, %v1501
    %1503 = vdwg.mxu0
    %v1504 = vsel %vm467, %v1499, -inf
    %1505 = vmax.xlane.f32.xlu0 %v1504
    %v1506 = vpop.xlane.xlu0 %1505
    %v1507 = vsel %vm467, %v1502, -inf
    %1508 = vmax.xlane.f32.xlu0 %v1507
    %v1509 = vpop.xlane.xlu0 %1508
    %v1510 = vsub.f32 %v1499, %v1506
    %v1511 = vsub.f32 %v1502, %v1509
    %v1512 = vmul.f32 %v1510, 1.442695
    %v1513 = vpow.pop %v1512
    %v1514 = vmul.f32 %v1511, 1.442695
    %v1515 = vpow.pop %v1514
    %v1516 = vsel %vm467, %v1513, 0.0
    %1517 = vadd.xlane.f32.xlu0 %v1516
    %v1518 = vpop.xlane.xlu0 %1517
    %v1519 = vsel %vm467, %v1515, 0.0
    %1520 = vadd.xlane.f32.xlu0 %v1519
    %v1521 = vpop.xlane.xlu0 %1520
    %v1522 = vrcp.pop %v1518
    %v1523 = vrcp.pop %v1521
    %v1524 = vmul.f32 %v1513, %v1522
    %v1525 = vmul.f32 %v1515, %v1523
    %v1527 = vsel %vm467, %v1524, 0
    %v1530 = vsel %vm467, %v1525, 0
    %1532 = vmatpush.msra.mxu0 0.0
    %1533 = vmatpush.msra.mxu0 0.0
    %1534 = vmatpush.msra.mxu0 0.0
    %1535 = vmatpush.msra.mxu0 0.0
    %1536 = vmatpush.msra.mxu0 0.0
    %1537 = vmatpush.msra.mxu0 0.0
    %1538 = vmatpush.msra.mxu0 0.0
    %1539 = vmatpush.msra.mxu0 0.0
    %1540 = vmatpush.msra.mxu0 0.0
    %1541 = vmatpush.msra.mxu0 0.0
    %1542 = vmatpush.msra.mxu0 0.0
    %1543 = vmatpush.msra.mxu0 0.0
    %1544 = vmatpush.msra.mxu0 0.0
    %1545 = vmatpush.msra.mxu0 0.0
    %1546 = vmatpush.msra.mxu0 %v1467
    %1547 = vmatpush.msra.mxu0 %v1465
    %1548 = vmatmul.f32.gmra.mxu0 %v1527
    %v1549 = vpop.f32.mrf.mxu0
    %v1550 = vadd.f32 0.0, %v1549
    %1551 = vmatmul.f32.gmra.mxu0 %v1530
    %v1552 = vpop.f32.mrf.mxu0
    %v1553 = vadd.f32 0.0, %v1552
    %1554 = vdwg.mxu0
    %v1555 = vpack.c.bf16 %v1553, %v1550
    %1556 = vrot.lane.b32.xlu0 %v1437, 96
    %v1557 = vpop.permute.xlu0 %1556
    %1558 = vrot.lane.b32.xlu0 %v1439, 96
    %v1559 = vpop.permute.xlu0 %1558
    %1560 = vrot.lane.b32.xlu0 %v1451, 96
    %v1561 = vpop.permute.xlu0 %1560
    %1562 = vrot.lane.b32.xlu0 %v1453, 96
    %v1563 = vpop.permute.xlu0 %1562
    %v1564 = vsel %vm431, %v1557, 0
    %v1566 = vsel %vm431, %v1559, 0
    %v1568 = vsel %vm431, %v1561, 0
    %v1570 = vsel %vm431, %v1563, 0
    %1572 = vmatpush.xpose.msra.mxu0 0.0
    %1573 = vmatpush.xpose.msra.mxu0 0.0
    %1574 = vmatpush.xpose.msra.mxu0 0.0
    %1575 = vmatpush.xpose.msra.mxu0 0.0
    %1576 = vmatpush.xpose.msra.mxu0 0.0
    %1577 = vmatpush.xpose.msra.mxu0 0.0
    %1578 = vmatpush.xpose.msra.mxu0 0.0
    %1579 = vmatpush.xpose.msra.mxu0 0.0
    %1580 = vmatpush.xpose.msra.mxu0 0.0
    %1581 = vmatpush.xpose.msra.mxu0 0.0
    %1582 = vmatpush.xpose.msra.mxu0 0.0
    %1583 = vmatpush.xpose.msra.mxu0 0.0
    %1584 = vmatpush.xpose.msra.mxu0 0.0
    %1585 = vmatpush.xpose.msra.mxu0 0.0
    %1586 = vmatpush.xpose.msra.mxu0 %v1570
    %1587 = vmatpush.xpose.msra.mxu0 %v1568
    %1588 = vmatmul.f32.gmra.mxu0 %v1564
    %v1589 = vpop.f32.mrf.mxu0
    %v1590 = vadd.f32 %v202, %v1589
    %1591 = vmatmul.f32.gmra.mxu0 %v1566
    %v1592 = vpop.f32.mrf.mxu0
    %v1593 = vadd.f32 %v203, %v1592
    %1594 = vdwg.mxu0
    %v1595 = vsel %vm467, %v1590, -inf
    %1596 = vmax.xlane.f32.xlu0 %v1595
    %v1597 = vpop.xlane.xlu0 %1596
    %v1598 = vsel %vm467, %v1593, -inf
    %1599 = vmax.xlane.f32.xlu0 %v1598
    %v1600 = vpop.xlane.xlu0 %1599
    %v1601 = vsub.f32 %v1590, %v1597
    %v1602 = vsub.f32 %v1593, %v1600
    %v1603 = vmul.f32 %v1601, 1.442695
    %v1604 = vpow.pop %v1603
    %v1605 = vmul.f32 %v1602, 1.442695
    %v1606 = vpow.pop %v1605
    %v1607 = vsel %vm467, %v1604, 0.0
    %1608 = vadd.xlane.f32.xlu0 %v1607
    %v1609 = vpop.xlane.xlu0 %1608
    %v1610 = vsel %vm467, %v1606, 0.0
    %1611 = vadd.xlane.f32.xlu0 %v1610
    %v1612 = vpop.xlane.xlu0 %1611
    %v1613 = vrcp.pop %v1609
    %v1614 = vrcp.pop %v1612
    %v1615 = vmul.f32 %v1604, %v1613
    %v1616 = vmul.f32 %v1606, %v1614
    %1619 = vrot.lane.b32.xlu0 %v1465, 96
    %v1620 = vpop.permute.xlu0 %1619
    %1621 = vrot.lane.b32.xlu0 %v1467, 96
    %v1622 = vpop.permute.xlu0 %1621
    %v1626 = vsel %vm467, %v1615, 0
    %v1629 = vsel %vm467, %v1616, 0
    %1631 = vmatpush.msra.mxu0 0.0
    %1632 = vmatpush.msra.mxu0 0.0
    %1633 = vmatpush.msra.mxu0 0.0
    %1634 = vmatpush.msra.mxu0 0.0
    %1635 = vmatpush.msra.mxu0 0.0
    %1636 = vmatpush.msra.mxu0 0.0
    %1637 = vmatpush.msra.mxu0 0.0
    %1638 = vmatpush.msra.mxu0 0.0
    %1639 = vmatpush.msra.mxu0 0.0
    %1640 = vmatpush.msra.mxu0 0.0
    %1641 = vmatpush.msra.mxu0 0.0
    %1642 = vmatpush.msra.mxu0 0.0
    %1643 = vmatpush.msra.mxu0 0.0
    %1644 = vmatpush.msra.mxu0 0.0
    %1645 = vmatpush.msra.mxu0 %v1622
    %1646 = vmatpush.msra.mxu0 %v1620
    %1647 = vmatmul.f32.gmra.mxu0 %v1626
    %v1648 = vpop.f32.mrf.mxu0
    %v1649 = vadd.f32 0.0, %v1648
    %1650 = vmatmul.f32.gmra.mxu0 %v1629
    %v1651 = vpop.f32.mrf.mxu0
    %v1652 = vadd.f32 0.0, %v1651
    %1653 = vdwg.mxu0
    %v1654 = vpack.c.bf16 %v1652, %v1649
    %v1659 = vunpack.c.l.b16 %v1277
    %v1660 = vunpack.c.l.b16 %v1278
    %v1661 = vunpack.c.l.b16 %v1279
    %v1662 = vunpack.c.l.b16 %v1280
    %v1663 = vpack.c.b16 %v1660, %v1659
    %v1664 = vpack.c.b16 %v1662, %v1661
    %v1668 = vsel %vm431, %v1654, 0
    %1670 = vmatpush.bf16.msra.mxu0 0
    %1671 = vmatpush.bf16.msra.mxu0 0
    %1672 = vmatpush.bf16.msra.mxu0 0
    %1673 = vmatpush.bf16.msra.mxu0 0
    %1674 = vmatpush.bf16.msra.mxu0 0
    %1675 = vmatpush.bf16.msra.mxu0 0
    %1676 = vmatpush.bf16.msra.mxu0 %v1664
    %1677 = vmatpush.bf16.msra.mxu0 %v1663
    %1678 = vmatmul.bf16.gmra.mxu0 %v1668
    %v1679 = vpop.f32.mrf.mxu0
    %v1680 = vadd.f32 0.0, %v1679
    %v1681 = vpop.f32.mrf.mxu0
    %v1682 = vadd.f32 0.0, %v1681
    %1683 = vdwg.mxu0
    %v1688 = vunpack.c.l.b16 %v1273
    %v1689 = vunpack.c.l.b16 %v1274
    %v1690 = vunpack.c.l.b16 %v1275
    %v1691 = vunpack.c.l.b16 %v1276
    %v1692 = vpack.c.b16 %v1689, %v1688
    %v1693 = vpack.c.b16 %v1691, %v1690
    %v1697 = vsel %vm431, %v1555, 0
    %1699 = vmatpush.bf16.msra.mxu0 0
    %1700 = vmatpush.bf16.msra.mxu0 0
    %1701 = vmatpush.bf16.msra.mxu0 0
    %1702 = vmatpush.bf16.msra.mxu0 0
    %1703 = vmatpush.bf16.msra.mxu0 0
    %1704 = vmatpush.bf16.msra.mxu0 0
    %1705 = vmatpush.bf16.msra.mxu0 %v1693
    %1706 = vmatpush.bf16.msra.mxu0 %v1692
    %1707 = vmatmul.bf16.gmra.mxu0 %v1697
    %v1708 = vpop.f32.mrf.mxu0
    %v1709 = vadd.f32 %v1680, %v1708
    %v1710 = vpop.f32.mrf.mxu0
    %v1711 = vadd.f32 %v1682, %v1710
    %1712 = vdwg.mxu0
    %1713 = vrot.lane.b32.xlu0 %v1437, 64
    %v1714 = vpop.permute.xlu0 %1713
    %1715 = vrot.lane.b32.xlu0 %v1439, 64
    %v1716 = vpop.permute.xlu0 %1715
    %1717 = vrot.lane.b32.xlu0 %v1451, 64
    %v1718 = vpop.permute.xlu0 %1717
    %1719 = vrot.lane.b32.xlu0 %v1453, 64
    %v1720 = vpop.permute.xlu0 %1719
    %v1721 = vsel %vm431, %v1714, 0
    %v1723 = vsel %vm431, %v1716, 0
    %v1725 = vsel %vm431, %v1718, 0
    %v1727 = vsel %vm431, %v1720, 0
    %1729 = vmatpush.xpose.msra.mxu0 0.0
    %1730 = vmatpush.xpose.msra.mxu0 0.0
    %1731 = vmatpush.xpose.msra.mxu0 0.0
    %1732 = vmatpush.xpose.msra.mxu0 0.0
    %1733 = vmatpush.xpose.msra.mxu0 0.0
    %1734 = vmatpush.xpose.msra.mxu0 0.0
    %1735 = vmatpush.xpose.msra.mxu0 0.0
    %1736 = vmatpush.xpose.msra.mxu0 0.0
    %1737 = vmatpush.xpose.msra.mxu0 0.0
    %1738 = vmatpush.xpose.msra.mxu0 0.0
    %1739 = vmatpush.xpose.msra.mxu0 0.0
    %1740 = vmatpush.xpose.msra.mxu0 0.0
    %1741 = vmatpush.xpose.msra.mxu0 0.0
    %1742 = vmatpush.xpose.msra.mxu0 0.0
    %1743 = vmatpush.xpose.msra.mxu0 %v1727
    %1744 = vmatpush.xpose.msra.mxu0 %v1725
    %1745 = vmatmul.f32.gmra.mxu0 %v1721
    %v1746 = vpop.f32.mrf.mxu0
    %v1747 = vadd.f32 %v202, %v1746
    %1748 = vmatmul.f32.gmra.mxu0 %v1723
    %v1749 = vpop.f32.mrf.mxu0
    %v1750 = vadd.f32 %v203, %v1749
    %1751 = vdwg.mxu0
    %v1752 = vsel %vm467, %v1747, -inf
    %1753 = vmax.xlane.f32.xlu0 %v1752
    %v1754 = vpop.xlane.xlu0 %1753
    %v1755 = vsel %vm467, %v1750, -inf
    %1756 = vmax.xlane.f32.xlu0 %v1755
    %v1757 = vpop.xlane.xlu0 %1756
    %v1758 = vsub.f32 %v1747, %v1754
    %v1759 = vsub.f32 %v1750, %v1757
    %v1760 = vmul.f32 %v1758, 1.442695
    %v1761 = vpow.pop %v1760
    %v1762 = vmul.f32 %v1759, 1.442695
    %v1763 = vpow.pop %v1762
    %v1764 = vsel %vm467, %v1761, 0.0
    %1765 = vadd.xlane.f32.xlu0 %v1764
    %v1766 = vpop.xlane.xlu0 %1765
    %v1767 = vsel %vm467, %v1763, 0.0
    %1768 = vadd.xlane.f32.xlu0 %v1767
    %v1769 = vpop.xlane.xlu0 %1768
    %v1770 = vrcp.pop %v1766
    %v1771 = vrcp.pop %v1769
    %v1772 = vmul.f32 %v1761, %v1770
    %v1773 = vmul.f32 %v1763, %v1771
    %1774 = vrot.lane.b32.xlu0 %v1465, 64
    %v1775 = vpop.permute.xlu0 %1774
    %1776 = vrot.lane.b32.xlu0 %v1467, 64
    %v1777 = vpop.permute.xlu0 %1776
    %v1781 = vsel %vm467, %v1772, 0
    %v1784 = vsel %vm467, %v1773, 0
    %1786 = vmatpush.msra.mxu0 0.0
    %1787 = vmatpush.msra.mxu0 0.0
    %1788 = vmatpush.msra.mxu0 0.0
    %1789 = vmatpush.msra.mxu0 0.0
    %1790 = vmatpush.msra.mxu0 0.0
    %1791 = vmatpush.msra.mxu0 0.0
    %1792 = vmatpush.msra.mxu0 0.0
    %1793 = vmatpush.msra.mxu0 0.0
    %1794 = vmatpush.msra.mxu0 0.0
    %1795 = vmatpush.msra.mxu0 0.0
    %1796 = vmatpush.msra.mxu0 0.0
    %1797 = vmatpush.msra.mxu0 0.0
    %1798 = vmatpush.msra.mxu0 0.0
    %1799 = vmatpush.msra.mxu0 0.0
    %1800 = vmatpush.msra.mxu0 %v1777
    %1801 = vmatpush.msra.mxu0 %v1775
    %1802 = vmatmul.f32.gmra.mxu0 %v1781
    %v1803 = vpop.f32.mrf.mxu0
    %v1804 = vadd.f32 0.0, %v1803
    %1805 = vmatmul.f32.gmra.mxu0 %v1784
    %v1806 = vpop.f32.mrf.mxu0
    %v1807 = vadd.f32 0.0, %v1806
    %1808 = vdwg.mxu0
    %v1809 = vpack.c.bf16 %v1807, %v1804
    %v1814 = vunpack.c.l.b16 %v1281
    %v1815 = vunpack.c.l.b16 %v1282
    %v1816 = vunpack.c.l.b16 %v1283
    %v1817 = vunpack.c.l.b16 %v1284
    %v1818 = vpack.c.b16 %v1815, %v1814
    %v1819 = vpack.c.b16 %v1817, %v1816
    %v1823 = vsel %vm431, %v1809, 0
    %1825 = vmatpush.bf16.msra.mxu0 0
    %1826 = vmatpush.bf16.msra.mxu0 0
    %1827 = vmatpush.bf16.msra.mxu0 0
    %1828 = vmatpush.bf16.msra.mxu0 0
    %1829 = vmatpush.bf16.msra.mxu0 0
    %1830 = vmatpush.bf16.msra.mxu0 0
    %1831 = vmatpush.bf16.msra.mxu0 %v1819
    %1832 = vmatpush.bf16.msra.mxu0 %v1818
    %1833 = vmatmul.bf16.gmra.mxu0 %v1823
    %v1834 = vpop.f32.mrf.mxu0
    %v1835 = vadd.f32 0.0, %v1834
    %v1836 = vpop.f32.mrf.mxu0
    %v1837 = vadd.f32 0.0, %v1836
    %1838 = vdwg.mxu0
    %v1839 = vadd.f32 %v1709, %v1835
    %v1840 = vadd.f32 %v1711, %v1837
    %1841 = vrot.lane.b32.xlu0 %v1437, 32
    %v1842 = vpop.permute.xlu0 %1841
    %1843 = vrot.lane.b32.xlu0 %v1439, 32
    %v1844 = vpop.permute.xlu0 %1843
    %1845 = vrot.lane.b32.xlu0 %v1451, 32
    %v1846 = vpop.permute.xlu0 %1845
    %1847 = vrot.lane.b32.xlu0 %v1453, 32
    %v1848 = vpop.permute.xlu0 %1847
    %v1849 = vsel %vm431, %v1842, 0
    %v1851 = vsel %vm431, %v1844, 0
    %v1853 = vsel %vm431, %v1846, 0
    %v1855 = vsel %vm431, %v1848, 0
    %1857 = vmatpush.xpose.msra.mxu0 0.0
    %1858 = vmatpush.xpose.msra.mxu0 0.0
    %1859 = vmatpush.xpose.msra.mxu0 0.0
    %1860 = vmatpush.xpose.msra.mxu0 0.0
    %1861 = vmatpush.xpose.msra.mxu0 0.0
    %1862 = vmatpush.xpose.msra.mxu0 0.0
    %1863 = vmatpush.xpose.msra.mxu0 0.0
    %1864 = vmatpush.xpose.msra.mxu0 0.0
    %1865 = vmatpush.xpose.msra.mxu0 0.0
    %1866 = vmatpush.xpose.msra.mxu0 0.0
    %1867 = vmatpush.xpose.msra.mxu0 0.0
    %1868 = vmatpush.xpose.msra.mxu0 0.0
    %1869 = vmatpush.xpose.msra.mxu0 0.0
    %1870 = vmatpush.xpose.msra.mxu0 0.0
    %1871 = vmatpush.xpose.msra.mxu0 %v1855
    %1872 = vmatpush.xpose.msra.mxu0 %v1853
    %1873 = vmatmul.f32.gmra.mxu0 %v1849
    %v1874 = vpop.f32.mrf.mxu0
    %v1875 = vadd.f32 %v202, %v1874
    %1876 = vmatmul.f32.gmra.mxu0 %v1851
    %v1877 = vpop.f32.mrf.mxu0
    %v1878 = vadd.f32 %v203, %v1877
    %1879 = vdwg.mxu0
    %v1880 = vsel %vm467, %v1875, -inf
    %1881 = vmax.xlane.f32.xlu0 %v1880
    %v1882 = vpop.xlane.xlu0 %1881
    %v1883 = vsel %vm467, %v1878, -inf
    %1884 = vmax.xlane.f32.xlu0 %v1883
    %v1885 = vpop.xlane.xlu0 %1884
    %v1886 = vsub.f32 %v1875, %v1882
    %v1887 = vsub.f32 %v1878, %v1885
    %v1888 = vmul.f32 %v1886, 1.442695
    %v1889 = vpow.pop %v1888
    %v1890 = vmul.f32 %v1887, 1.442695
    %v1891 = vpow.pop %v1890
    %v1892 = vsel %vm467, %v1889, 0.0
    %1893 = vadd.xlane.f32.xlu0 %v1892
    %v1894 = vpop.xlane.xlu0 %1893
    %v1895 = vsel %vm467, %v1891, 0.0
    %1896 = vadd.xlane.f32.xlu0 %v1895
    %v1897 = vpop.xlane.xlu0 %1896
    %v1898 = vrcp.pop %v1894
    %v1899 = vrcp.pop %v1897
    %v1900 = vmul.f32 %v1889, %v1898
    %v1901 = vmul.f32 %v1891, %v1899
    %1902 = vrot.lane.b32.xlu0 %v1465, 32
    %v1903 = vpop.permute.xlu0 %1902
    %1904 = vrot.lane.b32.xlu0 %v1467, 32
    %v1905 = vpop.permute.xlu0 %1904
    %v1909 = vsel %vm467, %v1900, 0
    %v1912 = vsel %vm467, %v1901, 0
    %1914 = vmatpush.msra.mxu0 0.0
    %1915 = vmatpush.msra.mxu0 0.0
    %1916 = vmatpush.msra.mxu0 0.0
    %1917 = vmatpush.msra.mxu0 0.0
    %1918 = vmatpush.msra.mxu0 0.0
    %1919 = vmatpush.msra.mxu0 0.0
    %1920 = vmatpush.msra.mxu0 0.0
    %1921 = vmatpush.msra.mxu0 0.0
    %1922 = vmatpush.msra.mxu0 0.0
    %1923 = vmatpush.msra.mxu0 0.0
    %1924 = vmatpush.msra.mxu0 0.0
    %1925 = vmatpush.msra.mxu0 0.0
    %1926 = vmatpush.msra.mxu0 0.0
    %1927 = vmatpush.msra.mxu0 0.0
    %1928 = vmatpush.msra.mxu0 %v1905
    %1929 = vmatpush.msra.mxu0 %v1903
    %1930 = vmatmul.f32.gmra.mxu0 %v1909
    %v1931 = vpop.f32.mrf.mxu0
    %v1932 = vadd.f32 0.0, %v1931
    %1933 = vmatmul.f32.gmra.mxu0 %v1912
    %v1934 = vpop.f32.mrf.mxu0
    %v1935 = vadd.f32 0.0, %v1934
    %1936 = vdwg.mxu0
    %v1937 = vpack.c.bf16 %v1935, %v1932
    %v1942 = vunpack.c.l.b16 %v1285
    %v1943 = vunpack.c.l.b16 %v1286
    %v1944 = vunpack.c.l.b16 %v1287
    %v1945 = vunpack.c.l.b16 %v1288
    %v1946 = vpack.c.b16 %v1943, %v1942
    %v1947 = vpack.c.b16 %v1945, %v1944
    %v1951 = vsel %vm431, %v1937, 0
    %1953 = vmatpush.bf16.msra.mxu0 0
    %1954 = vmatpush.bf16.msra.mxu0 0
    %1955 = vmatpush.bf16.msra.mxu0 0
    %1956 = vmatpush.bf16.msra.mxu0 0
    %1957 = vmatpush.bf16.msra.mxu0 0
    %1958 = vmatpush.bf16.msra.mxu0 0
    %1959 = vmatpush.bf16.msra.mxu0 %v1947
    %1960 = vmatpush.bf16.msra.mxu0 %v1946
    %1961 = vmatmul.bf16.gmra.mxu0 %v1951
    %v1962 = vpop.f32.mrf.mxu0
    %v1963 = vadd.f32 0.0, %v1962
    %v1964 = vpop.f32.mrf.mxu0
    %v1965 = vadd.f32 0.0, %v1964
    %1966 = vdwg.mxu0
    %v1967 = vadd.f32 %v1839, %v1963
    %v1968 = vadd.f32 %v1840, %v1965
    %s1969 = scalar_lea.vmem %s7, 1
    %v1970 = vld [vmem:[%s1969] sm:$0x1]
    %v1972 = vperm.slane %v1970, 0
    %v1974 = vadd.f32 %v1967, %v1972
    %v1975 = vadd.f32 %v1968, %v1972
    %v1976 = vadd.f32 %v1974, %v1237
    %v1977 = vadd.f32 %v1975, %v1238
    %s1978 = scalar_lea.vmem %s8, 1
    %v1979 = vld [vmem:[%s1978] sm:$0x1]
    %s1980 = scalar_lea.vmem %s9, 1
    %v1981 = vld [vmem:[%s1980] sm:$0x1]
    %1982 = vadd.xlane.f32.xlu0 %v1976
    %v1983 = vpop.xlane.xlu0 %1982
    %1984 = vadd.xlane.f32.xlu0 %v1977
    %v1985 = vpop.xlane.xlu0 %1984
    %v1986 = vmul.f32 %v1983, 0.015625
    %v1987 = vmul.f32 %v1985, 0.015625
    %v1988 = vmul.f32 %v1976, %v1976
    %v1989 = vmul.f32 %v1977, %v1977
    %1990 = vadd.xlane.f32.xlu0 %v1988
    %v1991 = vpop.xlane.xlu0 %1990
    %1992 = vadd.xlane.f32.xlu0 %v1989
    %v1993 = vpop.xlane.xlu0 %1992
    %v1994 = vmul.f32 %v1991, 0.015625
    %v1995 = vmul.f32 %v1993, 0.015625
    %v1996 = vmul.f32 %v1986, %v1986
    %v1997 = vmul.f32 %v1987, %v1987
    %v1998 = vsub.f32 %v1994, %v1996
    %v1999 = vsub.f32 %v1995, %v1997
    %v2000 = vsub.f32 %v1976, %v1986
    %v2001 = vsub.f32 %v1977, %v1987
    %v2002 = vadd.f32 %v1998, 1e-12
    %v2003 = vadd.f32 %v1999, 1e-12
    %v2004 = vrsqrt.pop %v2002
    %v2005 = vmul.f32 %v2004, %v2002
    %v2006 = vmul.f32 %v2005, %v2004
    %v2007 = vmul.f32 0.5, %v2006
    %v2008 = vsub.f32 1.5, %v2007
    %v2009 = vmul.f32 %v2004, %v2008
    %vm2010 = vweird.f32 %v2002
    %vm2011 = vweird.f32 %v2004
    %vm2012 = vmor %vm2010, %vm2011
    %v2013 = vsel %vm2012, %v2004, %v2009
    %v2014 = vrsqrt.pop %v2003
    %v2015 = vmul.f32 %v2014, %v2003
    %v2016 = vmul.f32 %v2015, %v2014
    %v2017 = vmul.f32 0.5, %v2016
    %v2018 = vsub.f32 1.5, %v2017
    %v2019 = vmul.f32 %v2014, %v2018
    %vm2020 = vweird.f32 %v2003
    %vm2021 = vweird.f32 %v2014
    %vm2022 = vmor %vm2020, %vm2021
    %v2023 = vsel %vm2022, %v2014, %v2019
    %v2024 = vmul.f32 %v2000, %v2013
    %v2025 = vmul.f32 %v2001, %v2023
    %v2027 = vperm.slane %v1979, 0
    %v2029 = vmul.f32 %v2024, %v2027
    %v2030 = vmul.f32 %v2025, %v2027
    %v2032 = vperm.slane %v1981, 0
    %v2034 = vadd.f32 %v2029, %v2032
    %v2035 = vadd.f32 %v2030, %v2032
    %s2036 = scalar_lea.vmem [#allocation7], 64
    %v2037 = vld [vmem:[%s2036] sm:$0xf]
    %v2038 = vld [vmem:[%s2036 + $0x4] sm:$0xf]
    %v2039 = vld [vmem:[%s2036 + $0x8] sm:$0xf]
    %v2040 = vld [vmem:[%s2036 + $0xc] sm:$0xf]
    %v2041 = vld [vmem:[%s2036 + $0x10] sm:$0xf]
    %v2042 = vld [vmem:[%s2036 + $0x14] sm:$0xf]
    %v2043 = vld [vmem:[%s2036 + $0x18] sm:$0xf]
    %v2044 = vld [vmem:[%s2036 + $0x1c] sm:$0xf]
    %v2045 = vld [vmem:[%s2036 + $0x20] sm:$0xf]
    %v2046 = vld [vmem:[%s2036 + $0x24] sm:$0xf]
    %v2047 = vld [vmem:[%s2036 + $0x28] sm:$0xf]
    %v2048 = vld [vmem:[%s2036 + $0x2c] sm:$0xf]
    %v2049 = vld [vmem:[%s2036 + $0x30] sm:$0xf]
    %v2050 = vld [vmem:[%s2036 + $0x34] sm:$0xf]
    %v2051 = vld [vmem:[%s2036 + $0x38] sm:$0xf]
    %v2052 = vld [vmem:[%s2036 + $0x3c] sm:$0xf]
    %v2053 = vpack.c.bf16 %v2035, %v2034
    %s2054 = scalar_lea.vmem %s11, 1
    %v2055 = vld [vmem:[%s2054] sm:$0x1]
    %v2057 = vperm.slane %v2055, 0
    %v2075 = vunpack.c.l.b16 %v2037
    %v2076 = vunpack.c.l.b16 %v2038
    %v2077 = vunpack.c.l.b16 %v2039
    %v2078 = vunpack.c.l.b16 %v2040
    %v2079 = vunpack.c.l.b16 %v2041
    %v2080 = vunpack.c.l.b16 %v2042
    %v2081 = vunpack.c.l.b16 %v2043
    %v2082 = vunpack.c.l.b16 %v2044
    %v2083 = vunpack.c.l.b16 %v2045
    %v2084 = vunpack.c.l.b16 %v2046
    %v2085 = vunpack.c.l.b16 %v2047
    %v2086 = vunpack.c.l.b16 %v2048
    %v2087 = vunpack.c.l.b16 %v2049
    %v2088 = vunpack.c.l.b16 %v2050
    %v2089 = vunpack.c.l.b16 %v2051
    %v2090 = vunpack.c.l.b16 %v2052
    %v2091 = vpack.c.b16 %v2076, %v2075
    %v2092 = vpack.c.b16 %v2078, %v2077
    %v2093 = vpack.c.b16 %v2080, %v2079
    %v2094 = vpack.c.b16 %v2082, %v2081
    %v2095 = vpack.c.b16 %v2084, %v2083
    %v2096 = vpack.c.b16 %v2086, %v2085
    %v2097 = vpack.c.b16 %v2088, %v2087
    %v2098 = vpack.c.b16 %v2090, %v2089
    %2107 = vmatpush.bf16.msra.mxu0 %v2098
    %2108 = vmatpush.bf16.msra.mxu0 %v2097
    %2109 = vmatpush.bf16.msra.mxu0 %v2096
    %2110 = vmatpush.bf16.msra.mxu0 %v2095
    %2111 = vmatpush.bf16.msra.mxu0 %v2094
    %2112 = vmatpush.bf16.msra.mxu0 %v2093
    %2113 = vmatpush.bf16.msra.mxu0 %v2092
    %2114 = vmatpush.bf16.msra.mxu0 %v2091
    %2115 = vmatmul.bf16.gmra.mxu0 %v2053
    %v2116 = vpop.f32.mrf.mxu0
    %v2117 = vadd.f32 %v2057, %v2116
    %v2118 = vpop.f32.mrf.mxu0
    %v2119 = vadd.f32 %v2057, %v2118
    %2120 = vdwg.mxu0
    %v2121 = vmul.f32 %v2117, %v2117
    %v2122 = vmul.f32 %v2119, %v2119
    %v2123 = vmul.f32 %v2117, %v2121
    %v2124 = vmul.f32 %v2119, %v2122
    %v2125 = vmul.f32 %v2123, 0.044715
    %v2126 = vmul.f32 %v2124, 0.044715
    %v2127 = vadd.f32 %v2117, %v2125
    %v2128 = vadd.f32 %v2119, %v2126
    %v2129 = vmul.f32 %v2127, 0.7978846
    %v2130 = vmul.f32 %v2128, 0.7978846
    %v2131 = vtanh.pop %v2129
    %v2132 = vtanh.pop %v2130
    %v2133 = vadd.f32 %v2131, 1.0
    %v2134 = vadd.f32 %v2132, 1.0
    %v2135 = vmul.f32 %v2133, 0.5
    %v2136 = vmul.f32 %v2134, 0.5
    %v2137 = vmul.f32 %v2117, %v2135
    %v2138 = vmul.f32 %v2119, %v2136
    %s2139 = scalar_lea.vmem [#allocation9], 64
    %v2140 = vld [vmem:[%s2139] sm:$0xf]
    %v2141 = vld [vmem:[%s2139 + $0x4] sm:$0xf]
    %v2142 = vld [vmem:[%s2139 + $0x8] sm:$0xf]
    %v2143 = vld [vmem:[%s2139 + $0xc] sm:$0xf]
    %v2144 = vld [vmem:[%s2139 + $0x10] sm:$0xf]
    %v2145 = vld [vmem:[%s2139 + $0x14] sm:$0xf]
    %v2146 = vld [vmem:[%s2139 + $0x18] sm:$0xf]
    %v2147 = vld [vmem:[%s2139 + $0x1c] sm:$0xf]
    %v2148 = vld [vmem:[%s2139 + $0x20] sm:$0xf]
    %v2149 = vld [vmem:[%s2139 + $0x24] sm:$0xf]
    %v2150 = vld [vmem:[%s2139 + $0x28] sm:$0xf]
    %v2151 = vld [vmem:[%s2139 + $0x2c] sm:$0xf]
    %v2152 = vld [vmem:[%s2139 + $0x30] sm:$0xf]
    %v2153 = vld [vmem:[%s2139 + $0x34] sm:$0xf]
    %v2154 = vld [vmem:[%s2139 + $0x38] sm:$0xf]
    %v2155 = vld [vmem:[%s2139 + $0x3c] sm:$0xf]
    %v2156 = vpack.c.bf16 %v2138, %v2137
    %s2157 = scalar_lea.vmem %s13, 1
    %v2158 = vld [vmem:[%s2157] sm:$0x1]
    %v2160 = vperm.slane %v2158, 0
    %v2178 = vunpack.c.l.b16 %v2140
    %v2179 = vunpack.c.l.b16 %v2141
    %v2180 = vunpack.c.l.b16 %v2142
    %v2181 = vunpack.c.l.b16 %v2143
    %v2182 = vunpack.c.l.b16 %v2144
    %v2183 = vunpack.c.l.b16 %v2145
    %v2184 = vunpack.c.l.b16 %v2146
    %v2185 = vunpack.c.l.b16 %v2147
    %v2186 = vunpack.c.l.b16 %v2148
    %v2187 = vunpack.c.l.b16 %v2149
    %v2188 = vunpack.c.l.b16 %v2150
    %v2189 = vunpack.c.l.b16 %v2151
    %v2190 = vunpack.c.l.b16 %v2152
    %v2191 = vunpack.c.l.b16 %v2153
    %v2192 = vunpack.c.l.b16 %v2154
    %v2193 = vunpack.c.l.b16 %v2155
    %v2194 = vpack.c.b16 %v2179, %v2178
    %v2195 = vpack.c.b16 %v2181, %v2180
    %v2196 = vpack.c.b16 %v2183, %v2182
    %v2197 = vpack.c.b16 %v2185, %v2184
    %v2198 = vpack.c.b16 %v2187, %v2186
    %v2199 = vpack.c.b16 %v2189, %v2188
    %v2200 = vpack.c.b16 %v2191, %v2190
    %v2201 = vpack.c.b16 %v2193, %v2192
    %2210 = vmatpush.bf16.msra.mxu0 %v2201
    %2211 = vmatpush.bf16.msra.mxu0 %v2200
    %2212 = vmatpush.bf16.msra.mxu0 %v2199
    %2213 = vmatpush.bf16.msra.mxu0 %v2198
    %2214 = vmatpush.bf16.msra.mxu0 %v2197
    %2215 = vmatpush.bf16.msra.mxu0 %v2196
    %2216 = vmatpush.bf16.msra.mxu0 %v2195
    %2217 = vmatpush.bf16.msra.mxu0 %v2194
    %2218 = vmatmul.bf16.gmra.mxu0 %v2156
    %v2219 = vpop.f32.mrf.mxu0
    %v2220 = vadd.f32 %v2160, %v2219
    %v2221 = vpop.f32.mrf.mxu0
    %v2222 = vadd.f32 %v2160, %v2221
    %2223 = vdwg.mxu0
    %v2224 = vadd.f32 %v2220, %v2034
    %v2225 = vadd.f32 %v2222, %v2035
    %s2226 = scalar_lea.vmem %s14, 1
    %v2227 = vld [vmem:[%s2226] sm:$0x1]
    %s2228 = scalar_lea.vmem %s15, 1
    %v2229 = vld [vmem:[%s2228] sm:$0x1]
    %2230 = vadd.xlane.f32.xlu0 %v2224
    %v2231 = vpop.xlane.xlu0 %2230
    %2232 = vadd.xlane.f32.xlu0 %v2225
    %v2233 = vpop.xlane.xlu0 %2232
    %v2234 = vmul.f32 %v2231, 0.015625
    %v2235 = vmul.f32 %v2233, 0.015625
    %v2236 = vmul.f32 %v2224, %v2224
    %v2237 = vmul.f32 %v2225, %v2225
    %2238 = vadd.xlane.f32.xlu0 %v2236
    %v2239 = vpop.xlane.xlu0 %2238
    %2240 = vadd.xlane.f32.xlu0 %v2237
    %v2241 = vpop.xlane.xlu0 %2240
    %v2242 = vmul.f32 %v2239, 0.015625
    %v2243 = vmul.f32 %v2241, 0.015625
    %v2244 = vmul.f32 %v2234, %v2234
    %v2245 = vmul.f32 %v2235, %v2235
    %v2246 = vsub.f32 %v2242, %v2244
    %v2247 = vsub.f32 %v2243, %v2245
    %v2248 = vsub.f32 %v2224, %v2234
    %v2249 = vsub.f32 %v2225, %v2235
    %v2250 = vadd.f32 %v2246, 1e-12
    %v2251 = vadd.f32 %v2247, 1e-12
    %v2252 = vrsqrt.pop %v2250
    %v2253 = vmul.f32 %v2252, %v2250
    %v2254 = vmul.f32 %v2253, %v2252
    %v2255 = vmul.f32 0.5, %v2254
    %v2256 = vsub.f32 1.5, %v2255
    %v2257 = vmul.f32 %v2252, %v2256
    %vm2258 = vweird.f32 %v2250
    %vm2259 = vweird.f32 %v2252
    %vm2260 = vmor %vm2258, %vm2259
    %v2261 = vsel %vm2260, %v2252, %v2257
    %v2262 = vrsqrt.pop %v2251
    %v2263 = vmul.f32 %v2262, %v2251
    %v2264 = vmul.f32 %v2263, %v2262
    %v2265 = vmul.f32 0.5, %v2264
    %v2266 = vsub.f32 1.5, %v2265
    %v2267 = vmul.f32 %v2262, %v2266
    %vm2268 = vweird.f32 %v2251
    %vm2269 = vweird.f32 %v2262
    %vm2270 = vmor %vm2268, %vm2269
    %v2271 = vsel %vm2270, %v2262, %v2267
    %v2272 = vmul.f32 %v2248, %v2261
    %v2273 = vmul.f32 %v2249, %v2271
    %v2275 = vperm.slane %v2227, 0
    %v2277 = vmul.f32 %v2272, %v2275
    %v2278 = vmul.f32 %v2273, %v2275
    %v2280 = vperm.slane %v2229, 0
    %v2282 = vadd.f32 %v2277, %v2280
    %v2283 = vadd.f32 %v2278, %v2280
    %2284 = vst [vmem:[#allocation10] sm:$0x1] %v2282
    %2285 = vst [vmem:[#allocation10 + $0x1] sm:$0x1] %v2283
    // Predicated region
    $region74: #{distilbert_encoder.1} parent=1 // pred_check
      _
    $region75: #{distilbert_encoder.1} parent=1 // pred_check_branch
      %2287 = sbr.rel (0) target = $region77
    $region76: #{distilbert_encoder.1} parent=1 // pred_region
      %2289 = vsyncadd [#allocation6], 0
      %s2291 = sshll.u32 [#allocation10], 4
      %s2292 = int_to_ptr.vmem [resolvable:$true] %s2291
      %s2293 = sshll.u32 %s16, 4
      %s2294 = int_to_ptr.hbm [resolvable:$true] %s2293
      %2296 = dma.vmem_to_hbm [thread:$0]  %s2292, 32, %s2294, [#allocation6]
    $region77: #{distilbert_encoder.1} parent=1 // pred_fallthru
      _
    // Predicated region
    $region78: #{distilbert_encoder.1} parent=1 // pred_check
      _
    $region79: #{distilbert_encoder.1} parent=1 // pred_check_branch
      %2298 = sbr.rel (0) target = $region81
    $region80: #{distilbert_encoder.1} parent=1 // pred_region
      %2300 = dma.done [#allocation6], 32
    $region81: #{distilbert_encoder.1} parent=1 // pred_fallthru
      _
    %2301 = vsyncpa [#allocation5], 1
    %2302 = vsyncpa [#allocation8], 1
    %2303 = vsyncpa [#allocation6], 1

</llo_original>
